<compile_context>
chip_gen: v6e
topology: v6e:2x2x1
jax: 0.10.0
libtpu: 0.0.40
codegen_flags: <defaults>
</compile_context>

<pallas_src>
import jax
import jax.numpy as jnp
from jax.experimental import pallas as pl
from jax.experimental.pallas import tpu as pltpu


def _residual_kernel(x_ref, x_hbm, w1_ref, w2_ref, o_ref,
                     halo_ref, xpad_ref, sem):
    # x_ref:    (1, TH, W, C)   f32 pipelined input tile (rows t*TH .. t*TH+TH)
    # x_hbm:    (N, H, W, C)    f32 raw HBM ref (halo rows only, manual DMA)
    # w1_ref:   (9, C, C)       bf16 3x3 conv weights, tap-major (kh*3+kw, ci, co)
    # w2_ref:   (C, C)          bf16 1x1 conv weights (ci, co)
    # o_ref:    (1, TH, W, C)   output tile
    # halo_ref: (2, 1, W, C)    f32 VMEM staging for the top/bottom halo rows
    # xpad_ref: (TH+2, W+2, C)  bf16 padded activation scratch
    # sem:      DMA semaphores, shape (2,)
    _, TH, W, C = x_ref.shape
    n = pl.program_id(0)
    t = pl.program_id(1)
    nT = pl.num_programs(1)
    row0 = t * TH

    # ---- Start the (tiny) halo-row DMAs as early as possible. ----
    @pl.when(t > 0)
    def _():
        pltpu.make_async_copy(
            x_hbm.at[n, pl.ds(row0 - 1, 1)], halo_ref.at[0], sem.at[0]).start()

    @pl.when(t < nT - 1)
    def _():
        pltpu.make_async_copy(
            x_hbm.at[n, pl.ds(row0 + TH, 1)], halo_ref.at[1], sem.at[1]).start()

    # ---- Zero only the 1-wide halo ring (four thin slabs), every step. ----
    xpad_ref[0:1, :, :] = jnp.zeros((1, W + 2, C), jnp.bfloat16)
    xpad_ref[TH + 1:TH + 2, :, :] = jnp.zeros((1, W + 2, C), jnp.bfloat16)
    xpad_ref[:, 0:1, :] = jnp.zeros((TH + 2, 1, C), jnp.bfloat16)
    xpad_ref[:, W + 1:W + 2, :] = jnp.zeros((TH + 2, 1, C), jnp.bfloat16)

    # Interior: written exactly once (bf16 matmul operand layout).
    xpad_ref[1:TH + 1, 1:W + 1, :] = x_ref[0].astype(jnp.bfloat16)

    # Halo rows (overwrite the zeroed ring rows when a neighbor tile exists).
    @pl.when(t > 0)
    def _():
        pltpu.make_async_copy(
            x_hbm.at[n, pl.ds(row0 - 1, 1)], halo_ref.at[0], sem.at[0]).wait()
        xpad_ref[0:1, 1:W + 1, :] = halo_ref[0].astype(jnp.bfloat16)

    @pl.when(t < nT - 1)
    def _():
        pltpu.make_async_copy(
            x_hbm.at[n, pl.ds(row0 + TH, 1)], halo_ref.at[1], sem.at[1]).wait()
        xpad_ref[TH + 1:TH + 2, 1:W + 1, :] = halo_ref[1].astype(jnp.bfloat16)

    # ---- 3x3 conv: 9 accumulated direct matmuls (bf16 x bf16 -> f32). ----
    acc = jnp.zeros((TH * W, C), jnp.float32)
    for k in range(9):
        dy, dx = divmod(k, 3)
        a = xpad_ref[dy:dy + TH, dx:dx + W, :].reshape(TH * W, C)
        acc = acc + jnp.dot(a, w1_ref[k], preferred_element_type=jnp.float32)

    # ReLU in f32 on the VPU.
    h1 = jnp.maximum(acc, 0.0)

    # 1x1 conv == channel matmul (bf16 operands, f32 accumulation).
    y = jnp.dot(h1.astype(jnp.bfloat16), w2_ref[...],
                preferred_element_type=jnp.float32)

    # Residual add: re-read the (VMEM-resident) x tile only now, lane-dense store.
    out = x_ref[0].reshape(TH * W, C) + y
    o_ref[0] = out.reshape(TH, W, C).astype(o_ref.dtype)


def _pick_tile_h(h):
    # Prefer TH=8 (M = TH*W fills MXU rows, many grid steps), then 16, etc.
    for th in (8, 16, 4, 2, 1):
        if th <= h and h % th == 0:
            return th
    return h


def residual_layer(x_nhwc, w3x3_oihw, w1x1_oihw, *, tile_h=None):
    """x_nhwc: (N, H, W, C) float32.
    w3x3_oihw: (C, C, 3, 3) torch-layout Conv2d weight (out, in, kh, kw).
    w1x1_oihw: (C, C, 1, 1) torch-layout Conv2d weight.
    For best TPU efficiency C should be a multiple of 128 and W a multiple of 8."""
    N, H, W, C = x_nhwc.shape
    TH = tile_h if tile_h is not None else _pick_tile_h(H)
    assert H % TH == 0, "tile_h must divide H"
    nT = H // TH

    # One-time weight re-layout (outside the hot path):
    #   3x3: (out, in, kh, kw) -> (kh, kw, ci, co) -> (9, ci, co), bf16
    #   1x1: (out, in, 1, 1)   -> (ci, co), bf16
    w1 = jnp.transpose(w3x3_oihw, (2, 3, 1, 0)).reshape(9, C, C).astype(jnp.bfloat16)
    w2 = jnp.transpose(w1x1_oihw[:, :, 0, 0], (1, 0)).astype(jnp.bfloat16)

    out = pl.pallas_call(
        _residual_kernel,
        out_shape=jax.ShapeDtypeStruct((N, H, W, C), x_nhwc.dtype),
        grid_spec=pltpu.PrefetchScalarGridSpec(
            num_scalar_prefetch=0,
            grid=(N, nT),
            in_specs=[
                # Main TH-row tile: auto-pipelined.
                pl.BlockSpec((1, TH, W, C), lambda n, t: (n, t, 0, 0)),
                # Same input, raw HBM view for the 2 halo rows (manual DMA).
                pl.BlockSpec(memory_space=pl.ANY),
                # Weights stay resident across the whole grid.
                pl.BlockSpec((9, C, C), lambda n, t: (0, 0, 0)),
                pl.BlockSpec((C, C), lambda n, t: (0, 0)),
            ],
            out_specs=pl.BlockSpec((1, TH, W, C), lambda n, t: (n, t, 0, 0)),
            scratch_shapes=[
                pltpu.VMEM((2, 1, W, C), x_nhwc.dtype),        # halo staging (f32)
                pltpu.VMEM((TH + 2, W + 2, C), jnp.bfloat16),  # padded activation
                pltpu.SemaphoreType.DMA((2,)),
            ],
        ),
        compiler_params=pltpu.CompilerParams(
            dimension_semantics=("parallel", "parallel")),
    )(x_nhwc, x_nhwc, w1, w2)
    return out


def _reference(x_nhwc, w3x3_oihw, w1x1_oihw):
    # Pure-JAX reference with the same bf16-operand / f32-accumulate convention.
    xb = x_nhwc.astype(jnp.bfloat16)
    w1 = jnp.transpose(w3x3_oihw, (2, 3, 1, 0)).astype(jnp.bfloat16)
    w2 = jnp.transpose(w1x1_oihw, (2, 3, 1, 0)).astype(jnp.bfloat16)
    y = jax.lax.conv_general_dilated(
        xb, w1, window_strides=(1, 1), padding=((1, 1), (1, 1)),
        dimension_numbers=("NHWC", "HWIO", "NHWC"),
        preferred_element_type=jnp.float32)
    y = jnp.maximum(y, 0.0)
    y = jax.lax.conv_general_dilated(
        y.astype(jnp.bfloat16), w2, window_strides=(1, 1), padding="VALID",
        dimension_numbers=("NHWC", "HWIO", "NHWC"),
        preferred_element_type=jnp.float32)
    return x_nhwc + y


if __name__ == "__main__":
    key = jax.random.PRNGKey(0)
    k_x, k_w1, k_w2 = jax.random.split(key, 3)

    # in_channels == out_channels (required by the residual add);
    # C=128 keeps the channel (lane) axis fully dense on TPU.
    N, C, H, W = 2, 128, 16, 16

    # Deterministic "parameters" (synthetic init, torch Conv2d weight layout OIHW).
    w3x3 = jax.random.normal(k_w1, (C, C, 3, 3), dtype=jnp.float32) * 0.05
    w1x1 = jax.random.normal(k_w2, (C, C, 1, 1), dtype=jnp.float32) * 0.05

    # PyTorch-style NCHW input, transposed to the kernel's NHWC layout.
    x_nchw = jax.random.normal(k_x, (N, C, H, W), dtype=jnp.float32)
    x_nhwc = jnp.transpose(x_nchw, (0, 2, 3, 1))

    out = residual_layer(x_nhwc, w3x3, w1x1)
    out = jax.block_until_ready(out)

    ref = _reference(x_nhwc, w3x3, w1x1)
    max_err = jnp.max(jnp.abs(out - ref))
    assert jnp.allclose(out, ref, atol=2e-2, rtol=2e-2), (
        f"mismatch vs reference, max abs err = {max_err}")

    # Back to NCHW if the caller wants torch layout.
    _ = jnp.transpose(out, (0, 3, 1, 2))

    print("KERNEL_OK")
</pallas_src>

<mosaic_0001>
module attributes {stable_mosaic.version = 11 : i64} {
  func.func @_residual_kernel(%arg0: i32, %arg1: i32, %arg2: memref<1x8x16x128xf32, #tpu.memory_space<vmem>>, %arg3: memref<2x16x16x128xf32, #tpu.memory_space<any>>, %arg4: memref<9x128x128xbf16, #tpu.memory_space<vmem>>, %arg5: memref<128x128xbf16, #tpu.memory_space<vmem>>, %arg6: memref<1x8x16x128xf32, #tpu.memory_space<vmem>>, %arg7: memref<2x1x16x128xf32, #tpu.memory_space<vmem>>, %arg8: memref<10x18x128xbf16, #tpu.memory_space<vmem>>, %arg9: memref<2x!tpu.dma_semaphore, #tpu.memory_space<semaphore_mem>>) attributes {dimension_semantics = [#tpu.dimension_semantics<parallel>, #tpu.dimension_semantics<parallel>], iteration_bounds = array<i64: 2, 2>, scalar_prefetch = 0 : i64, scratch_operands = 3 : i64, tpu.core_type = #tpu.core_type<tc>, window_params = [{transform_indices = @transform_0, window_bounds = array<i64: 1, 8, 16, 128>}, {}, {pipeline_mode = #tpu.pipeline_mode<synchronous>, transform_indices = @transform_2, window_bounds = array<i64: 9, 128, 128>}, {pipeline_mode = #tpu.pipeline_mode<synchronous>, transform_indices = @transform_3, window_bounds = array<i64: 128, 128>}, {transform_indices = @transform_4, window_bounds = array<i64: 1, 8, 16, 128>}]} {
    %c8_i32 = arith.constant 8 : i32
    %0 = arith.muli %arg1, %c8_i32 : i32
    %c0_i32 = arith.constant 0 : i32
    %1 = arith.cmpi sgt, %arg1, %c0_i32 : i32
    %2 = arith.extui %1 : i1 to i32
    %c0_i32_0 = arith.constant 0 : i32
    %3 = arith.cmpi ne, %2, %c0_i32_0 : i32
    scf.if %3 {
      %c1_i32_93 = arith.constant 1 : i32
      %93 = arith.subi %0, %c1_i32_93 : i32
      %c0_i32_94 = arith.constant 0 : i32
      %c0_i32_95 = arith.constant 0 : i32
      %c0_i32_96 = arith.constant 0 : i32
      %c0_i32_97 = arith.constant 0 : i32
      %94 = tpu.memref_slice %arg3[%arg0, %93, %c0_i32_96, %c0_i32_97] : memref<2x16x16x128xf32, #tpu.memory_space<any>> -> memref<1x1x16x128xf32, #tpu.memory_space<any>>
      %95 = tpu.memref_squeeze %94 : memref<1x1x16x128xf32, #tpu.memory_space<any>> -> memref<1x16x128xf32, #tpu.memory_space<any>>
      %c0_i32_98 = arith.constant 0 : i32
      %c0_i32_99 = arith.constant 0 : i32
      %c0_i32_100 = arith.constant 0 : i32
      %96 = tpu.memref_slice %arg7[%c0_i32_94, %c0_i32_98, %c0_i32_99, %c0_i32_100] : memref<2x1x16x128xf32, #tpu.memory_space<vmem>> -> memref<1x1x16x128xf32, #tpu.memory_space<vmem>>
      %97 = tpu.memref_squeeze %96 : memref<1x1x16x128xf32, #tpu.memory_space<vmem>> -> memref<1x16x128xf32, #tpu.memory_space<vmem>>
      %98 = tpu.memref_slice %arg9[%c0_i32_95] : memref<2x!tpu.dma_semaphore, #tpu.memory_space<semaphore_mem>> -> memref<1x!tpu.dma_semaphore, #tpu.memory_space<semaphore_mem>>
      %99 = tpu.memref_squeeze %98 : memref<1x!tpu.dma_semaphore, #tpu.memory_space<semaphore_mem>> -> memref<!tpu.dma_semaphore, #tpu.memory_space<semaphore_mem>>
      tpu.enqueue_dma source(%95 : memref<1x16x128xf32, #tpu.memory_space<any>>) target(%97 : memref<1x16x128xf32, #tpu.memory_space<vmem>>) target_semaphore(%99 : memref<!tpu.dma_semaphore, #tpu.memory_space<semaphore_mem>>)
    } else {
    }
    %c1_i32 = arith.constant 1 : i32
    %4 = arith.cmpi slt, %arg1, %c1_i32 : i32
    %5 = arith.extui %4 : i1 to i32
    %c0_i32_1 = arith.constant 0 : i32
    %6 = arith.cmpi ne, %5, %c0_i32_1 : i32
    scf.if %6 {
      %c8_i32_93 = arith.constant 8 : i32
      %93 = arith.addi %0, %c8_i32_93 : i32
      %c1_i32_94 = arith.constant 1 : i32
      %c1_i32_95 = arith.constant 1 : i32
      %c0_i32_96 = arith.constant 0 : i32
      %c0_i32_97 = arith.constant 0 : i32
      %94 = tpu.memref_slice %arg3[%arg0, %93, %c0_i32_96, %c0_i32_97] : memref<2x16x16x128xf32, #tpu.memory_space<any>> -> memref<1x1x16x128xf32, #tpu.memory_space<any>>
      %95 = tpu.memref_squeeze %94 : memref<1x1x16x128xf32, #tpu.memory_space<any>> -> memref<1x16x128xf32, #tpu.memory_space<any>>
      %c0_i32_98 = arith.constant 0 : i32
      %c0_i32_99 = arith.constant 0 : i32
      %c0_i32_100 = arith.constant 0 : i32
      %96 = tpu.memref_slice %arg7[%c1_i32_94, %c0_i32_98, %c0_i32_99, %c0_i32_100] : memref<2x1x16x128xf32, #tpu.memory_space<vmem>> -> memref<1x1x16x128xf32, #tpu.memory_space<vmem>>
      %97 = tpu.memref_squeeze %96 : memref<1x1x16x128xf32, #tpu.memory_space<vmem>> -> memref<1x16x128xf32, #tpu.memory_space<vmem>>
      %98 = tpu.memref_slice %arg9[%c1_i32_95] : memref<2x!tpu.dma_semaphore, #tpu.memory_space<semaphore_mem>> -> memref<1x!tpu.dma_semaphore, #tpu.memory_space<semaphore_mem>>
      %99 = tpu.memref_squeeze %98 : memref<1x!tpu.dma_semaphore, #tpu.memory_space<semaphore_mem>> -> memref<!tpu.dma_semaphore, #tpu.memory_space<semaphore_mem>>
      tpu.enqueue_dma source(%95 : memref<1x16x128xf32, #tpu.memory_space<any>>) target(%97 : memref<1x16x128xf32, #tpu.memory_space<vmem>>) target_semaphore(%99 : memref<!tpu.dma_semaphore, #tpu.memory_space<semaphore_mem>>)
    } else {
    }
    %cst = arith.constant 0.000000e+00 : bf16
    %7 = vector.broadcast %cst : bf16 to vector<1x18x128xbf16>
    %c0 = arith.constant 0 : index
    %c0_2 = arith.constant 0 : index
    %c0_3 = arith.constant 0 : index
    %8 = vector.load %arg8[%c0, %c0_2, %c0_3] : memref<10x18x128xbf16, #tpu.memory_space<vmem>>, vector<1x18x128xbf16>
    tpu.vector_store %arg8[%c0, %c0_2, %c0_3], %7 {strides = array<i32>} : memref<10x18x128xbf16, #tpu.memory_space<vmem>>, vector<1x18x128xbf16>,
    %cst_4 = arith.constant 0.000000e+00 : bf16
    %9 = vector.broadcast %cst_4 : bf16 to vector<1x18x128xbf16>
    %c9 = arith.constant 9 : index
    %c0_5 = arith.constant 0 : index
    %c0_6 = arith.constant 0 : index
    %10 = vector.load %arg8[%c9, %c0_5, %c0_6] : memref<10x18x128xbf16, #tpu.memory_space<vmem>>, vector<1x18x128xbf16>
    tpu.vector_store %arg8[%c9, %c0_5, %c0_6], %9 {strides = array<i32>} : memref<10x18x128xbf16, #tpu.memory_space<vmem>>, vector<1x18x128xbf16>,
    %cst_7 = arith.constant 0.000000e+00 : bf16
    %11 = vector.broadcast %cst_7 : bf16 to vector<10x1x128xbf16>
    %c0_8 = arith.constant 0 : index
    %c0_9 = arith.constant 0 : index
    %c0_10 = arith.constant 0 : index
    %12 = vector.load %arg8[%c0_8, %c0_9, %c0_10] : memref<10x18x128xbf16, #tpu.memory_space<vmem>>, vector<10x1x128xbf16>
    tpu.vector_store %arg8[%c0_8, %c0_9, %c0_10], %11 {strides = array<i32>} : memref<10x18x128xbf16, #tpu.memory_space<vmem>>, vector<10x1x128xbf16>,
    %cst_11 = arith.constant 0.000000e+00 : bf16
    %13 = vector.broadcast %cst_11 : bf16 to vector<10x1x128xbf16>
    %c0_12 = arith.constant 0 : index
    %c17 = arith.constant 17 : index
    %c0_13 = arith.constant 0 : index
    %14 = vector.load %arg8[%c0_12, %c17, %c0_13] : memref<10x18x128xbf16, #tpu.memory_space<vmem>>, vector<10x1x128xbf16>
    tpu.vector_store %arg8[%c0_12, %c17, %c0_13], %13 {strides = array<i32>} : memref<10x18x128xbf16, #tpu.memory_space<vmem>>, vector<10x1x128xbf16>,
    %c0_14 = arith.constant 0 : index
    %c0_15 = arith.constant 0 : index
    %c0_16 = arith.constant 0 : index
    %c0_17 = arith.constant 0 : index
    %15 = vector.load %arg2[%c0_14, %c0_15, %c0_16, %c0_17] : memref<1x8x16x128xf32, #tpu.memory_space<vmem>>, vector<1x8x16x128xf32>
    %16 = vector.shape_cast %15 : vector<1x8x16x128xf32> to vector<8x16x128xf32>
    %17 = arith.truncf %16 : vector<8x16x128xf32> to vector<8x16x128xbf16>
    %c1 = arith.constant 1 : index
    %c1_18 = arith.constant 1 : index
    %c0_19 = arith.constant 0 : index
    %18 = vector.load %arg8[%c1, %c1_18, %c0_19] : memref<10x18x128xbf16, #tpu.memory_space<vmem>>, vector<8x16x128xbf16>
    tpu.vector_store %arg8[%c1, %c1_18, %c0_19], %17 {strides = array<i32>} : memref<10x18x128xbf16, #tpu.memory_space<vmem>>, vector<8x16x128xbf16>,
    %c0_i32_20 = arith.constant 0 : i32
    %19 = arith.cmpi sgt, %arg1, %c0_i32_20 : i32
    %20 = arith.extui %19 : i1 to i32
    %c0_i32_21 = arith.constant 0 : i32
    %21 = arith.cmpi ne, %20, %c0_i32_21 : i32
    scf.if %21 {
      %c1_i32_93 = arith.constant 1 : i32
      %93 = arith.subi %0, %c1_i32_93 : i32
      %c0_i32_94 = arith.constant 0 : i32
      %c0_i32_95 = arith.constant 0 : i32
      %c0_i32_96 = arith.constant 0 : i32
      %c0_i32_97 = arith.constant 0 : i32
      %94 = tpu.memref_slice %arg3[%arg0, %93, %c0_i32_96, %c0_i32_97] : memref<2x16x16x128xf32, #tpu.memory_space<any>> -> memref<1x1x16x128xf32, #tpu.memory_space<any>>
      %95 = tpu.memref_squeeze %94 : memref<1x1x16x128xf32, #tpu.memory_space<any>> -> memref<1x16x128xf32, #tpu.memory_space<any>>
      %c0_i32_98 = arith.constant 0 : i32
      %c0_i32_99 = arith.constant 0 : i32
      %c0_i32_100 = arith.constant 0 : i32
      %96 = tpu.memref_slice %arg7[%c0_i32_94, %c0_i32_98, %c0_i32_99, %c0_i32_100] : memref<2x1x16x128xf32, #tpu.memory_space<vmem>> -> memref<1x1x16x128xf32, #tpu.memory_space<vmem>>
      %97 = tpu.memref_squeeze %96 : memref<1x1x16x128xf32, #tpu.memory_space<vmem>> -> memref<1x16x128xf32, #tpu.memory_space<vmem>>
      %98 = tpu.memref_slice %arg9[%c0_i32_95] : memref<2x!tpu.dma_semaphore, #tpu.memory_space<semaphore_mem>> -> memref<1x!tpu.dma_semaphore, #tpu.memory_space<semaphore_mem>>
      %99 = tpu.memref_squeeze %98 : memref<1x!tpu.dma_semaphore, #tpu.memory_space<semaphore_mem>> -> memref<!tpu.dma_semaphore, #tpu.memory_space<semaphore_mem>>
      tpu.wait_dma2 semaphore(%99 : memref<!tpu.dma_semaphore, #tpu.memory_space<semaphore_mem>>) src(%95 : memref<1x16x128xf32, #tpu.memory_space<any>>) dst(%97 : memref<1x16x128xf32, #tpu.memory_space<vmem>>)
      %c0_101 = arith.constant 0 : index
      %c0_102 = arith.constant 0 : index
      %c0_103 = arith.constant 0 : index
      %c0_104 = arith.constant 0 : index
      %100 = vector.load %arg7[%c0_101, %c0_102, %c0_103, %c0_104] : memref<2x1x16x128xf32, #tpu.memory_space<vmem>>, vector<1x1x16x128xf32>
      %101 = vector.shape_cast %100 : vector<1x1x16x128xf32> to vector<1x16x128xf32>
      %102 = arith.truncf %101 : vector<1x16x128xf32> to vector<1x16x128xbf16>
      %c0_105 = arith.constant 0 : index
      %c1_106 = arith.constant 1 : index
      %c0_107 = arith.constant 0 : index
      %103 = vector.load %arg8[%c0_105, %c1_106, %c0_107] : memref<10x18x128xbf16, #tpu.memory_space<vmem>>, vector<1x16x128xbf16>
      tpu.vector_store %arg8[%c0_105, %c1_106, %c0_107], %102 {strides = array<i32>} : memref<10x18x128xbf16, #tpu.memory_space<vmem>>, vector<1x16x128xbf16>,
    } else {
    }
    %c1_i32_22 = arith.constant 1 : i32
    %22 = arith.cmpi slt, %arg1, %c1_i32_22 : i32
    %23 = arith.extui %22 : i1 to i32
    %c0_i32_23 = arith.constant 0 : i32
    %24 = arith.cmpi ne, %23, %c0_i32_23 : i32
    scf.if %24 {
      %c8_i32_93 = arith.constant 8 : i32
      %93 = arith.addi %0, %c8_i32_93 : i32
      %c1_i32_94 = arith.constant 1 : i32
      %c1_i32_95 = arith.constant 1 : i32
      %c0_i32_96 = arith.constant 0 : i32
      %c0_i32_97 = arith.constant 0 : i32
      %94 = tpu.memref_slice %arg3[%arg0, %93, %c0_i32_96, %c0_i32_97] : memref<2x16x16x128xf32, #tpu.memory_space<any>> -> memref<1x1x16x128xf32, #tpu.memory_space<any>>
      %95 = tpu.memref_squeeze %94 : memref<1x1x16x128xf32, #tpu.memory_space<any>> -> memref<1x16x128xf32, #tpu.memory_space<any>>
      %c0_i32_98 = arith.constant 0 : i32
      %c0_i32_99 = arith.constant 0 : i32
      %c0_i32_100 = arith.constant 0 : i32
      %96 = tpu.memref_slice %arg7[%c1_i32_94, %c0_i32_98, %c0_i32_99, %c0_i32_100] : memref<2x1x16x128xf32, #tpu.memory_space<vmem>> -> memref<1x1x16x128xf32, #tpu.memory_space<vmem>>
      %97 = tpu.memref_squeeze %96 : memref<1x1x16x128xf32, #tpu.memory_space<vmem>> -> memref<1x16x128xf32, #tpu.memory_space<vmem>>
      %98 = tpu.memref_slice %arg9[%c1_i32_95] : memref<2x!tpu.dma_semaphore, #tpu.memory_space<semaphore_mem>> -> memref<1x!tpu.dma_semaphore, #tpu.memory_space<semaphore_mem>>
      %99 = tpu.memref_squeeze %98 : memref<1x!tpu.dma_semaphore, #tpu.memory_space<semaphore_mem>> -> memref<!tpu.dma_semaphore, #tpu.memory_space<semaphore_mem>>
      tpu.wait_dma2 semaphore(%99 : memref<!tpu.dma_semaphore, #tpu.memory_space<semaphore_mem>>) src(%95 : memref<1x16x128xf32, #tpu.memory_space<any>>) dst(%97 : memref<1x16x128xf32, #tpu.memory_space<vmem>>)
      %c1_101 = arith.constant 1 : index
      %c0_102 = arith.constant 0 : index
      %c0_103 = arith.constant 0 : index
      %c0_104 = arith.constant 0 : index
      %100 = vector.load %arg7[%c1_101, %c0_102, %c0_103, %c0_104] : memref<2x1x16x128xf32, #tpu.memory_space<vmem>>, vector<1x1x16x128xf32>
      %101 = vector.shape_cast %100 : vector<1x1x16x128xf32> to vector<1x16x128xf32>
      %102 = arith.truncf %101 : vector<1x16x128xf32> to vector<1x16x128xbf16>
      %c9_105 = arith.constant 9 : index
      %c1_106 = arith.constant 1 : index
      %c0_107 = arith.constant 0 : index
      %103 = vector.load %arg8[%c9_105, %c1_106, %c0_107] : memref<10x18x128xbf16, #tpu.memory_space<vmem>>, vector<1x16x128xbf16>
      tpu.vector_store %arg8[%c9_105, %c1_106, %c0_107], %102 {strides = array<i32>} : memref<10x18x128xbf16, #tpu.memory_space<vmem>>, vector<1x16x128xbf16>,
    } else {
    }
    %cst_24 = arith.constant 0.000000e+00 : f32
    %25 = vector.broadcast %cst_24 : f32 to vector<128x128xf32>
    %c0_25 = arith.constant 0 : index
    %c0_26 = arith.constant 0 : index
    %c0_27 = arith.constant 0 : index
    %26 = vector.load %arg8[%c0_25, %c0_26, %c0_27] : memref<10x18x128xbf16, #tpu.memory_space<vmem>>, vector<8x16x128xbf16>
    %27 = vector.shape_cast %26 : vector<8x16x128xbf16> to vector<128x128xbf16>
    %c0_28 = arith.constant 0 : index
    %c0_29 = arith.constant 0 : index
    %c0_30 = arith.constant 0 : index
    %28 = vector.load %arg4[%c0_28, %c0_29, %c0_30] : memref<9x128x128xbf16, #tpu.memory_space<vmem>>, vector<1x128x128xbf16>
    %29 = vector.shape_cast %28 : vector<1x128x128xbf16> to vector<128x128xbf16>
    %cst_31 = arith.constant dense<0.000000e+00> : vector<128x128xf32>
    %30 = tpu.matmul %27, %29, %cst_31 {dimension_numbers = #tpu.dot_dimension_numbers<[1], [0], [0], [1], [0, 0, 1, 1], [], []>} : vector<128x128xbf16>, vector<128x128xbf16>, vector<128x128xf32> -> vector<128x128xf32>
    %31 = arith.addf %25, %30 : vector<128x128xf32>
    %c0_32 = arith.constant 0 : index
    %c1_33 = arith.constant 1 : index
    %c0_34 = arith.constant 0 : index
    %32 = vector.load %arg8[%c0_32, %c1_33, %c0_34] : memref<10x18x128xbf16, #tpu.memory_space<vmem>>, vector<8x16x128xbf16>
    %33 = vector.shape_cast %32 : vector<8x16x128xbf16> to vector<128x128xbf16>
    %c1_35 = arith.constant 1 : index
    %c0_36 = arith.constant 0 : index
    %c0_37 = arith.constant 0 : index
    %34 = vector.load %arg4[%c1_35, %c0_36, %c0_37] : memref<9x128x128xbf16, #tpu.memory_space<vmem>>, vector<1x128x128xbf16>
    %35 = vector.shape_cast %34 : vector<1x128x128xbf16> to vector<128x128xbf16>
    %cst_38 = arith.constant dense<0.000000e+00> : vector<128x128xf32>
    %36 = tpu.matmul %33, %35, %cst_38 {dimension_numbers = #tpu.dot_dimension_numbers<[1], [0], [0], [1], [0, 0, 1, 1], [], []>} : vector<128x128xbf16>, vector<128x128xbf16>, vector<128x128xf32> -> vector<128x128xf32>
    %37 = arith.addf %31, %36 : vector<128x128xf32>
    %c0_39 = arith.constant 0 : index
    %c2 = arith.constant 2 : index
    %c0_40 = arith.constant 0 : index
    %38 = vector.load %arg8[%c0_39, %c2, %c0_40] : memref<10x18x128xbf16, #tpu.memory_space<vmem>>, vector<8x16x128xbf16>
    %39 = vector.shape_cast %38 : vector<8x16x128xbf16> to vector<128x128xbf16>
    %c2_41 = arith.constant 2 : index
    %c0_42 = arith.constant 0 : index
    %c0_43 = arith.constant 0 : index
    %40 = vector.load %arg4[%c2_41, %c0_42, %c0_43] : memref<9x128x128xbf16, #tpu.memory_space<vmem>>, vector<1x128x128xbf16>
    %41 = vector.shape_cast %40 : vector<1x128x128xbf16> to vector<128x128xbf16>
    %cst_44 = arith.constant dense<0.000000e+00> : vector<128x128xf32>
    %42 = tpu.matmul %39, %41, %cst_44 {dimension_numbers = #tpu.dot_dimension_numbers<[1], [0], [0], [1], [0, 0, 1, 1], [], []>} : vector<128x128xbf16>, vector<128x128xbf16>, vector<128x128xf32> -> vector<128x128xf32>
    %43 = arith.addf %37, %42 : vector<128x128xf32>
    %c1_45 = arith.constant 1 : index
    %c0_46 = arith.constant 0 : index
    %c0_47 = arith.constant 0 : index
    %44 = vector.load %arg8[%c1_45, %c0_46, %c0_47] : memref<10x18x128xbf16, #tpu.memory_space<vmem>>, vector<8x16x128xbf16>
    %45 = vector.shape_cast %44 : vector<8x16x128xbf16> to vector<128x128xbf16>
    %c3 = arith.constant 3 : index
    %c0_48 = arith.constant 0 : index
    %c0_49 = arith.constant 0 : index
    %46 = vector.load %arg4[%c3, %c0_48, %c0_49] : memref<9x128x128xbf16, #tpu.memory_space<vmem>>, vector<1x128x128xbf16>
    %47 = vector.shape_cast %46 : vector<1x128x128xbf16> to vector<128x128xbf16>
    %cst_50 = arith.constant dense<0.000000e+00> : vector<128x128xf32>
    %48 = tpu.matmul %45, %47, %cst_50 {dimension_numbers = #tpu.dot_dimension_numbers<[1], [0], [0], [1], [0, 0, 1, 1], [], []>} : vector<128x128xbf16>, vector<128x128xbf16>, vector<128x128xf32> -> vector<128x128xf32>
    %49 = arith.addf %43, %48 : vector<128x128xf32>
    %c1_51 = arith.constant 1 : index
    %c1_52 = arith.constant 1 : index
    %c0_53 = arith.constant 0 : index
    %50 = vector.load %arg8[%c1_51, %c1_52, %c0_53] : memref<10x18x128xbf16, #tpu.memory_space<vmem>>, vector<8x16x128xbf16>
    %51 = vector.shape_cast %50 : vector<8x16x128xbf16> to vector<128x128xbf16>
    %c4 = arith.constant 4 : index
    %c0_54 = arith.constant 0 : index
    %c0_55 = arith.constant 0 : index
    %52 = vector.load %arg4[%c4, %c0_54, %c0_55] : memref<9x128x128xbf16, #tpu.memory_space<vmem>>, vector<1x128x128xbf16>
    %53 = vector.shape_cast %52 : vector<1x128x128xbf16> to vector<128x128xbf16>
    %cst_56 = arith.constant dense<0.000000e+00> : vector<128x128xf32>
    %54 = tpu.matmul %51, %53, %cst_56 {dimension_numbers = #tpu.dot_dimension_numbers<[1], [0], [0], [1], [0, 0, 1, 1], [], []>} : vector<128x128xbf16>, vector<128x128xbf16>, vector<128x128xf32> -> vector<128x128xf32>
    %55 = arith.addf %49, %54 : vector<128x128xf32>
    %c1_57 = arith.constant 1 : index
    %c2_58 = arith.constant 2 : index
    %c0_59 = arith.constant 0 : index
    %56 = vector.load %arg8[%c1_57, %c2_58, %c0_59] : memref<10x18x128xbf16, #tpu.memory_space<vmem>>, vector<8x16x128xbf16>
    %57 = vector.shape_cast %56 : vector<8x16x128xbf16> to vector<128x128xbf16>
    %c5 = arith.constant 5 : index
    %c0_60 = arith.constant 0 : index
    %c0_61 = arith.constant 0 : index
    %58 = vector.load %arg4[%c5, %c0_60, %c0_61] : memref<9x128x128xbf16, #tpu.memory_space<vmem>>, vector<1x128x128xbf16>
    %59 = vector.shape_cast %58 : vector<1x128x128xbf16> to vector<128x128xbf16>
    %cst_62 = arith.constant dense<0.000000e+00> : vector<128x128xf32>
    %60 = tpu.matmul %57, %59, %cst_62 {dimension_numbers = #tpu.dot_dimension_numbers<[1], [0], [0], [1], [0, 0, 1, 1], [], []>} : vector<128x128xbf16>, vector<128x128xbf16>, vector<128x128xf32> -> vector<128x128xf32>
    %61 = arith.addf %55, %60 : vector<128x128xf32>
    %c2_63 = arith.constant 2 : index
    %c0_64 = arith.constant 0 : index
    %c0_65 = arith.constant 0 : index
    %62 = vector.load %arg8[%c2_63, %c0_64, %c0_65] : memref<10x18x128xbf16, #tpu.memory_space<vmem>>, vector<8x16x128xbf16>
    %63 = vector.shape_cast %62 : vector<8x16x128xbf16> to vector<128x128xbf16>
    %c6 = arith.constant 6 : index
    %c0_66 = arith.constant 0 : index
    %c0_67 = arith.constant 0 : index
    %64 = vector.load %arg4[%c6, %c0_66, %c0_67] : memref<9x128x128xbf16, #tpu.memory_space<vmem>>, vector<1x128x128xbf16>
    %65 = vector.shape_cast %64 : vector<1x128x128xbf16> to vector<128x128xbf16>
    %cst_68 = arith.constant dense<0.000000e+00> : vector<128x128xf32>
    %66 = tpu.matmul %63, %65, %cst_68 {dimension_numbers = #tpu.dot_dimension_numbers<[1], [0], [0], [1], [0, 0, 1, 1], [], []>} : vector<128x128xbf16>, vector<128x128xbf16>, vector<128x128xf32> -> vector<128x128xf32>
    %67 = arith.addf %61, %66 : vector<128x128xf32>
    %c2_69 = arith.constant 2 : index
    %c1_70 = arith.constant 1 : index
    %c0_71 = arith.constant 0 : index
    %68 = vector.load %arg8[%c2_69, %c1_70, %c0_71] : memref<10x18x128xbf16, #tpu.memory_space<vmem>>, vector<8x16x128xbf16>
    %69 = vector.shape_cast %68 : vector<8x16x128xbf16> to vector<128x128xbf16>
    %c7 = arith.constant 7 : index
    %c0_72 = arith.constant 0 : index
    %c0_73 = arith.constant 0 : index
    %70 = vector.load %arg4[%c7, %c0_72, %c0_73] : memref<9x128x128xbf16, #tpu.memory_space<vmem>>, vector<1x128x128xbf16>
    %71 = vector.shape_cast %70 : vector<1x128x128xbf16> to vector<128x128xbf16>
    %cst_74 = arith.constant dense<0.000000e+00> : vector<128x128xf32>
    %72 = tpu.matmul %69, %71, %cst_74 {dimension_numbers = #tpu.dot_dimension_numbers<[1], [0], [0], [1], [0, 0, 1, 1], [], []>} : vector<128x128xbf16>, vector<128x128xbf16>, vector<128x128xf32> -> vector<128x128xf32>
    %73 = arith.addf %67, %72 : vector<128x128xf32>
    %c2_75 = arith.constant 2 : index
    %c2_76 = arith.constant 2 : index
    %c0_77 = arith.constant 0 : index
    %74 = vector.load %arg8[%c2_75, %c2_76, %c0_77] : memref<10x18x128xbf16, #tpu.memory_space<vmem>>, vector<8x16x128xbf16>
    %75 = vector.shape_cast %74 : vector<8x16x128xbf16> to vector<128x128xbf16>
    %c8 = arith.constant 8 : index
    %c0_78 = arith.constant 0 : index
    %c0_79 = arith.constant 0 : index
    %76 = vector.load %arg4[%c8, %c0_78, %c0_79] : memref<9x128x128xbf16, #tpu.memory_space<vmem>>, vector<1x128x128xbf16>
    %77 = vector.shape_cast %76 : vector<1x128x128xbf16> to vector<128x128xbf16>
    %cst_80 = arith.constant dense<0.000000e+00> : vector<128x128xf32>
    %78 = tpu.matmul %75, %77, %cst_80 {dimension_numbers = #tpu.dot_dimension_numbers<[1], [0], [0], [1], [0, 0, 1, 1], [], []>} : vector<128x128xbf16>, vector<128x128xbf16>, vector<128x128xf32> -> vector<128x128xf32>
    %79 = arith.addf %73, %78 : vector<128x128xf32>
    %cst_81 = arith.constant 0.000000e+00 : f32
    %80 = vector.broadcast %cst_81 : f32 to vector<128x128xf32>
    %81 = arith.maximumf %79, %80 : vector<128x128xf32>
    %82 = arith.truncf %81 : vector<128x128xf32> to vector<128x128xbf16>
    %c0_82 = arith.constant 0 : index
    %c0_83 = arith.constant 0 : index
    %83 = vector.load %arg5[%c0_82, %c0_83] : memref<128x128xbf16, #tpu.memory_space<vmem>>, vector<128x128xbf16>
    %cst_84 = arith.constant dense<0.000000e+00> : vector<128x128xf32>
    %84 = tpu.matmul %82, %83, %cst_84 {dimension_numbers = #tpu.dot_dimension_numbers<[1], [0], [0], [1], [0, 0, 1, 1], [], []>} : vector<128x128xbf16>, vector<128x128xbf16>, vector<128x128xf32> -> vector<128x128xf32>
    %c0_85 = arith.constant 0 : index
    %c0_86 = arith.constant 0 : index
    %c0_87 = arith.constant 0 : index
    %c0_88 = arith.constant 0 : index
    %85 = vector.load %arg2[%c0_85, %c0_86, %c0_87, %c0_88] : memref<1x8x16x128xf32, #tpu.memory_space<vmem>>, vector<1x8x16x128xf32>
    %86 = vector.shape_cast %85 : vector<1x8x16x128xf32> to vector<8x16x128xf32>
    %87 = vector.shape_cast %86 : vector<8x16x128xf32> to vector<128x128xf32>
    %88 = arith.addf %87, %84 : vector<128x128xf32>
    %89 = vector.shape_cast %88 : vector<128x128xf32> to vector<8x16x128xf32>
    %c0_89 = arith.constant 0 : index
    %c0_90 = arith.constant 0 : index
    %c0_91 = arith.constant 0 : index
    %c0_92 = arith.constant 0 : index
    %90 = vector.load %arg6[%c0_89, %c0_90, %c0_91, %c0_92] : memref<1x8x16x128xf32, #tpu.memory_space<vmem>>, vector<1x8x16x128xf32>
    %91 = vector.shape_cast %90 : vector<1x8x16x128xf32> to vector<8x16x128xf32>
    %92 = vector.shape_cast %89 : vector<8x16x128xf32> to vector<1x8x16x128xf32>
    tpu.vector_store %arg6[%c0_89, %c0_90, %c0_91, %c0_92], %92 {strides = array<i32>} : memref<1x8x16x128xf32, #tpu.memory_space<vmem>>, vector<1x8x16x128xf32>,
    return
  }
  func.func @transform_0(%arg0: i32, %arg1: i32) -> (i32, i32, i32, i32) {
    %c0_i32 = arith.constant 0 : i32
    %c0_i32_0 = arith.constant 0 : i32
    %c0_i32_1 = arith.constant 0 : i32
    return %arg0, %arg1, %c0_i32, %c0_i32_0 : i32, i32, i32, i32
  }
  func.func @transform_2(%arg0: i32, %arg1: i32) -> (i32, i32, i32) {
    %c0_i32 = arith.constant 0 : i32
    %c0_i32_0 = arith.constant 0 : i32
    %c0_i32_1 = arith.constant 0 : i32
    %c0_i32_2 = arith.constant 0 : i32
    return %c0_i32, %c0_i32_0, %c0_i32_1 : i32, i32, i32
  }
  func.func @transform_3(%arg0: i32, %arg1: i32) -> (i32, i32) {
    %c0_i32 = arith.constant 0 : i32
    %c0_i32_0 = arith.constant 0 : i32
    %c0_i32_1 = arith.constant 0 : i32
    return %c0_i32, %c0_i32_0 : i32, i32
  }
  func.func @transform_4(%arg0: i32, %arg1: i32) -> (i32, i32, i32, i32) {
    %c0_i32 = arith.constant 0 : i32
    %c0_i32_0 = arith.constant 0 : i32
    %c0_i32_1 = arith.constant 0 : i32
    return %arg0, %arg1, %c0_i32, %c0_i32_0 : i32, i32, i32, i32
  }
}

</mosaic_0001>

<llo_original>
// kernel: tpu_custom_call.1
$region0: #{tpu_custom_call.1}
  #allocation0 [shape = 'u32[]', space=smem, size = 0x4, offset = 0x4, fixed_abs, tag = 'smem constant byte address 0x4 - core index']
  #allocation1 [shape = 'u32[144,128]{1,0:T(1,128)}', space=vmem, size = 0x12000, scoped, tag = 'internal scratch']
  #allocation2 [shape = 'f32[2,1,16,128]{3,2,1,0:T(8,128)}', space=vmem, size = 0x4000, scoped, tag = 'scratch operand']
  #allocation3 [shape = 'bf16[10,18,128]{2,1,0:T(8,128)(2,1)}', space=vmem, size = 0xf000, scoped, tag = 'scratch operand']
  #allocation4 [shape = 's32[2]{0}', space=sflag, size = 0x8, scoped, tag = 'scratch operand']
  #allocation12 [shape = 's32[]', space=sflag, size = 0x4, offset = 0, fixed_abs, tag = 'sflag constant byte address 0x0 - dummy sync flag']
  #allocation13 [shape = 's32[]', space=sflag, size = 0x4, offset = 0, fixed_abs, tag = 'sflag constant byte address 0x0 - dummy sync flag']
  #allocation14 [shape = 'u32[]', space=smem, size = 0x4, offset = 0x44, fixed_abs, tag = 'smem constant byte address 0x44 - assertion arg 0']
  #allocation15 [shape = 'u32[]', space=smem, size = 0x4, offset = 0x48, fixed_abs, tag = 'smem constant byte address 0x48 - assertion arg 1']
  #allocation16 [shape = 's32[]', space=sflag, size = 0x4, offset = 0, fixed_abs, tag = 'sflag constant byte address 0x0 - dummy sync flag']
  #allocation17 [shape = 's32[]', space=sflag, size = 0x4, offset = 0, fixed_abs, tag = 'sflag constant byte address 0x0 - dummy sync flag']
  %s0 = inlined_call_operand.hbm [shape: f32[2,16,16,128], index: 0, kind: input, shape index: {}]
  %s1 = inlined_call_operand.hbm [shape: f32[2,16,16,128], index: 1, kind: input, shape index: {}]
  %s2 = inlined_call_operand.hbm [shape: bf16[9,128,128], index: 2, kind: input, shape index: {}]
  %s3 = inlined_call_operand.hbm [shape: bf16[128,128], index: 3, kind: input, shape index: {}]
  %s4 = inlined_call_operand.hbm [shape: f32[2,16,16,128], index: 4, kind: output, shape index: {}]
  %s5 = sld [smem:[#allocation0]]
  $region81: #{tpu_custom_call.1} parent=0
    _
  %s7 = ssub.s32 1, %s5
  %s8 = scalar_select 0, %s7, %s5
  $region1: #{tpu_custom_call.1} parent=0
    #allocation5 [shape = 'u8[131072]{0}', space=vmem, size = 0x20000, scoped, tag = 'input window, operand 0']
    #allocation6 [shape = 's32[2]{0}', space=sflag, size = 0x8, scoped, tag = 'scoped memory for tpu_custom_call.1']
    #allocation7 [shape = 's32[2]{0}', space=sflag, size = 0x8, scoped, tag = 'scoped memory for tpu_custom_call.1']
    #allocation8 [shape = 'u8[294912]{0}', space=vmem, size = 0x48000, scoped, tag = 'input window, operand 2, single buffered']
    #allocation9 [shape = 's32[1]{0}', space=sflag, size = 0x4, scoped, tag = 'scoped memory for tpu_custom_call.1']
    #allocation10 [shape = 'u8[32768]{0}', space=vmem, size = 0x8000, scoped, tag = 'input window, operand 3, single buffered']
    #allocation11 [shape = 'u8[131072]{0}', space=vmem, size = 0x20000, scoped, tag = 'output window, operand 0']
    %9 = vsyncpa [#allocation6], 0
    %s10 = scalar_lea.sflag [#allocation6], 1
    %11 = vsyncpa %s10, 0
    %12 = vsyncpa [#allocation9], 0
    %13 = vsyncpa [#allocation7], 0
    %s14 = scalar_lea.sflag [#allocation7], 1
    %15 = vsyncpa %s14, 0
    loop: start=0, step=1, limit=6
    $region2: #{tpu_custom_call.1} parent=1 // loop_pre_header
      _
    $region3: #{tpu_custom_call.1} parent=1 // loop_header
      %s17 = sphi 0, %s21
      %p18 = scmp.ge.s32.totalorder %s17, 6
      %s24 = sphi 0, %s36
      %s25 = sphi 0, %s32
      %s26 = sphi 0, %s24
      %s27 = sphi 0, %s25
      %s28 = sphi 0, %s26
      %s29 = sphi 0, %s27
      %s41 = sphi 0, %s43
      %s44 = sphi 0, %s41
      %s45 = sphi 0, %s44
      %s61 = sphi 0, %s45
      %s65 = sphi 0, %s65
      %s67 = sphi 0, %s65
      %s68 = sphi 0, %s67
      %s82 = sphi 0, %s68
      %s86 = sphi 0, %s86
      %s88 = sphi 0, %s86
      %s89 = sphi 0, %s88
      %s103 = sphi 0, %s89
      %s111 = sphi 0, %s113
      %s114 = sphi 0, %s111
      %s115 = sphi 0, %s114
      %s131 = sphi 0, %s115
    $region4: #{tpu_custom_call.1} parent=1 // loop_header_branch
      %20 = sbr.rel (%p18) target = $region8
    $region5: #{tpu_custom_call.1} parent=1 // loop_body
      %s22 = ssub.s32 %s17, 1
      %s23 = ssub.s32 %s17, 2
      %s30 = sadd.s32 1, %s25
      %p31 = scmp.ge.s32.totalorder %s30, 2
      %s32 = scalar_select %p31, 0, %s30
      %s33 = sadd.s32 1, %s24
      %s34 = scalar_select %p31, %s33, %s24
      %p35 = scmp.ge.s32.totalorder %s34, 2
      %s36 = scalar_select %p35, 0, %s34
      %s37 = ssub.s32 %s24, %s36
      %s38 = ssub.s32 %s25, %s32
      %s39 = sor.u32 %s37, %s38
      %p40 = scmp.eq.s32.totalorder %s39, 0
      %s42 = sadd.s32 %s41, 1
      %s43 = scalar_select %p40, %s41, %s42
      %p46 = pneg %p40
      %p47 = scmp.eq.s32.totalorder %s17, 3
      %p48 = por %p46, %p47
      %p49 = scmp.ne.s32.totalorder %s41, %s44
      %p50 = scmp.eq.s32.totalorder %s17, 0
      %p51 = por %p49, %p50
      %p52 = scmp.ne.s32.totalorder %s41, %s44
      %p53 = scmp.eq.s32.totalorder %s22, 3
      %p54 = por %p52, %p53
      %p55 = scmp.ne.s32.totalorder %s44, %s45
      %p56 = scmp.eq.s32.totalorder %s22, 0
      %p57 = por %p55, %p56
      %p58 = scmp.ne.s32.totalorder %s44, %s45
      %p59 = scmp.eq.s32.totalorder %s23, 3
      %p60 = por %p58, %p59
      %p62 = scmp.ne.s32.totalorder %s45, %s61
      %p63 = scmp.eq.s32.totalorder %s23, 0
      %p64 = por %p62, %p63
      %s66 = sadd.s32 %s65, 1
      %p69 = scmp.eq.s32.totalorder %s17, 3
      %p70 = scmp.ne.s32.totalorder %s65, %s67
      %p71 = scmp.eq.s32.totalorder %s17, 0
      %p72 = por %p70, %p71
      %p73 = scmp.ne.s32.totalorder %s65, %s67
      %p74 = scmp.eq.s32.totalorder %s22, 3
      %p75 = por %p73, %p74
      %p76 = scmp.ne.s32.totalorder %s67, %s68
      %p77 = scmp.eq.s32.totalorder %s22, 0
      %p78 = por %p76, %p77
      %p79 = scmp.ne.s32.totalorder %s67, %s68
      %p80 = scmp.eq.s32.totalorder %s23, 3
      %p81 = por %p79, %p80
      %p83 = scmp.ne.s32.totalorder %s68, %s82
      %p84 = scmp.eq.s32.totalorder %s23, 0
      %p85 = por %p83, %p84
      %s87 = sadd.s32 %s86, 1
      %p90 = scmp.eq.s32.totalorder %s17, 3
      %p91 = scmp.ne.s32.totalorder %s86, %s88
      %p92 = scmp.eq.s32.totalorder %s17, 0
      %p93 = por %p91, %p92
      %p94 = scmp.ne.s32.totalorder %s86, %s88
      %p95 = scmp.eq.s32.totalorder %s22, 3
      %p96 = por %p94, %p95
      %p97 = scmp.ne.s32.totalorder %s88, %s89
      %p98 = scmp.eq.s32.totalorder %s22, 0
      %p99 = por %p97, %p98
      %p100 = scmp.ne.s32.totalorder %s88, %s89
      %p101 = scmp.eq.s32.totalorder %s23, 3
      %p102 = por %p100, %p101
      %p104 = scmp.ne.s32.totalorder %s89, %s103
      %p105 = scmp.eq.s32.totalorder %s23, 0
      %p106 = por %p104, %p105
      %s107 = ssub.s32 %s24, %s36
      %s108 = ssub.s32 %s25, %s32
      %s109 = sor.u32 %s107, %s108
      %p110 = scmp.eq.s32.totalorder %s109, 0
      %s112 = sadd.s32 %s111, 1
      %s113 = scalar_select %p110, %s111, %s112
      %p116 = pneg %p110
      %p117 = scmp.eq.s32.totalorder %s17, 3
      %p118 = por %p116, %p117
      %p119 = scmp.ne.s32.totalorder %s111, %s114
      %p120 = scmp.eq.s32.totalorder %s17, 0
      %p121 = por %p119, %p120
      %p122 = scmp.ne.s32.totalorder %s111, %s114
      %p123 = scmp.eq.s32.totalorder %s22, 3
      %p124 = por %p122, %p123
      %p125 = scmp.ne.s32.totalorder %s114, %s115
      %p126 = scmp.eq.s32.totalorder %s22, 0
      %p127 = por %p125, %p126
      %p128 = scmp.ne.s32.totalorder %s114, %s115
      %p129 = scmp.eq.s32.totalorder %s23, 3
      %p130 = por %p128, %p129
      %p132 = scmp.ne.s32.totalorder %s115, %s131
      %p133 = scmp.eq.s32.totalorder %s23, 0
      %p134 = por %p132, %p133
      %p135 = scmp.le.s32.totalorder 1, %s17
      %p136 = scmp.lt.s32.totalorder %s17, 5
      %p137 = pnand %p135, %p136
      %p138 = pneg %p137
      // Predicated region
      $region9: #{tpu_custom_call.1} parent=5 // pred_check
        _
      $region10: #{tpu_custom_call.1} parent=5 // pred_check_branch
        %140 = sbr.rel (%p137) target = $region12
      $region11: #{tpu_custom_call.1} parent=5 // pred_region
        %s141 = ssub.s32 %s17, 1
        // Predicated region
        $region13: #{tpu_custom_call.1} parent=11 // pred_check
          %p142 = pneg %p78
        $region14: #{tpu_custom_call.1} parent=11 // pred_check_branch
          %144 = sbr.rel (%p142) target = $region16
        $region15: #{tpu_custom_call.1} parent=11 // pred_region
          %s146 = ssub.s32 9216, 9216
          %147 = vsyncadd [#allocation9], %s146
          %s148 = sshll.u32 [#allocation8], 4
          %s149 = int_to_ptr.vmem [resolvable:$true] %s148
          %154 = dma.hbm_to_vmem [thread:$0]  %s2, 9216, %s149, [#allocation9], 64, 64, 4
        $region16: #{tpu_custom_call.1} parent=11 // pred_fallthru
          _
        // Predicated region
        $region17: #{tpu_custom_call.1} parent=11 // pred_check
          %p155 = pneg %p99
        $region18: #{tpu_custom_call.1} parent=11 // pred_check_branch
          %157 = sbr.rel (%p155) target = $region20
        $region19: #{tpu_custom_call.1} parent=11 // pred_region
          %s159 = ssub.s32 1024, 1024
          %160 = vsyncadd [#allocation9], %s159
          %s161 = sshll.u32 [#allocation10], 4
          %s162 = int_to_ptr.vmem [resolvable:$true] %s161
          %167 = dma.hbm_to_vmem [thread:$0]  %s3, 1024, %s162, [#allocation9], 64, 64, 4
        $region20: #{tpu_custom_call.1} parent=11 // pred_fallthru
          _
      $region12: #{tpu_custom_call.1} parent=5 // pred_fallthru
        _
      %p168 = scmp.lt.s32.totalorder %s17, 4
      // Predicated region
      $region21: #{tpu_custom_call.1} parent=5 // pred_check
        %p169 = pneg %p168
      $region22: #{tpu_custom_call.1} parent=5 // pred_check_branch
        %171 = sbr.rel (%p169) target = $region24
      $region23: #{tpu_custom_call.1} parent=5 // pred_region
        // Predicated region
        $region25: #{tpu_custom_call.1} parent=23 // pred_check
          %p172 = pneg %p51
        $region26: #{tpu_custom_call.1} parent=23 // pred_check_branch
          %174 = sbr.rel (%p172) target = $region28
        $region27: #{tpu_custom_call.1} parent=23 // pred_region
          %s175 = sand.u32 %s41, 1
          %s176 = scalar_lea.sflag [#allocation6], %s175
          %s177 = sand.u32 %s41, 1
          %s178 = smul.addr %s177, 128
          %s179 = scalar_lea.vmem [#allocation5], %s178
          %s180 = smul.u32 8, %s25
          %s182 = ssub.s32 2048, 2048
          %183 = vsyncadd %s176, %s182
          %s184 = smul.addr %s180, 2
          %s185 = smul.addr %s24, 32
          %s186 = sadd.s32 %s184, %s185
          %s187 = smul.addr %s186, 128
          %s188 = scalar_lea.hbm %s0, %s187
          %s189 = sshll.u32 %s179, 4
          %s190 = int_to_ptr.vmem [resolvable:$true] %s189
          %195 = dma.hbm_to_vmem [thread:$0]  %s188, 2048, %s190, %s176, 128, 128, 8
        $region28: #{tpu_custom_call.1} parent=23 // pred_fallthru
          _
      $region24: #{tpu_custom_call.1} parent=5 // pred_fallthru
        _
      %p196 = scmp.le.s32.totalorder 1, %s17
      %p197 = scmp.lt.s32.totalorder %s17, 5
      %p198 = pnand %p196, %p197
      %p199 = pneg %p198
      // Predicated region
      $region29: #{tpu_custom_call.1} parent=5 // pred_check
        _
      $region30: #{tpu_custom_call.1} parent=5 // pred_check_branch
        %201 = sbr.rel (%p198) target = $region32
      $region31: #{tpu_custom_call.1} parent=5 // pred_region
        %s202 = ssub.s32 %s17, 1
        %s203 = sand.u32 %s44, 1
        %s204 = scalar_lea.sflag [#allocation6], %s203
        %s205 = sand.u32 %s44, 1
        %s206 = smul.addr %s205, 128
        %s207 = scalar_lea.vmem [#allocation5], %s206
        // Predicated region
        $region33: #{tpu_custom_call.1} parent=31 // pred_check
          %p208 = pneg %p57
        $region34: #{tpu_custom_call.1} parent=31 // pred_check_branch
          %210 = sbr.rel (%p208) target = $region36
        $region35: #{tpu_custom_call.1} parent=31 // pred_region
          %211 = dma.done %s204, 2048
        $region36: #{tpu_custom_call.1} parent=31 // pred_fallthru
          _
        // Predicated region
        $region37: #{tpu_custom_call.1} parent=31 // pred_check
          %p212 = pneg %p78
        $region38: #{tpu_custom_call.1} parent=31 // pred_check_branch
          %214 = sbr.rel (%p212) target = $region40
        $region39: #{tpu_custom_call.1} parent=31 // pred_region
          %215 = dma.done [#allocation9], 9216
        $region40: #{tpu_custom_call.1} parent=31 // pred_fallthru
          _
        // Predicated region
        $region41: #{tpu_custom_call.1} parent=31 // pred_check
          %p216 = pneg %p99
        $region42: #{tpu_custom_call.1} parent=31 // pred_check_branch
          %218 = sbr.rel (%p216) target = $region44
        $region43: #{tpu_custom_call.1} parent=31 // pred_region
          %219 = dma.done [#allocation9], 1024
        $region44: #{tpu_custom_call.1} parent=31 // pred_fallthru
          _
        %s220 = sand.u32 %s44, 1
        %s221 = scalar_lea.sflag [#allocation6], %s220
        %s222 = sand.u32 %s44, 1
        %s223 = smul.addr %s222, 128
        %s224 = scalar_lea.vmem [#allocation5], %s223
        %p225 = pneg %p57
        %p226 = pneg %p54
        %p227 = pneg %p78
        %p228 = pneg %p75
        %p229 = pneg %p99
        %p230 = pneg %p96
        %p231 = pneg %p127
        %p232 = pneg %p124
        %s233 = sand.u32 %s114, 1
        %s234 = scalar_lea.sflag [#allocation7], %s233
        %s235 = sand.u32 %s114, 1
        %s236 = smul.addr %s235, 128
        %s237 = scalar_lea.vmem [#allocation11], %s236
        %s238 = smul.u32 8, %s27
        %s239 = smul.u32 8, %s27
        %s241 = smul.u32 %s27, 8
        %p242 = scmp.gt.s32.totalorder %s27, 0
        // Predicated region
        $region45: #{tpu_custom_call.1} parent=31 // pred_check
          %p243 = pneg %p242
        $region46: #{tpu_custom_call.1} parent=31 // pred_check_branch
          %245 = sbr.rel (%p243) target = $region48
        $region47: #{tpu_custom_call.1} parent=31 // pred_region
          %s246 = ssub.s32 %s241, 1
          %s247 = smul.u32 %s246, 16
          %s248 = smul.u32 %s26, 256
          %s249 = sadd.s32 %s247, %s248
          %s250 = smul.addr %s249, 16
          %s251 = scalar_lea.hbm %s1, %s250
          // Predicated region
          $region49: #{tpu_custom_call.1} parent=47 // pred_check
            _
          $region50: #{tpu_custom_call.1} parent=47 // pred_check_branch
            %253 = sbr.rel target = $region52
          $region51: #{tpu_custom_call.1} parent=47 // pred_region
            %254 = sst [smem:[#allocation14]] [#allocation13]
            %255 = sst [smem:[#allocation15]] [#allocation12]
          $region52: #{tpu_custom_call.1} parent=47 // pred_fallthru
            _
          %257 = shalt.err (0)
          %s259 = sshll.u32 [#allocation2], 4
          %s260 = int_to_ptr.vmem [resolvable:$true] %s259
          %262 = dma.hbm_to_vmem [thread:$0]  %s251, 256, %s260, [#allocation4]
        $region48: #{tpu_custom_call.1} parent=31 // pred_fallthru
          _
        %p263 = scmp.lt.s32.totalorder %s27, 1
        // Predicated region
        $region53: #{tpu_custom_call.1} parent=31 // pred_check
          %p264 = pneg %p263
        $region54: #{tpu_custom_call.1} parent=31 // pred_check_branch
          %266 = sbr.rel (%p264) target = $region56
        $region55: #{tpu_custom_call.1} parent=31 // pred_region
          %s267 = sadd.s32 %s241, 8
          %s268 = smul.u32 %s267, 16
          %s269 = smul.u32 %s26, 256
          %s270 = sadd.s32 %s268, %s269
          %s271 = smul.addr %s270, 16
          %s272 = scalar_lea.hbm %s1, %s271
          %s273 = scalar_lea.vmem [#allocation2], 16
          %s274 = scalar_lea.sflag [#allocation4], 1
          // Predicated region
          $region57: #{tpu_custom_call.1} parent=55 // pred_check
            _
          $region58: #{tpu_custom_call.1} parent=55 // pred_check_branch
            %276 = sbr.rel target = $region60
          $region59: #{tpu_custom_call.1} parent=55 // pred_region
            %277 = sst [smem:[#allocation14]] [#allocation17]
            %278 = sst [smem:[#allocation15]] [#allocation16]
          $region60: #{tpu_custom_call.1} parent=55 // pred_fallthru
            _
          %280 = shalt.err (0)
          %s282 = sshll.u32 %s273, 4
          %s283 = int_to_ptr.vmem [resolvable:$true] %s282
          %285 = dma.hbm_to_vmem [thread:$0]  %s272, 256, %s283, %s274
        $region56: #{tpu_custom_call.1} parent=31 // pred_fallthru
          _
        %286 = vst [vmem:[#allocation3] sm:$0xf] 0
        %287 = vst [vmem:[#allocation3 + $0x4] sm:$0xf] 0
        %288 = vst [vmem:[#allocation3 + $0x8] sm:$0x1] 0
        %s289 = scalar_lea.vmem [#allocation3], 108
        %290 = vst [vmem:[%s289] sm:$0xf] 0
        %291 = vst [vmem:[%s289 + $0x4] sm:$0xf] 0
        %292 = vst [vmem:[%s289 + $0x8] sm:$0x1] 0
        %vm293 = vcmask 1040384
        %vm294 = vsmask.f32 256
        %vm295 = vmand %vm293, %vm294
        %v296 = vld [vmem:[#allocation3] sm:$0x1]
        %v297 = vsel %vm295, 0, %v296
        %298 = vst [vmem:[#allocation3] sm:$0x1] %v297
        %v299 = vld [vmem:[#allocation3 + $0xc] sm:$0x1]
        %v300 = vsel %vm295, 0, %v299
        %301 = vst [vmem:[#allocation3 + $0xc] sm:$0x1] %v300
        %v302 = vld [vmem:[#allocation3 + $0x18] sm:$0x1]
        %v303 = vsel %vm295, 0, %v302
        %304 = vst [vmem:[#allocation3 + $0x18] sm:$0x1] %v303
        %v305 = vld [vmem:[#allocation3 + $0x24] sm:$0x1]
        %v306 = vsel %vm295, 0, %v305
        %307 = vst [vmem:[#allocation3 + $0x24] sm:$0x1] %v306
        %v308 = vld [vmem:[#allocation3 + $0x30] sm:$0x1]
        %v309 = vsel %vm295, 0, %v308
        %310 = vst [vmem:[#allocation3 + $0x30] sm:$0x1] %v309
        %v311 = vld [vmem:[#allocation3 + $0x3c] sm:$0x1]
        %v312 = vsel %vm295, 0, %v311
        %313 = vst [vmem:[#allocation3 + $0x3c] sm:$0x1] %v312
        %v314 = vld [vmem:[#allocation3 + $0x48] sm:$0x1]
        %v315 = vsel %vm295, 0, %v314
        %316 = vst [vmem:[#allocation3 + $0x48] sm:$0x1] %v315
        %v317 = vld [vmem:[#allocation3 + $0x54] sm:$0x1]
        %v318 = vsel %vm295, 0, %v317
        %319 = vst [vmem:[#allocation3 + $0x54] sm:$0x1] %v318
        %v320 = vld [vmem:[#allocation3 + $0x60] sm:$0x1]
        %v321 = vsel %vm295, 0, %v320
        %322 = vst [vmem:[#allocation3 + $0x60] sm:$0x1] %v321
        %v323 = vld [vmem:[#allocation3 + $0x6c] sm:$0x1]
        %v324 = vsel %vm295, 0, %v323
        %325 = vst [vmem:[#allocation3 + $0x6c] sm:$0x1] %v324
        %vm326 = vsmask.f32 7938
        %vm327 = vmand %vm293, %vm326
        %v328 = vld [vmem:[#allocation3 + $0x8] sm:$0x1]
        %v329 = vsel %vm327, 0, %v328
        %330 = vst [vmem:[#allocation3 + $0x8] sm:$0x1] %v329
        %v331 = vld [vmem:[#allocation3 + $0x14] sm:$0x1]
        %v332 = vsel %vm327, 0, %v331
        %333 = vst [vmem:[#allocation3 + $0x14] sm:$0x1] %v332
        %v334 = vld [vmem:[#allocation3 + $0x20] sm:$0x1]
        %v335 = vsel %vm327, 0, %v334
        %336 = vst [vmem:[#allocation3 + $0x20] sm:$0x1] %v335
        %v337 = vld [vmem:[#allocation3 + $0x2c] sm:$0x1]
        %v338 = vsel %vm327, 0, %v337
        %339 = vst [vmem:[#allocation3 + $0x2c] sm:$0x1] %v338
        %v340 = vld [vmem:[#allocation3 + $0x38] sm:$0x1]
        %v341 = vsel %vm327, 0, %v340
        %342 = vst [vmem:[#allocation3 + $0x38] sm:$0x1] %v341
        %v343 = vld [vmem:[#allocation3 + $0x44] sm:$0x1]
        %v344 = vsel %vm327, 0, %v343
        %345 = vst [vmem:[#allocation3 + $0x44] sm:$0x1] %v344
        %v346 = vld [vmem:[#allocation3 + $0x50] sm:$0x1]
        %v347 = vsel %vm327, 0, %v346
        %348 = vst [vmem:[#allocation3 + $0x50] sm:$0x1] %v347
        %v349 = vld [vmem:[#allocation3 + $0x5c] sm:$0x1]
        %v350 = vsel %vm327, 0, %v349
        %351 = vst [vmem:[#allocation3 + $0x5c] sm:$0x1] %v350
        %v352 = vld [vmem:[#allocation3 + $0x68] sm:$0x1]
        %v353 = vsel %vm327, 0, %v352
        %354 = vst [vmem:[#allocation3 + $0x68] sm:$0x1] %v353
        %v355 = vld [vmem:[#allocation3 + $0x74] sm:$0x1]
        %v356 = vsel %vm327, 0, %v355
        %357 = vst [vmem:[#allocation3 + $0x74] sm:$0x1] %v356
        %v358 = vld [vmem:[%s207] sm:$0xff]
        %v359 = vld [vmem:[%s207 + $0x8] sm:$0xff]
        %v360 = vld [vmem:[%s207 + $0x10] sm:$0xff]
        %v361 = vld [vmem:[%s207 + $0x18] sm:$0xff]
        %v362 = vld [vmem:[%s207 + $0x20] sm:$0xff]
        %v363 = vld [vmem:[%s207 + $0x28] sm:$0xff]
        %v364 = vld [vmem:[%s207 + $0x30] sm:$0xff]
        %v365 = vld [vmem:[%s207 + $0x38] sm:$0xff]
        %v366 = vld [vmem:[%s207 + $0x40] sm:$0xff]
        %v367 = vld [vmem:[%s207 + $0x48] sm:$0xff]
        %v368 = vld [vmem:[%s207 + $0x50] sm:$0xff]
        %v369 = vld [vmem:[%s207 + $0x58] sm:$0xff]
        %v370 = vld [vmem:[%s207 + $0x60] sm:$0xff]
        %v371 = vld [vmem:[%s207 + $0x68] sm:$0xff]
        %v372 = vld [vmem:[%s207 + $0x70] sm:$0xff]
        %v373 = vld [vmem:[%s207 + $0x78] sm:$0xff]
        %v374 = vpack.c.bf16 %v359, %v358
        %v375 = vpack.c.bf16 %v361, %v360
        %v376 = vpack.c.bf16 %v363, %v362
        %v377 = vpack.c.bf16 %v365, %v364
        %v378 = vpack.c.bf16 %v367, %v366
        %v379 = vpack.c.bf16 %v369, %v368
        %v380 = vpack.c.bf16 %v371, %v370
        %v381 = vpack.c.bf16 %v373, %v372
        %v390 = vunpack.c.l.b16 %v374
        %v391 = vunpack.c.h.b16 %v374
        %v392 = vunpack.c.l.b16 %v375
        %v393 = vunpack.c.h.b16 %v375
        %v394 = vunpack.c.l.b16 %v376
        %v395 = vunpack.c.h.b16 %v376
        %v396 = vunpack.c.l.b16 %v377
        %v397 = vunpack.c.h.b16 %v377
        %v398 = vunpack.c.l.b16 %v378
        %v399 = vunpack.c.h.b16 %v378
        %v400 = vunpack.c.l.b16 %v379
        %v401 = vunpack.c.h.b16 %v379
        %v402 = vunpack.c.l.b16 %v380
        %v403 = vunpack.c.h.b16 %v380
        %v404 = vunpack.c.l.b16 %v381
        %v405 = vunpack.c.h.b16 %v381
        %v406 = vpack.c.b16 %v390, %v390
        %v407 = vpack.c.b16 %v391, %v391
        %v408 = vpack.c.b16 %v392, %v392
        %v409 = vpack.c.b16 %v393, %v393
        %v410 = vpack.c.b16 %v394, %v394
        %v411 = vpack.c.b16 %v395, %v395
        %v412 = vpack.c.b16 %v396, %v396
        %v413 = vpack.c.b16 %v397, %v397
        %v414 = vpack.c.b16 %v398, %v398
        %v415 = vpack.c.b16 %v399, %v399
        %v416 = vpack.c.b16 %v400, %v400
        %v417 = vpack.c.b16 %v401, %v401
        %v418 = vpack.c.b16 %v402, %v402
        %v419 = vpack.c.b16 %v403, %v403
        %v420 = vpack.c.b16 %v404, %v404
        %v421 = vpack.c.b16 %v405, %v405
        %vm422 = vsmask.f32 4368
        %vm423 = vmor %vm294, %vm422
        %v425 = vshrl.u32 %v406, 16
        %v427 = vrot.slane %v425, 7
        %v428 = vshll.u32 %v406, 16
        %v430 = vor.u32 %v427, %v428
        %v431 = vrot.slane %v427, 4
        %v433 = vshrl.u32 %v407, 16
        %v435 = vrot.slane %v433, 7
        %v436 = vshll.u32 %v407, 16
        %v438 = vor.u32 %v435, %v436
        %v439 = vsel %vm423, %v431, %v438
        %v440 = vrot.slane %v435, 4
        %v442 = vshrl.u32 %v408, 16
        %v444 = vrot.slane %v442, 7
        %v445 = vshll.u32 %v408, 16
        %v447 = vor.u32 %v444, %v445
        %v448 = vrot.slane %v444, 4
        %v450 = vshrl.u32 %v409, 16
        %v452 = vrot.slane %v450, 7
        %v453 = vshll.u32 %v409, 16
        %v455 = vor.u32 %v452, %v453
        %v456 = vsel %vm423, %v448, %v455
        %v457 = vrot.slane %v452, 4
        %v459 = vshrl.u32 %v410, 16
        %v461 = vrot.slane %v459, 7
        %v462 = vshll.u32 %v410, 16
        %v464 = vor.u32 %v461, %v462
        %v465 = vrot.slane %v461, 4
        %v467 = vshrl.u32 %v411, 16
        %v469 = vrot.slane %v467, 7
        %v470 = vshll.u32 %v411, 16
        %v472 = vor.u32 %v469, %v470
        %v473 = vsel %vm423, %v465, %v472
        %v474 = vrot.slane %v469, 4
        %v476 = vshrl.u32 %v412, 16
        %v478 = vrot.slane %v476, 7
        %v479 = vshll.u32 %v412, 16
        %v481 = vor.u32 %v478, %v479
        %v482 = vrot.slane %v478, 4
        %v484 = vshrl.u32 %v413, 16
        %v486 = vrot.slane %v484, 7
        %v487 = vshll.u32 %v413, 16
        %v489 = vor.u32 %v486, %v487
        %v490 = vsel %vm423, %v482, %v489
        %v491 = vrot.slane %v486, 4
        %v493 = vshrl.u32 %v414, 16
        %v495 = vrot.slane %v493, 7
        %v496 = vshll.u32 %v414, 16
        %v498 = vor.u32 %v495, %v496
        %v499 = vrot.slane %v495, 4
        %v501 = vshrl.u32 %v415, 16
        %v503 = vrot.slane %v501, 7
        %v504 = vshll.u32 %v415, 16
        %v506 = vor.u32 %v503, %v504
        %v507 = vsel %vm423, %v499, %v506
        %v508 = vrot.slane %v503, 4
        %v510 = vshrl.u32 %v416, 16
        %v512 = vrot.slane %v510, 7
        %v513 = vshll.u32 %v416, 16
        %v515 = vor.u32 %v512, %v513
        %v516 = vrot.slane %v512, 4
        %v518 = vshrl.u32 %v417, 16
        %v520 = vrot.slane %v518, 7
        %v521 = vshll.u32 %v417, 16
        %v523 = vor.u32 %v520, %v521
        %v524 = vsel %vm423, %v516, %v523
        %v525 = vrot.slane %v520, 4
        %v527 = vshrl.u32 %v418, 16
        %v529 = vrot.slane %v527, 7
        %v530 = vshll.u32 %v418, 16
        %v532 = vor.u32 %v529, %v530
        %v533 = vrot.slane %v529, 4
        %v535 = vshrl.u32 %v419, 16
        %v537 = vrot.slane %v535, 7
        %v538 = vshll.u32 %v419, 16
        %v540 = vor.u32 %v537, %v538
        %v541 = vsel %vm423, %v533, %v540
        %v542 = vrot.slane %v537, 4
        %v544 = vshrl.u32 %v420, 16
        %v546 = vrot.slane %v544, 7
        %v547 = vshll.u32 %v420, 16
        %v549 = vor.u32 %v546, %v547
        %v550 = vrot.slane %v546, 4
        %v552 = vshrl.u32 %v421, 16
        %v554 = vrot.slane %v552, 7
        %v555 = vshll.u32 %v421, 16
        %v557 = vor.u32 %v554, %v555
        %v558 = vsel %vm423, %v550, %v557
        %v559 = vrot.slane %v554, 4
        %s584 = scalar_lea.vmem [#allocation3], 12
        %vm585 = vcmask 1043456
        %vm586 = vmand %vm585, %vm326
        %v587 = vld [vmem:[%s584] sm:$0xf]
        %v588 = vsel %vm586, %v430, %v587
        %589 = vst [vmem:[%s584] sm:$0xf] %v588
        %590 = vst [vmem:[%s584 + $0x4] sm:$0xf] %v439
        %v591 = vld [vmem:[%s584 + $0x8] sm:$0x1]
        %v592 = vsel %vm295, %v440, %v591
        %593 = vst [vmem:[%s584 + $0x8] sm:$0x1] %v592
        %v594 = vld [vmem:[%s584 + $0xc] sm:$0xf]
        %v595 = vsel %vm586, %v447, %v594
        %596 = vst [vmem:[%s584 + $0xc] sm:$0xf] %v595
        %597 = vst [vmem:[%s584 + $0x10] sm:$0xf] %v456
        %v598 = vld [vmem:[%s584 + $0x14] sm:$0x1]
        %v599 = vsel %vm295, %v457, %v598
        %600 = vst [vmem:[%s584 + $0x14] sm:$0x1] %v599
        %v601 = vld [vmem:[%s584 + $0x18] sm:$0xf]
        %v602 = vsel %vm586, %v464, %v601
        %603 = vst [vmem:[%s584 + $0x18] sm:$0xf] %v602
        %604 = vst [vmem:[%s584 + $0x1c] sm:$0xf] %v473
        %v605 = vld [vmem:[%s584 + $0x20] sm:$0x1]
        %v606 = vsel %vm295, %v474, %v605
        %607 = vst [vmem:[%s584 + $0x20] sm:$0x1] %v606
        %v608 = vld [vmem:[%s584 + $0x24] sm:$0xf]
        %v609 = vsel %vm586, %v481, %v608
        %610 = vst [vmem:[%s584 + $0x24] sm:$0xf] %v609
        %611 = vst [vmem:[%s584 + $0x28] sm:$0xf] %v490
        %v612 = vld [vmem:[%s584 + $0x2c] sm:$0x1]
        %v613 = vsel %vm295, %v491, %v612
        %614 = vst [vmem:[%s584 + $0x2c] sm:$0x1] %v613
        %v615 = vld [vmem:[%s584 + $0x30] sm:$0xf]
        %v616 = vsel %vm586, %v498, %v615
        %617 = vst [vmem:[%s584 + $0x30] sm:$0xf] %v616
        %618 = vst [vmem:[%s584 + $0x34] sm:$0xf] %v507
        %v619 = vld [vmem:[%s584 + $0x38] sm:$0x1]
        %v620 = vsel %vm295, %v508, %v619
        %621 = vst [vmem:[%s584 + $0x38] sm:$0x1] %v620
        %v622 = vld [vmem:[%s584 + $0x3c] sm:$0xf]
        %v623 = vsel %vm586, %v515, %v622
        %624 = vst [vmem:[%s584 + $0x3c] sm:$0xf] %v623
        %625 = vst [vmem:[%s584 + $0x40] sm:$0xf] %v524
        %v626 = vld [vmem:[%s584 + $0x44] sm:$0x1]
        %v627 = vsel %vm295, %v525, %v626
        %628 = vst [vmem:[%s584 + $0x44] sm:$0x1] %v627
        %v629 = vld [vmem:[%s584 + $0x48] sm:$0xf]
        %v630 = vsel %vm586, %v532, %v629
        %631 = vst [vmem:[%s584 + $0x48] sm:$0xf] %v630
        %632 = vst [vmem:[%s584 + $0x4c] sm:$0xf] %v541
        %v633 = vld [vmem:[%s584 + $0x50] sm:$0x1]
        %v634 = vsel %vm295, %v542, %v633
        %635 = vst [vmem:[%s584 + $0x50] sm:$0x1] %v634
        %v636 = vld [vmem:[%s584 + $0x54] sm:$0xf]
        %v637 = vsel %vm586, %v549, %v636
        %638 = vst [vmem:[%s584 + $0x54] sm:$0xf] %v637
        %639 = vst [vmem:[%s584 + $0x58] sm:$0xf] %v558
        %v640 = vld [vmem:[%s584 + $0x5c] sm:$0x1]
        %v641 = vsel %vm295, %v559, %v640
        %642 = vst [vmem:[%s584 + $0x5c] sm:$0x1] %v641
        // Predicated region
        $region61: #{tpu_custom_call.1} parent=31 // pred_check
          %p643 = pneg %p242
        $region62: #{tpu_custom_call.1} parent=31 // pred_check_branch
          %645 = sbr.rel (%p643) target = $region64
        $region63: #{tpu_custom_call.1} parent=31 // pred_region
          %s646 = smul.u32 1, 16
          %s647 = smul.u32 %s646, 1
          %s648 = sshll.u32 %s647, 4
          %649 = dma.done [#allocation4], %s648
          %v650 = vld [vmem:[#allocation2] sm:$0xff]
          %v651 = vld [vmem:[#allocation2 + $0x8] sm:$0xff]
          %v652 = vpack.c.bf16 %v651, %v650
          %v654 = vunpack.c.l.b16 %v652
          %v655 = vunpack.c.h.b16 %v652
          %v656 = vpack.c.b16 %v654, %v654
          %v657 = vpack.c.b16 %v655, %v655
          %v659 = vshrl.u32 %v656, 16
          %v661 = vrot.slane %v659, 7
          %v662 = vshll.u32 %v656, 16
          %v664 = vor.u32 %v661, %v662
          %v665 = vrot.slane %v661, 4
          %v667 = vshrl.u32 %v657, 16
          %v669 = vrot.slane %v667, 7
          %v670 = vshll.u32 %v657, 16
          %v672 = vor.u32 %v669, %v670
          %v673 = vsel %vm423, %v665, %v672
          %v674 = vrot.slane %v669, 4
          %v678 = vld [vmem:[#allocation3] sm:$0xf]
          %v679 = vsel %vm586, %v664, %v678
          %680 = vst [vmem:[#allocation3] sm:$0xf] %v679
          %681 = vst [vmem:[#allocation3 + $0x4] sm:$0xf] %v673
          %v682 = vld [vmem:[#allocation3 + $0x8] sm:$0x1]
          %v683 = vsel %vm295, %v674, %v682
          %684 = vst [vmem:[#allocation3 + $0x8] sm:$0x1] %v683
        $region64: #{tpu_custom_call.1} parent=31 // pred_fallthru
          _
        // Predicated region
        $region65: #{tpu_custom_call.1} parent=31 // pred_check
          %p685 = pneg %p263
        $region66: #{tpu_custom_call.1} parent=31 // pred_check_branch
          %687 = sbr.rel (%p685) target = $region68
        $region67: #{tpu_custom_call.1} parent=31 // pred_region
          %s688 = scalar_lea.vmem [#allocation2], 16
          %s689 = scalar_lea.sflag [#allocation4], 1
          %s690 = smul.u32 1, 16
          %s691 = smul.u32 %s690, 1
          %s692 = sshll.u32 %s691, 4
          %693 = dma.done %s689, %s692
          %v694 = vld [vmem:[%s688] sm:$0xff]
          %v695 = vld [vmem:[%s688 + $0x8] sm:$0xff]
          %v696 = vpack.c.bf16 %v695, %v694
          %v698 = vunpack.c.l.b16 %v696
          %v699 = vunpack.c.h.b16 %v696
          %v700 = vpack.c.b16 %v698, %v698
          %v701 = vpack.c.b16 %v699, %v699
          %v703 = vshrl.u32 %v700, 16
          %v705 = vrot.slane %v703, 7
          %v706 = vshll.u32 %v700, 16
          %v708 = vor.u32 %v705, %v706
          %v709 = vrot.slane %v705, 4
          %v711 = vshrl.u32 %v701, 16
          %v713 = vrot.slane %v711, 7
          %v714 = vshll.u32 %v701, 16
          %v716 = vor.u32 %v713, %v714
          %v717 = vsel %vm423, %v709, %v716
          %v718 = vrot.slane %v713, 4
          %v722 = vld [vmem:[%s289] sm:$0xf]
          %v723 = vsel %vm586, %v708, %v722
          %724 = vst [vmem:[%s289] sm:$0xf] %v723
          %725 = vst [vmem:[%s289 + $0x4] sm:$0xf] %v717
          %v726 = vld [vmem:[%s289 + $0x8] sm:$0x1]
          %v727 = vsel %vm295, %v718, %v726
          %728 = vst [vmem:[%s289 + $0x8] sm:$0x1] %v727
        $region68: #{tpu_custom_call.1} parent=31 // pred_fallthru
          _
        %v729 = vld [vmem:[#allocation3] sm:$0xf]
        %v730 = vld [vmem:[#allocation3 + $0x4] sm:$0xf]
        %v731 = vld [vmem:[#allocation3 + $0xc] sm:$0xf]
        %v732 = vld [vmem:[#allocation3 + $0x10] sm:$0xf]
        %v733 = vld [vmem:[#allocation3 + $0x18] sm:$0xf]
        %v734 = vld [vmem:[#allocation3 + $0x1c] sm:$0xf]
        %v735 = vld [vmem:[#allocation3 + $0x24] sm:$0xf]
        %v736 = vld [vmem:[#allocation3 + $0x28] sm:$0xf]
        %v737 = vld [vmem:[#allocation3 + $0x30] sm:$0xf]
        %v738 = vld [vmem:[#allocation3 + $0x34] sm:$0xf]
        %v739 = vld [vmem:[#allocation3 + $0x3c] sm:$0xf]
        %v740 = vld [vmem:[#allocation3 + $0x40] sm:$0xf]
        %v741 = vld [vmem:[#allocation3 + $0x48] sm:$0xf]
        %v742 = vld [vmem:[#allocation3 + $0x4c] sm:$0xf]
        %v743 = vld [vmem:[#allocation3 + $0x54] sm:$0xf]
        %v744 = vld [vmem:[#allocation3 + $0x58] sm:$0xf]
        %v745 = vld [vmem:[#allocation8] sm:$0xf]
        %v746 = vld [vmem:[#allocation8 + $0x4] sm:$0xf]
        %v747 = vld [vmem:[#allocation8 + $0x8] sm:$0xf]
        %v748 = vld [vmem:[#allocation8 + $0xc] sm:$0xf]
        %v749 = vld [vmem:[#allocation8 + $0x10] sm:$0xf]
        %v750 = vld [vmem:[#allocation8 + $0x14] sm:$0xf]
        %v751 = vld [vmem:[#allocation8 + $0x18] sm:$0xf]
        %v752 = vld [vmem:[#allocation8 + $0x1c] sm:$0xf]
        %v753 = vld [vmem:[#allocation8 + $0x20] sm:$0xf]
        %v754 = vld [vmem:[#allocation8 + $0x24] sm:$0xf]
        %v755 = vld [vmem:[#allocation8 + $0x28] sm:$0xf]
        %v756 = vld [vmem:[#allocation8 + $0x2c] sm:$0xf]
        %v757 = vld [vmem:[#allocation8 + $0x30] sm:$0xf]
        %v758 = vld [vmem:[#allocation8 + $0x34] sm:$0xf]
        %v759 = vld [vmem:[#allocation8 + $0x38] sm:$0xf]
        %v760 = vld [vmem:[#allocation8 + $0x3c] sm:$0xf]
        %v761 = vld [vmem:[#allocation3 + $0x8] sm:$0x1]
        %v762 = vld [vmem:[#allocation3 + $0x14] sm:$0x1]
        %v763 = vld [vmem:[#allocation3 + $0x20] sm:$0x1]
        %v764 = vld [vmem:[#allocation3 + $0x2c] sm:$0x1]
        %v765 = vld [vmem:[#allocation3 + $0x38] sm:$0x1]
        %v766 = vld [vmem:[#allocation3 + $0x44] sm:$0x1]
        %v767 = vld [vmem:[#allocation3 + $0x50] sm:$0x1]
        %v768 = vld [vmem:[#allocation3 + $0x5c] sm:$0x1]
        %vm769 = vsmask.f32 3328
        %vm770 = vsmask.f32 7440
        %vm771 = vmor %vm769, %vm770
        %v773 = vshrl.u32 %v729, 16
        %v775 = vrot.slane %v773, 4
        %v776 = vshll.u32 %v729, 16
        %v778 = vrot.slane %v776, 5
        %v779 = vor.u32 %v775, %v778
        %v780 = vrot.slane %v779, 4
        %v782 = vshll.u32 %v730, 16
        %v784 = vrot.slane %v782, 5
        %v785 = vsel %vm771, %v780, %v784
        %v786 = vshrl.u32 %v730, 16
        %v788 = vrot.slane %v786, 4
        %v789 = vor.u32 %v788, %v784
        %v790 = vrot.slane %v789, 4
        %v792 = vshll.u32 %v761, 16
        %v794 = vrot.slane %v792, 5
        %v795 = vsel %vm771, %v790, %v794
        %v797 = vshrl.u32 %v731, 16
        %v799 = vrot.slane %v797, 4
        %v800 = vshll.u32 %v731, 16
        %v802 = vrot.slane %v800, 5
        %v803 = vor.u32 %v799, %v802
        %v804 = vrot.slane %v803, 4
        %v806 = vshll.u32 %v732, 16
        %v808 = vrot.slane %v806, 5
        %v809 = vsel %vm771, %v804, %v808
        %v810 = vshrl.u32 %v732, 16
        %v812 = vrot.slane %v810, 4
        %v813 = vor.u32 %v812, %v808
        %v814 = vrot.slane %v813, 4
        %v816 = vshll.u32 %v762, 16
        %v818 = vrot.slane %v816, 5
        %v819 = vsel %vm771, %v814, %v818
        %v821 = vshrl.u32 %v733, 16
        %v823 = vrot.slane %v821, 4
        %v824 = vshll.u32 %v733, 16
        %v826 = vrot.slane %v824, 5
        %v827 = vor.u32 %v823, %v826
        %v828 = vrot.slane %v827, 4
        %v830 = vshll.u32 %v734, 16
        %v832 = vrot.slane %v830, 5
        %v833 = vsel %vm771, %v828, %v832
        %v834 = vshrl.u32 %v734, 16
        %v836 = vrot.slane %v834, 4
        %v837 = vor.u32 %v836, %v832
        %v838 = vrot.slane %v837, 4
        %v840 = vshll.u32 %v763, 16
        %v842 = vrot.slane %v840, 5
        %v843 = vsel %vm771, %v838, %v842
        %v845 = vshrl.u32 %v735, 16
        %v847 = vrot.slane %v845, 4
        %v848 = vshll.u32 %v735, 16
        %v850 = vrot.slane %v848, 5
        %v851 = vor.u32 %v847, %v850
        %v852 = vrot.slane %v851, 4
        %v854 = vshll.u32 %v736, 16
        %v856 = vrot.slane %v854, 5
        %v857 = vsel %vm771, %v852, %v856
        %v858 = vshrl.u32 %v736, 16
        %v860 = vrot.slane %v858, 4
        %v861 = vor.u32 %v860, %v856
        %v862 = vrot.slane %v861, 4
        %v864 = vshll.u32 %v764, 16
        %v866 = vrot.slane %v864, 5
        %v867 = vsel %vm771, %v862, %v866
        %v869 = vshrl.u32 %v737, 16
        %v871 = vrot.slane %v869, 4
        %v872 = vshll.u32 %v737, 16
        %v874 = vrot.slane %v872, 5
        %v875 = vor.u32 %v871, %v874
        %v876 = vrot.slane %v875, 4
        %v878 = vshll.u32 %v738, 16
        %v880 = vrot.slane %v878, 5
        %v881 = vsel %vm771, %v876, %v880
        %v882 = vshrl.u32 %v738, 16
        %v884 = vrot.slane %v882, 4
        %v885 = vor.u32 %v884, %v880
        %v886 = vrot.slane %v885, 4
        %v888 = vshll.u32 %v765, 16
        %v890 = vrot.slane %v888, 5
        %v891 = vsel %vm771, %v886, %v890
        %v893 = vshrl.u32 %v739, 16
        %v895 = vrot.slane %v893, 4
        %v896 = vshll.u32 %v739, 16
        %v898 = vrot.slane %v896, 5
        %v899 = vor.u32 %v895, %v898
        %v900 = vrot.slane %v899, 4
        %v902 = vshll.u32 %v740, 16
        %v904 = vrot.slane %v902, 5
        %v905 = vsel %vm771, %v900, %v904
        %v906 = vshrl.u32 %v740, 16
        %v908 = vrot.slane %v906, 4
        %v909 = vor.u32 %v908, %v904
        %v910 = vrot.slane %v909, 4
        %v912 = vshll.u32 %v766, 16
        %v914 = vrot.slane %v912, 5
        %v915 = vsel %vm771, %v910, %v914
        %v917 = vshrl.u32 %v741, 16
        %v919 = vrot.slane %v917, 4
        %v920 = vshll.u32 %v741, 16
        %v922 = vrot.slane %v920, 5
        %v923 = vor.u32 %v919, %v922
        %v924 = vrot.slane %v923, 4
        %v926 = vshll.u32 %v742, 16
        %v928 = vrot.slane %v926, 5
        %v929 = vsel %vm771, %v924, %v928
        %v930 = vshrl.u32 %v742, 16
        %v932 = vrot.slane %v930, 4
        %v933 = vor.u32 %v932, %v928
        %v934 = vrot.slane %v933, 4
        %v936 = vshll.u32 %v767, 16
        %v938 = vrot.slane %v936, 5
        %v939 = vsel %vm771, %v934, %v938
        %v941 = vshrl.u32 %v743, 16
        %v943 = vrot.slane %v941, 4
        %v944 = vshll.u32 %v743, 16
        %v946 = vrot.slane %v944, 5
        %v947 = vor.u32 %v943, %v946
        %v948 = vrot.slane %v947, 4
        %v950 = vshll.u32 %v744, 16
        %v952 = vrot.slane %v950, 5
        %v953 = vsel %vm771, %v948, %v952
        %v954 = vshrl.u32 %v744, 16
        %v956 = vrot.slane %v954, 4
        %v957 = vor.u32 %v956, %v952
        %v958 = vrot.slane %v957, 4
        %v960 = vshll.u32 %v768, 16
        %v962 = vrot.slane %v960, 5
        %v963 = vsel %vm771, %v958, %v962
        %s964 = scalar_lea.vmem [#allocation8], 64
        %v965 = vld [vmem:[%s964] sm:$0xf]
        %v966 = vld [vmem:[%s964 + $0x4] sm:$0xf]
        %v967 = vld [vmem:[%s964 + $0x8] sm:$0xf]
        %v968 = vld [vmem:[%s964 + $0xc] sm:$0xf]
        %v969 = vld [vmem:[%s964 + $0x10] sm:$0xf]
        %v970 = vld [vmem:[%s964 + $0x14] sm:$0xf]
        %v971 = vld [vmem:[%s964 + $0x18] sm:$0xf]
        %v972 = vld [vmem:[%s964 + $0x1c] sm:$0xf]
        %v973 = vld [vmem:[%s964 + $0x20] sm:$0xf]
        %v974 = vld [vmem:[%s964 + $0x24] sm:$0xf]
        %v975 = vld [vmem:[%s964 + $0x28] sm:$0xf]
        %v976 = vld [vmem:[%s964 + $0x2c] sm:$0xf]
        %v977 = vld [vmem:[%s964 + $0x30] sm:$0xf]
        %v978 = vld [vmem:[%s964 + $0x34] sm:$0xf]
        %v979 = vld [vmem:[%s964 + $0x38] sm:$0xf]
        %v980 = vld [vmem:[%s964 + $0x3c] sm:$0xf]
        %v981 = vunpack.c.l.b16 %v785
        %v982 = vunpack.c.l.b16 %v795
        %v983 = vunpack.c.l.b16 %v809
        %v984 = vunpack.c.l.b16 %v819
        %v985 = vunpack.c.l.b16 %v833
        %v986 = vunpack.c.l.b16 %v843
        %v987 = vunpack.c.l.b16 %v857
        %v988 = vunpack.c.l.b16 %v867
        %v989 = vunpack.c.l.b16 %v881
        %v990 = vunpack.c.l.b16 %v891
        %v991 = vunpack.c.l.b16 %v905
        %v992 = vunpack.c.l.b16 %v915
        %v993 = vunpack.c.l.b16 %v929
        %v994 = vunpack.c.l.b16 %v939
        %v995 = vunpack.c.l.b16 %v953
        %v996 = vunpack.c.l.b16 %v963
        %v997 = vpack.c.b16 %v982, %v981
        %v998 = vpack.c.b16 %v984, %v983
        %v999 = vpack.c.b16 %v986, %v985
        %v1000 = vpack.c.b16 %v988, %v987
        %v1001 = vpack.c.b16 %v990, %v989
        %v1002 = vpack.c.b16 %v992, %v991
        %v1003 = vpack.c.b16 %v994, %v993
        %v1004 = vpack.c.b16 %v996, %v995
        %v1029 = vunpack.c.l.b16 %v965
        %v1030 = vunpack.c.l.b16 %v966
        %v1031 = vunpack.c.l.b16 %v967
        %v1032 = vunpack.c.l.b16 %v968
        %v1033 = vunpack.c.l.b16 %v969
        %v1034 = vunpack.c.l.b16 %v970
        %v1035 = vunpack.c.l.b16 %v971
        %v1036 = vunpack.c.l.b16 %v972
        %v1037 = vunpack.c.l.b16 %v973
        %v1038 = vunpack.c.l.b16 %v974
        %v1039 = vunpack.c.l.b16 %v975
        %v1040 = vunpack.c.l.b16 %v976
        %v1041 = vunpack.c.l.b16 %v977
        %v1042 = vunpack.c.l.b16 %v978
        %v1043 = vunpack.c.l.b16 %v979
        %v1044 = vunpack.c.l.b16 %v980
        %v1045 = vpack.c.b16 %v1030, %v1029
        %v1046 = vpack.c.b16 %v1032, %v1031
        %v1047 = vpack.c.b16 %v1034, %v1033
        %v1048 = vpack.c.b16 %v1036, %v1035
        %v1049 = vpack.c.b16 %v1038, %v1037
        %v1050 = vpack.c.b16 %v1040, %v1039
        %v1051 = vpack.c.b16 %v1042, %v1041
        %v1052 = vpack.c.b16 %v1044, %v1043
        %1061 = vmatprep.subr.bf16.mxu0 0
        %1062 = vmatpush1.bf16.msra.mxu0 %v1052
        %1063 = vmatprep.subr.bf16.mxu0 0
        %1064 = vmatpush1.bf16.msra.mxu0 %v1051
        %1065 = vmatprep.subr.bf16.mxu0 0
        %1066 = vmatpush1.bf16.msra.mxu0 %v1050
        %1067 = vmatprep.subr.bf16.mxu0 0
        %1068 = vmatpush1.bf16.msra.mxu0 %v1049
        %1069 = vmatprep.subr.bf16.mxu0 0
        %1070 = vmatpush1.bf16.msra.mxu0 %v1048
        %1071 = vmatprep.subr.bf16.mxu0 0
        %1072 = vmatpush1.bf16.msra.mxu0 %v1047
        %1073 = vmatprep.subr.bf16.mxu0 0
        %1074 = vmatpush1.bf16.msra.mxu0 %v1046
        %1075 = vmatprep.subr.bf16.mxu0 0
        %1076 = vmatpush1.bf16.msra.mxu0 %v1045
        %1077 = vmatprep.subr.bf16.mxu0 0
        %1078 = vmatpush2.bf16.msra.mxu0 0
        %1079 = vmatprep.subr.bf16.mxu0 0
        %1080 = vmatpush2.bf16.msra.mxu0 0
        %1081 = vmatprep.subr.bf16.mxu0 0
        %1082 = vmatpush2.bf16.msra.mxu0 0
        %1083 = vmatprep.subr.bf16.mxu0 0
        %1084 = vmatpush2.bf16.msra.mxu0 0
        %1085 = vmatprep.subr.bf16.mxu0 0
        %1086 = vmatpush2.bf16.msra.mxu0 0
        %1087 = vmatprep.subr.bf16.mxu0 0
        %1088 = vmatpush2.bf16.msra.mxu0 0
        %1089 = vmatprep.subr.bf16.mxu0 0
        %1090 = vmatpush2.bf16.msra.mxu0 0
        %1091 = vmatprep.subr.bf16.mxu0 0
        %1092 = vmatpush2.bf16.msra.mxu0 0
        %1093 = vmatprep.mubr.bf16.mxu0 0
        %1094 = vmatmul.mubr.bf16.gmra.mxu0 %v997
        %v1095 = vpop.f32.mrf.mxu0
        %v1096 = vadd.f32 0.0, %v1095
        %v1097 = vpop.f32.mrf.mxu0
        %v1098 = vpop.f32.mrf.mxu0
        %v1099 = vadd.f32 0.0, %v1098
        %v1100 = vpop.f32.mrf.mxu0
        %1101 = vmatprep.mubr.bf16.mxu0 0
        %1102 = vmatmul.mubr.bf16.gmra.mxu0 %v998
        %v1103 = vpop.f32.mrf.mxu0
        %v1104 = vadd.f32 0.0, %v1103
        %v1105 = vpop.f32.mrf.mxu0
        %v1106 = vpop.f32.mrf.mxu0
        %v1107 = vadd.f32 0.0, %v1106
        %v1108 = vpop.f32.mrf.mxu0
        %1109 = vmatprep.mubr.bf16.mxu0 0
        %1110 = vmatmul.mubr.bf16.gmra.mxu0 %v999
        %v1111 = vpop.f32.mrf.mxu0
        %v1112 = vadd.f32 0.0, %v1111
        %v1113 = vpop.f32.mrf.mxu0
        %v1114 = vpop.f32.mrf.mxu0
        %v1115 = vadd.f32 0.0, %v1114
        %v1116 = vpop.f32.mrf.mxu0
        %1117 = vmatprep.mubr.bf16.mxu0 0
        %1118 = vmatmul.mubr.bf16.gmra.mxu0 %v1000
        %v1119 = vpop.f32.mrf.mxu0
        %v1120 = vadd.f32 0.0, %v1119
        %v1121 = vpop.f32.mrf.mxu0
        %v1122 = vpop.f32.mrf.mxu0
        %v1123 = vadd.f32 0.0, %v1122
        %v1124 = vpop.f32.mrf.mxu0
        %1125 = vmatprep.mubr.bf16.mxu0 0
        %1126 = vmatmul.mubr.bf16.gmra.mxu0 %v1001
        %v1127 = vpop.f32.mrf.mxu0
        %v1128 = vadd.f32 0.0, %v1127
        %v1129 = vpop.f32.mrf.mxu0
        %v1130 = vpop.f32.mrf.mxu0
        %v1131 = vadd.f32 0.0, %v1130
        %v1132 = vpop.f32.mrf.mxu0
        %1133 = vmatprep.mubr.bf16.mxu0 0
        %1134 = vmatmul.mubr.bf16.gmra.mxu0 %v1002
        %v1135 = vpop.f32.mrf.mxu0
        %v1136 = vadd.f32 0.0, %v1135
        %v1137 = vpop.f32.mrf.mxu0
        %v1138 = vpop.f32.mrf.mxu0
        %v1139 = vadd.f32 0.0, %v1138
        %v1140 = vpop.f32.mrf.mxu0
        %1141 = vmatprep.mubr.bf16.mxu0 0
        %1142 = vmatmul.mubr.bf16.gmra.mxu0 %v1003
        %v1143 = vpop.f32.mrf.mxu0
        %v1144 = vadd.f32 0.0, %v1143
        %v1145 = vpop.f32.mrf.mxu0
        %v1146 = vpop.f32.mrf.mxu0
        %v1147 = vadd.f32 0.0, %v1146
        %v1148 = vpop.f32.mrf.mxu0
        %1149 = vmatprep.mubr.bf16.mxu0 0
        %1150 = vmatmul.mubr.bf16.gmra.mxu0 %v1004
        %v1151 = vpop.f32.mrf.mxu0
        %v1152 = vadd.f32 0.0, %v1151
        %v1153 = vpop.f32.mrf.mxu0
        %v1154 = vpop.f32.mrf.mxu0
        %v1155 = vadd.f32 0.0, %v1154
        %v1156 = vpop.f32.mrf.mxu0
        %1157 = vdwg.mxu0
        %v1174 = vunpack.c.l.b16 %v729
        %v1175 = vunpack.c.l.b16 %v730
        %v1176 = vunpack.c.l.b16 %v731
        %v1177 = vunpack.c.l.b16 %v732
        %v1178 = vunpack.c.l.b16 %v733
        %v1179 = vunpack.c.l.b16 %v734
        %v1180 = vunpack.c.l.b16 %v735
        %v1181 = vunpack.c.l.b16 %v736
        %v1182 = vunpack.c.l.b16 %v737
        %v1183 = vunpack.c.l.b16 %v738
        %v1184 = vunpack.c.l.b16 %v739
        %v1185 = vunpack.c.l.b16 %v740
        %v1186 = vunpack.c.l.b16 %v741
        %v1187 = vunpack.c.l.b16 %v742
        %v1188 = vunpack.c.l.b16 %v743
        %v1189 = vunpack.c.l.b16 %v744
        %v1190 = vpack.c.b16 %v1175, %v1174
        %v1191 = vpack.c.b16 %v1177, %v1176
        %v1192 = vpack.c.b16 %v1179, %v1178
        %v1193 = vpack.c.b16 %v1181, %v1180
        %v1194 = vpack.c.b16 %v1183, %v1182
        %v1195 = vpack.c.b16 %v1185, %v1184
        %v1196 = vpack.c.b16 %v1187, %v1186
        %v1197 = vpack.c.b16 %v1189, %v1188
        %v1222 = vunpack.c.l.b16 %v745
        %v1223 = vunpack.c.l.b16 %v746
        %v1224 = vunpack.c.l.b16 %v747
        %v1225 = vunpack.c.l.b16 %v748
        %v1226 = vunpack.c.l.b16 %v749
        %v1227 = vunpack.c.l.b16 %v750
        %v1228 = vunpack.c.l.b16 %v751
        %v1229 = vunpack.c.l.b16 %v752
        %v1230 = vunpack.c.l.b16 %v753
        %v1231 = vunpack.c.l.b16 %v754
        %v1232 = vunpack.c.l.b16 %v755
        %v1233 = vunpack.c.l.b16 %v756
        %v1234 = vunpack.c.l.b16 %v757
        %v1235 = vunpack.c.l.b16 %v758
        %v1236 = vunpack.c.l.b16 %v759
        %v1237 = vunpack.c.l.b16 %v760
        %v1238 = vpack.c.b16 %v1223, %v1222
        %v1239 = vpack.c.b16 %v1225, %v1224
        %v1240 = vpack.c.b16 %v1227, %v1226
        %v1241 = vpack.c.b16 %v1229, %v1228
        %v1242 = vpack.c.b16 %v1231, %v1230
        %v1243 = vpack.c.b16 %v1233, %v1232
        %v1244 = vpack.c.b16 %v1235, %v1234
        %v1245 = vpack.c.b16 %v1237, %v1236
        %1254 = vmatprep.subr.bf16.mxu0 0
        %1255 = vmatpush1.bf16.msra.mxu0 %v1245
        %1256 = vmatprep.subr.bf16.mxu0 0
        %1257 = vmatpush1.bf16.msra.mxu0 %v1244
        %1258 = vmatprep.subr.bf16.mxu0 0
        %1259 = vmatpush1.bf16.msra.mxu0 %v1243
        %1260 = vmatprep.subr.bf16.mxu0 0
        %1261 = vmatpush1.bf16.msra.mxu0 %v1242
        %1262 = vmatprep.subr.bf16.mxu0 0
        %1263 = vmatpush1.bf16.msra.mxu0 %v1241
        %1264 = vmatprep.subr.bf16.mxu0 0
        %1265 = vmatpush1.bf16.msra.mxu0 %v1240
        %1266 = vmatprep.subr.bf16.mxu0 0
        %1267 = vmatpush1.bf16.msra.mxu0 %v1239
        %1268 = vmatprep.subr.bf16.mxu0 0
        %1269 = vmatpush1.bf16.msra.mxu0 %v1238
        %1270 = vmatprep.subr.bf16.mxu0 0
        %1271 = vmatpush2.bf16.msra.mxu0 0
        %1272 = vmatprep.subr.bf16.mxu0 0
        %1273 = vmatpush2.bf16.msra.mxu0 0
        %1274 = vmatprep.subr.bf16.mxu0 0
        %1275 = vmatpush2.bf16.msra.mxu0 0
        %1276 = vmatprep.subr.bf16.mxu0 0
        %1277 = vmatpush2.bf16.msra.mxu0 0
        %1278 = vmatprep.subr.bf16.mxu0 0
        %1279 = vmatpush2.bf16.msra.mxu0 0
        %1280 = vmatprep.subr.bf16.mxu0 0
        %1281 = vmatpush2.bf16.msra.mxu0 0
        %1282 = vmatprep.subr.bf16.mxu0 0
        %1283 = vmatpush2.bf16.msra.mxu0 0
        %1284 = vmatprep.subr.bf16.mxu0 0
        %1285 = vmatpush2.bf16.msra.mxu0 0
        %1286 = vmatprep.mubr.bf16.mxu0 0
        %1287 = vmatmul.mubr.bf16.gmra.mxu0 %v1190
        %v1288 = vpop.f32.mrf.mxu0
        %v1289 = vadd.f32 %v1096, %v1288
        %v1290 = vpop.f32.mrf.mxu0
        %v1291 = vpop.f32.mrf.mxu0
        %v1292 = vadd.f32 %v1099, %v1291
        %v1293 = vpop.f32.mrf.mxu0
        %1294 = vmatprep.mubr.bf16.mxu0 0
        %1295 = vmatmul.mubr.bf16.gmra.mxu0 %v1191
        %v1296 = vpop.f32.mrf.mxu0
        %v1297 = vadd.f32 %v1104, %v1296
        %v1298 = vpop.f32.mrf.mxu0
        %v1299 = vpop.f32.mrf.mxu0
        %v1300 = vadd.f32 %v1107, %v1299
        %v1301 = vpop.f32.mrf.mxu0
        %1302 = vmatprep.mubr.bf16.mxu0 0
        %1303 = vmatmul.mubr.bf16.gmra.mxu0 %v1192
        %v1304 = vpop.f32.mrf.mxu0
        %v1305 = vadd.f32 %v1112, %v1304
        %v1306 = vpop.f32.mrf.mxu0
        %v1307 = vpop.f32.mrf.mxu0
        %v1308 = vadd.f32 %v1115, %v1307
        %v1309 = vpop.f32.mrf.mxu0
        %1310 = vmatprep.mubr.bf16.mxu0 0
        %1311 = vmatmul.mubr.bf16.gmra.mxu0 %v1193
        %v1312 = vpop.f32.mrf.mxu0
        %v1313 = vadd.f32 %v1120, %v1312
        %v1314 = vpop.f32.mrf.mxu0
        %v1315 = vpop.f32.mrf.mxu0
        %v1316 = vadd.f32 %v1123, %v1315
        %v1317 = vpop.f32.mrf.mxu0
        %1318 = vmatprep.mubr.bf16.mxu0 0
        %1319 = vmatmul.mubr.bf16.gmra.mxu0 %v1194
        %v1320 = vpop.f32.mrf.mxu0
        %v1321 = vadd.f32 %v1128, %v1320
        %v1322 = vpop.f32.mrf.mxu0
        %v1323 = vpop.f32.mrf.mxu0
        %v1324 = vadd.f32 %v1131, %v1323
        %v1325 = vpop.f32.mrf.mxu0
        %1326 = vmatprep.mubr.bf16.mxu0 0
        %1327 = vmatmul.mubr.bf16.gmra.mxu0 %v1195
        %v1328 = vpop.f32.mrf.mxu0
        %v1329 = vadd.f32 %v1136, %v1328
        %v1330 = vpop.f32.mrf.mxu0
        %v1331 = vpop.f32.mrf.mxu0
        %v1332 = vadd.f32 %v1139, %v1331
        %v1333 = vpop.f32.mrf.mxu0
        %1334 = vmatprep.mubr.bf16.mxu0 0
        %1335 = vmatmul.mubr.bf16.gmra.mxu0 %v1196
        %v1336 = vpop.f32.mrf.mxu0
        %v1337 = vadd.f32 %v1144, %v1336
        %v1338 = vpop.f32.mrf.mxu0
        %v1339 = vpop.f32.mrf.mxu0
        %v1340 = vadd.f32 %v1147, %v1339
        %v1341 = vpop.f32.mrf.mxu0
        %1342 = vmatprep.mubr.bf16.mxu0 0
        %1343 = vmatmul.mubr.bf16.gmra.mxu0 %v1197
        %v1344 = vpop.f32.mrf.mxu0
        %v1345 = vadd.f32 %v1152, %v1344
        %v1346 = vpop.f32.mrf.mxu0
        %v1347 = vpop.f32.mrf.mxu0
        %v1348 = vadd.f32 %v1155, %v1347
        %v1349 = vpop.f32.mrf.mxu0
        %1350 = vdwg.mxu0
        %v1351 = vld [vmem:[#allocation3] sm:$0xe]
        %v1352 = vld [vmem:[#allocation3 + $0xc] sm:$0xe]
        %v1353 = vld [vmem:[#allocation3 + $0x18] sm:$0xe]
        %v1354 = vld [vmem:[#allocation3 + $0x24] sm:$0xe]
        %v1355 = vld [vmem:[#allocation3 + $0x30] sm:$0xe]
        %v1356 = vld [vmem:[#allocation3 + $0x3c] sm:$0xe]
        %v1357 = vld [vmem:[#allocation3 + $0x48] sm:$0xe]
        %v1358 = vld [vmem:[#allocation3 + $0x54] sm:$0xe]
        %vm1375 = vcmask 1042432
        %vm1376 = vcmask 1046532
        %vm1377 = vmor %vm1375, %vm1376
        %v1378 = vrot.slane %v1351, 5
        %v1379 = vrot.slane %v1378, 4
        %v1380 = vrot.slane %v730, 5
        %v1381 = vsel %vm1377, %v1379, %v1380
        %v1382 = vrot.slane %v1380, 4
        %v1383 = vrot.slane %v761, 5
        %v1384 = vsel %vm1377, %v1382, %v1383
        %v1385 = vrot.slane %v1352, 5
        %v1386 = vrot.slane %v1385, 4
        %v1387 = vrot.slane %v732, 5
        %v1388 = vsel %vm1377, %v1386, %v1387
        %v1389 = vrot.slane %v1387, 4
        %v1390 = vrot.slane %v762, 5
        %v1391 = vsel %vm1377, %v1389, %v1390
        %v1392 = vrot.slane %v1353, 5
        %v1393 = vrot.slane %v1392, 4
        %v1394 = vrot.slane %v734, 5
        %v1395 = vsel %vm1377, %v1393, %v1394
        %v1396 = vrot.slane %v1394, 4
        %v1397 = vrot.slane %v763, 5
        %v1398 = vsel %vm1377, %v1396, %v1397
        %v1399 = vrot.slane %v1354, 5
        %v1400 = vrot.slane %v1399, 4
        %v1401 = vrot.slane %v736, 5
        %v1402 = vsel %vm1377, %v1400, %v1401
        %v1403 = vrot.slane %v1401, 4
        %v1404 = vrot.slane %v764, 5
        %v1405 = vsel %vm1377, %v1403, %v1404
        %v1406 = vrot.slane %v1355, 5
        %v1407 = vrot.slane %v1406, 4
        %v1408 = vrot.slane %v738, 5
        %v1409 = vsel %vm1377, %v1407, %v1408
        %v1410 = vrot.slane %v1408, 4
        %v1411 = vrot.slane %v765, 5
        %v1412 = vsel %vm1377, %v1410, %v1411
        %v1413 = vrot.slane %v1356, 5
        %v1414 = vrot.slane %v1413, 4
        %v1415 = vrot.slane %v740, 5
        %v1416 = vsel %vm1377, %v1414, %v1415
        %v1417 = vrot.slane %v1415, 4
        %v1418 = vrot.slane %v766, 5
        %v1419 = vsel %vm1377, %v1417, %v1418
        %v1420 = vrot.slane %v1357, 5
        %v1421 = vrot.slane %v1420, 4
        %v1422 = vrot.slane %v742, 5
        %v1423 = vsel %vm1377, %v1421, %v1422
        %v1424 = vrot.slane %v1422, 4
        %v1425 = vrot.slane %v767, 5
        %v1426 = vsel %vm1377, %v1424, %v1425
        %v1427 = vrot.slane %v1358, 5
        %v1428 = vrot.slane %v1427, 4
        %v1429 = vrot.slane %v744, 5
        %v1430 = vsel %vm1377, %v1428, %v1429
        %v1431 = vrot.slane %v1429, 4
        %v1432 = vrot.slane %v768, 5
        %v1433 = vsel %vm1377, %v1431, %v1432
        %s1434 = scalar_lea.vmem [#allocation8], 128
        %v1435 = vld [vmem:[%s1434] sm:$0xf]
        %v1436 = vld [vmem:[%s1434 + $0x4] sm:$0xf]
        %v1437 = vld [vmem:[%s1434 + $0x8] sm:$0xf]
        %v1438 = vld [vmem:[%s1434 + $0xc] sm:$0xf]
        %v1439 = vld [vmem:[%s1434 + $0x10] sm:$0xf]
        %v1440 = vld [vmem:[%s1434 + $0x14] sm:$0xf]
        %v1441 = vld [vmem:[%s1434 + $0x18] sm:$0xf]
        %v1442 = vld [vmem:[%s1434 + $0x1c] sm:$0xf]
        %v1443 = vld [vmem:[%s1434 + $0x20] sm:$0xf]
        %v1444 = vld [vmem:[%s1434 + $0x24] sm:$0xf]
        %v1445 = vld [vmem:[%s1434 + $0x28] sm:$0xf]
        %v1446 = vld [vmem:[%s1434 + $0x2c] sm:$0xf]
        %v1447 = vld [vmem:[%s1434 + $0x30] sm:$0xf]
        %v1448 = vld [vmem:[%s1434 + $0x34] sm:$0xf]
        %v1449 = vld [vmem:[%s1434 + $0x38] sm:$0xf]
        %v1450 = vld [vmem:[%s1434 + $0x3c] sm:$0xf]
        %v1451 = vunpack.c.l.b16 %v1381
        %v1452 = vunpack.c.l.b16 %v1384
        %v1453 = vunpack.c.l.b16 %v1388
        %v1454 = vunpack.c.l.b16 %v1391
        %v1455 = vunpack.c.l.b16 %v1395
        %v1456 = vunpack.c.l.b16 %v1398
        %v1457 = vunpack.c.l.b16 %v1402
        %v1458 = vunpack.c.l.b16 %v1405
        %v1459 = vunpack.c.l.b16 %v1409
        %v1460 = vunpack.c.l.b16 %v1412
        %v1461 = vunpack.c.l.b16 %v1416
        %v1462 = vunpack.c.l.b16 %v1419
        %v1463 = vunpack.c.l.b16 %v1423
        %v1464 = vunpack.c.l.b16 %v1426
        %v1465 = vunpack.c.l.b16 %v1430
        %v1466 = vunpack.c.l.b16 %v1433
        %v1467 = vpack.c.b16 %v1452, %v1451
        %v1468 = vpack.c.b16 %v1454, %v1453
        %v1469 = vpack.c.b16 %v1456, %v1455
        %v1470 = vpack.c.b16 %v1458, %v1457
        %v1471 = vpack.c.b16 %v1460, %v1459
        %v1472 = vpack.c.b16 %v1462, %v1461
        %v1473 = vpack.c.b16 %v1464, %v1463
        %v1474 = vpack.c.b16 %v1466, %v1465
        %v1499 = vunpack.c.l.b16 %v1435
        %v1500 = vunpack.c.l.b16 %v1436
        %v1501 = vunpack.c.l.b16 %v1437
        %v1502 = vunpack.c.l.b16 %v1438
        %v1503 = vunpack.c.l.b16 %v1439
        %v1504 = vunpack.c.l.b16 %v1440
        %v1505 = vunpack.c.l.b16 %v1441
        %v1506 = vunpack.c.l.b16 %v1442
        %v1507 = vunpack.c.l.b16 %v1443
        %v1508 = vunpack.c.l.b16 %v1444
        %v1509 = vunpack.c.l.b16 %v1445
        %v1510 = vunpack.c.l.b16 %v1446
        %v1511 = vunpack.c.l.b16 %v1447
        %v1512 = vunpack.c.l.b16 %v1448
        %v1513 = vunpack.c.l.b16 %v1449
        %v1514 = vunpack.c.l.b16 %v1450
        %v1515 = vpack.c.b16 %v1500, %v1499
        %v1516 = vpack.c.b16 %v1502, %v1501
        %v1517 = vpack.c.b16 %v1504, %v1503
        %v1518 = vpack.c.b16 %v1506, %v1505
        %v1519 = vpack.c.b16 %v1508, %v1507
        %v1520 = vpack.c.b16 %v1510, %v1509
        %v1521 = vpack.c.b16 %v1512, %v1511
        %v1522 = vpack.c.b16 %v1514, %v1513
        %1531 = vmatprep.subr.bf16.mxu0 0
        %1532 = vmatpush1.bf16.msra.mxu0 %v1522
        %1533 = vmatprep.subr.bf16.mxu0 0
        %1534 = vmatpush1.bf16.msra.mxu0 %v1521
        %1535 = vmatprep.subr.bf16.mxu0 0
        %1536 = vmatpush1.bf16.msra.mxu0 %v1520
        %1537 = vmatprep.subr.bf16.mxu0 0
        %1538 = vmatpush1.bf16.msra.mxu0 %v1519
        %1539 = vmatprep.subr.bf16.mxu0 0
        %1540 = vmatpush1.bf16.msra.mxu0 %v1518
        %1541 = vmatprep.subr.bf16.mxu0 0
        %1542 = vmatpush1.bf16.msra.mxu0 %v1517
        %1543 = vmatprep.subr.bf16.mxu0 0
        %1544 = vmatpush1.bf16.msra.mxu0 %v1516
        %1545 = vmatprep.subr.bf16.mxu0 0
        %1546 = vmatpush1.bf16.msra.mxu0 %v1515
        %1547 = vmatprep.subr.bf16.mxu0 0
        %1548 = vmatpush2.bf16.msra.mxu0 0
        %1549 = vmatprep.subr.bf16.mxu0 0
        %1550 = vmatpush2.bf16.msra.mxu0 0
        %1551 = vmatprep.subr.bf16.mxu0 0
        %1552 = vmatpush2.bf16.msra.mxu0 0
        %1553 = vmatprep.subr.bf16.mxu0 0
        %1554 = vmatpush2.bf16.msra.mxu0 0
        %1555 = vmatprep.subr.bf16.mxu0 0
        %1556 = vmatpush2.bf16.msra.mxu0 0
        %1557 = vmatprep.subr.bf16.mxu0 0
        %1558 = vmatpush2.bf16.msra.mxu0 0
        %1559 = vmatprep.subr.bf16.mxu0 0
        %1560 = vmatpush2.bf16.msra.mxu0 0
        %1561 = vmatprep.subr.bf16.mxu0 0
        %1562 = vmatpush2.bf16.msra.mxu0 0
        %1563 = vmatprep.mubr.bf16.mxu0 0
        %1564 = vmatmul.mubr.bf16.gmra.mxu0 %v1467
        %v1565 = vpop.f32.mrf.mxu0
        %v1566 = vadd.f32 0.0, %v1565
        %v1567 = vpop.f32.mrf.mxu0
        %v1568 = vpop.f32.mrf.mxu0
        %v1569 = vadd.f32 0.0, %v1568
        %v1570 = vpop.f32.mrf.mxu0
        %1571 = vmatprep.mubr.bf16.mxu0 0
        %1572 = vmatmul.mubr.bf16.gmra.mxu0 %v1468
        %v1573 = vpop.f32.mrf.mxu0
        %v1574 = vadd.f32 0.0, %v1573
        %v1575 = vpop.f32.mrf.mxu0
        %v1576 = vpop.f32.mrf.mxu0
        %v1577 = vadd.f32 0.0, %v1576
        %v1578 = vpop.f32.mrf.mxu0
        %1579 = vmatprep.mubr.bf16.mxu0 0
        %1580 = vmatmul.mubr.bf16.gmra.mxu0 %v1469
        %v1581 = vpop.f32.mrf.mxu0
        %v1582 = vadd.f32 0.0, %v1581
        %v1583 = vpop.f32.mrf.mxu0
        %v1584 = vpop.f32.mrf.mxu0
        %v1585 = vadd.f32 0.0, %v1584
        %v1586 = vpop.f32.mrf.mxu0
        %1587 = vmatprep.mubr.bf16.mxu0 0
        %1588 = vmatmul.mubr.bf16.gmra.mxu0 %v1470
        %v1589 = vpop.f32.mrf.mxu0
        %v1590 = vadd.f32 0.0, %v1589
        %v1591 = vpop.f32.mrf.mxu0
        %v1592 = vpop.f32.mrf.mxu0
        %v1593 = vadd.f32 0.0, %v1592
        %v1594 = vpop.f32.mrf.mxu0
        %1595 = vmatprep.mubr.bf16.mxu0 0
        %1596 = vmatmul.mubr.bf16.gmra.mxu0 %v1471
        %v1597 = vpop.f32.mrf.mxu0
        %v1598 = vadd.f32 0.0, %v1597
        %v1599 = vpop.f32.mrf.mxu0
        %v1600 = vpop.f32.mrf.mxu0
        %v1601 = vadd.f32 0.0, %v1600
        %v1602 = vpop.f32.mrf.mxu0
        %1603 = vmatprep.mubr.bf16.mxu0 0
        %1604 = vmatmul.mubr.bf16.gmra.mxu0 %v1472
        %v1605 = vpop.f32.mrf.mxu0
        %v1606 = vadd.f32 0.0, %v1605
        %v1607 = vpop.f32.mrf.mxu0
        %v1608 = vpop.f32.mrf.mxu0
        %v1609 = vadd.f32 0.0, %v1608
        %v1610 = vpop.f32.mrf.mxu0
        %1611 = vmatprep.mubr.bf16.mxu0 0
        %1612 = vmatmul.mubr.bf16.gmra.mxu0 %v1473
        %v1613 = vpop.f32.mrf.mxu0
        %v1614 = vadd.f32 0.0, %v1613
        %v1615 = vpop.f32.mrf.mxu0
        %v1616 = vpop.f32.mrf.mxu0
        %v1617 = vadd.f32 0.0, %v1616
        %v1618 = vpop.f32.mrf.mxu0
        %1619 = vmatprep.mubr.bf16.mxu0 0
        %1620 = vmatmul.mubr.bf16.gmra.mxu0 %v1474
        %v1621 = vpop.f32.mrf.mxu0
        %v1622 = vadd.f32 0.0, %v1621
        %v1623 = vpop.f32.mrf.mxu0
        %v1624 = vpop.f32.mrf.mxu0
        %v1625 = vadd.f32 0.0, %v1624
        %v1626 = vpop.f32.mrf.mxu0
        %1627 = vdwg.mxu0
        %v1628 = vadd.f32 %v1289, %v1566
        %v1629 = vadd.f32 %v1292, %v1569
        %v1630 = vadd.f32 %v1297, %v1574
        %v1631 = vadd.f32 %v1300, %v1577
        %v1632 = vadd.f32 %v1305, %v1582
        %v1633 = vadd.f32 %v1308, %v1585
        %v1634 = vadd.f32 %v1313, %v1590
        %v1635 = vadd.f32 %v1316, %v1593
        %v1636 = vadd.f32 %v1321, %v1598
        %v1637 = vadd.f32 %v1324, %v1601
        %v1638 = vadd.f32 %v1329, %v1606
        %v1639 = vadd.f32 %v1332, %v1609
        %v1640 = vadd.f32 %v1337, %v1614
        %v1641 = vadd.f32 %v1340, %v1617
        %v1642 = vadd.f32 %v1345, %v1622
        %v1643 = vadd.f32 %v1348, %v1625
        %v1644 = vld [vmem:[%s584] sm:$0xf]
        %v1645 = vld [vmem:[%s584 + $0x4] sm:$0xf]
        %v1646 = vld [vmem:[%s584 + $0xc] sm:$0xf]
        %v1647 = vld [vmem:[%s584 + $0x10] sm:$0xf]
        %v1648 = vld [vmem:[%s584 + $0x18] sm:$0xf]
        %v1649 = vld [vmem:[%s584 + $0x1c] sm:$0xf]
        %v1650 = vld [vmem:[%s584 + $0x24] sm:$0xf]
        %v1651 = vld [vmem:[%s584 + $0x28] sm:$0xf]
        %v1652 = vld [vmem:[%s584 + $0x30] sm:$0xf]
        %v1653 = vld [vmem:[%s584 + $0x34] sm:$0xf]
        %v1654 = vld [vmem:[%s584 + $0x3c] sm:$0xf]
        %v1655 = vld [vmem:[%s584 + $0x40] sm:$0xf]
        %v1656 = vld [vmem:[%s584 + $0x48] sm:$0xf]
        %v1657 = vld [vmem:[%s584 + $0x4c] sm:$0xf]
        %v1658 = vld [vmem:[%s584 + $0x54] sm:$0xf]
        %v1659 = vld [vmem:[%s584 + $0x58] sm:$0xf]
        %s1660 = scalar_lea.vmem [#allocation8], 192
        %v1661 = vld [vmem:[%s1660] sm:$0xf]
        %v1662 = vld [vmem:[%s1660 + $0x4] sm:$0xf]
        %v1663 = vld [vmem:[%s1660 + $0x8] sm:$0xf]
        %v1664 = vld [vmem:[%s1660 + $0xc] sm:$0xf]
        %v1665 = vld [vmem:[%s1660 + $0x10] sm:$0xf]
        %v1666 = vld [vmem:[%s1660 + $0x14] sm:$0xf]
        %v1667 = vld [vmem:[%s1660 + $0x18] sm:$0xf]
        %v1668 = vld [vmem:[%s1660 + $0x1c] sm:$0xf]
        %v1669 = vld [vmem:[%s1660 + $0x20] sm:$0xf]
        %v1670 = vld [vmem:[%s1660 + $0x24] sm:$0xf]
        %v1671 = vld [vmem:[%s1660 + $0x28] sm:$0xf]
        %v1672 = vld [vmem:[%s1660 + $0x2c] sm:$0xf]
        %v1673 = vld [vmem:[%s1660 + $0x30] sm:$0xf]
        %v1674 = vld [vmem:[%s1660 + $0x34] sm:$0xf]
        %v1675 = vld [vmem:[%s1660 + $0x38] sm:$0xf]
        %v1676 = vld [vmem:[%s1660 + $0x3c] sm:$0xf]
        %v1693 = vunpack.c.l.b16 %v1644
        %v1694 = vunpack.c.l.b16 %v1645
        %v1695 = vunpack.c.l.b16 %v1646
        %v1696 = vunpack.c.l.b16 %v1647
        %v1697 = vunpack.c.l.b16 %v1648
        %v1698 = vunpack.c.l.b16 %v1649
        %v1699 = vunpack.c.l.b16 %v1650
        %v1700 = vunpack.c.l.b16 %v1651
        %v1701 = vunpack.c.l.b16 %v1652
        %v1702 = vunpack.c.l.b16 %v1653
        %v1703 = vunpack.c.l.b16 %v1654
        %v1704 = vunpack.c.l.b16 %v1655
        %v1705 = vunpack.c.l.b16 %v1656
        %v1706 = vunpack.c.l.b16 %v1657
        %v1707 = vunpack.c.l.b16 %v1658
        %v1708 = vunpack.c.l.b16 %v1659
        %v1709 = vpack.c.b16 %v1694, %v1693
        %v1710 = vpack.c.b16 %v1696, %v1695
        %v1711 = vpack.c.b16 %v1698, %v1697
        %v1712 = vpack.c.b16 %v1700, %v1699
        %v1713 = vpack.c.b16 %v1702, %v1701
        %v1714 = vpack.c.b16 %v1704, %v1703
        %v1715 = vpack.c.b16 %v1706, %v1705
        %v1716 = vpack.c.b16 %v1708, %v1707
        %v1741 = vunpack.c.l.b16 %v1661
        %v1742 = vunpack.c.l.b16 %v1662
        %v1743 = vunpack.c.l.b16 %v1663
        %v1744 = vunpack.c.l.b16 %v1664
        %v1745 = vunpack.c.l.b16 %v1665
        %v1746 = vunpack.c.l.b16 %v1666
        %v1747 = vunpack.c.l.b16 %v1667
        %v1748 = vunpack.c.l.b16 %v1668
        %v1749 = vunpack.c.l.b16 %v1669
        %v1750 = vunpack.c.l.b16 %v1670
        %v1751 = vunpack.c.l.b16 %v1671
        %v1752 = vunpack.c.l.b16 %v1672
        %v1753 = vunpack.c.l.b16 %v1673
        %v1754 = vunpack.c.l.b16 %v1674
        %v1755 = vunpack.c.l.b16 %v1675
        %v1756 = vunpack.c.l.b16 %v1676
        %v1757 = vpack.c.b16 %v1742, %v1741
        %v1758 = vpack.c.b16 %v1744, %v1743
        %v1759 = vpack.c.b16 %v1746, %v1745
        %v1760 = vpack.c.b16 %v1748, %v1747
        %v1761 = vpack.c.b16 %v1750, %v1749
        %v1762 = vpack.c.b16 %v1752, %v1751
        %v1763 = vpack.c.b16 %v1754, %v1753
        %v1764 = vpack.c.b16 %v1756, %v1755
        %1773 = vmatprep.subr.bf16.mxu0 0
        %1774 = vmatpush1.bf16.msra.mxu0 %v1764
        %1775 = vmatprep.subr.bf16.mxu0 0
        %1776 = vmatpush1.bf16.msra.mxu0 %v1763
        %1777 = vmatprep.subr.bf16.mxu0 0
        %1778 = vmatpush1.bf16.msra.mxu0 %v1762
        %1779 = vmatprep.subr.bf16.mxu0 0
        %1780 = vmatpush1.bf16.msra.mxu0 %v1761
        %1781 = vmatprep.subr.bf16.mxu0 0
        %1782 = vmatpush1.bf16.msra.mxu0 %v1760
        %1783 = vmatprep.subr.bf16.mxu0 0
        %1784 = vmatpush1.bf16.msra.mxu0 %v1759
        %1785 = vmatprep.subr.bf16.mxu0 0
        %1786 = vmatpush1.bf16.msra.mxu0 %v1758
        %1787 = vmatprep.subr.bf16.mxu0 0
        %1788 = vmatpush1.bf16.msra.mxu0 %v1757
        %1789 = vmatprep.subr.bf16.mxu0 0
        %1790 = vmatpush2.bf16.msra.mxu0 0
        %1791 = vmatprep.subr.bf16.mxu0 0
        %1792 = vmatpush2.bf16.msra.mxu0 0
        %1793 = vmatprep.subr.bf16.mxu0 0
        %1794 = vmatpush2.bf16.msra.mxu0 0
        %1795 = vmatprep.subr.bf16.mxu0 0
        %1796 = vmatpush2.bf16.msra.mxu0 0
        %1797 = vmatprep.subr.bf16.mxu0 0
        %1798 = vmatpush2.bf16.msra.mxu0 0
        %1799 = vmatprep.subr.bf16.mxu0 0
        %1800 = vmatpush2.bf16.msra.mxu0 0
        %1801 = vmatprep.subr.bf16.mxu0 0
        %1802 = vmatpush2.bf16.msra.mxu0 0
        %1803 = vmatprep.subr.bf16.mxu0 0
        %1804 = vmatpush2.bf16.msra.mxu0 0
        %1805 = vmatprep.mubr.bf16.mxu0 0
        %1806 = vmatmul.mubr.bf16.gmra.mxu0 %v1709
        %v1807 = vpop.f32.mrf.mxu0
        %v1808 = vadd.f32 0.0, %v1807
        %v1809 = vpop.f32.mrf.mxu0
        %v1810 = vpop.f32.mrf.mxu0
        %v1811 = vadd.f32 0.0, %v1810
        %v1812 = vpop.f32.mrf.mxu0
        %1813 = vmatprep.mubr.bf16.mxu0 0
        %1814 = vmatmul.mubr.bf16.gmra.mxu0 %v1710
        %v1815 = vpop.f32.mrf.mxu0
        %v1816 = vadd.f32 0.0, %v1815
        %v1817 = vpop.f32.mrf.mxu0
        %v1818 = vpop.f32.mrf.mxu0
        %v1819 = vadd.f32 0.0, %v1818
        %v1820 = vpop.f32.mrf.mxu0
        %1821 = vmatprep.mubr.bf16.mxu0 0
        %1822 = vmatmul.mubr.bf16.gmra.mxu0 %v1711
        %v1823 = vpop.f32.mrf.mxu0
        %v1824 = vadd.f32 0.0, %v1823
        %v1825 = vpop.f32.mrf.mxu0
        %v1826 = vpop.f32.mrf.mxu0
        %v1827 = vadd.f32 0.0, %v1826
        %v1828 = vpop.f32.mrf.mxu0
        %1829 = vmatprep.mubr.bf16.mxu0 0
        %1830 = vmatmul.mubr.bf16.gmra.mxu0 %v1712
        %v1831 = vpop.f32.mrf.mxu0
        %v1832 = vadd.f32 0.0, %v1831
        %v1833 = vpop.f32.mrf.mxu0
        %v1834 = vpop.f32.mrf.mxu0
        %v1835 = vadd.f32 0.0, %v1834
        %v1836 = vpop.f32.mrf.mxu0
        %1837 = vmatprep.mubr.bf16.mxu0 0
        %1838 = vmatmul.mubr.bf16.gmra.mxu0 %v1713
        %v1839 = vpop.f32.mrf.mxu0
        %v1840 = vadd.f32 0.0, %v1839
        %v1841 = vpop.f32.mrf.mxu0
        %v1842 = vpop.f32.mrf.mxu0
        %v1843 = vadd.f32 0.0, %v1842
        %v1844 = vpop.f32.mrf.mxu0
        %1845 = vmatprep.mubr.bf16.mxu0 0
        %1846 = vmatmul.mubr.bf16.gmra.mxu0 %v1714
        %v1847 = vpop.f32.mrf.mxu0
        %v1848 = vadd.f32 0.0, %v1847
        %v1849 = vpop.f32.mrf.mxu0
        %v1850 = vpop.f32.mrf.mxu0
        %v1851 = vadd.f32 0.0, %v1850
        %v1852 = vpop.f32.mrf.mxu0
        %1853 = vmatprep.mubr.bf16.mxu0 0
        %1854 = vmatmul.mubr.bf16.gmra.mxu0 %v1715
        %v1855 = vpop.f32.mrf.mxu0
        %v1856 = vadd.f32 0.0, %v1855
        %v1857 = vpop.f32.mrf.mxu0
        %v1858 = vpop.f32.mrf.mxu0
        %v1859 = vadd.f32 0.0, %v1858
        %v1860 = vpop.f32.mrf.mxu0
        %1861 = vmatprep.mubr.bf16.mxu0 0
        %1862 = vmatmul.mubr.bf16.gmra.mxu0 %v1716
        %v1863 = vpop.f32.mrf.mxu0
        %v1864 = vadd.f32 0.0, %v1863
        %v1865 = vpop.f32.mrf.mxu0
        %v1866 = vpop.f32.mrf.mxu0
        %v1867 = vadd.f32 0.0, %v1866
        %v1868 = vpop.f32.mrf.mxu0
        %1869 = vdwg.mxu0
        %v1870 = vadd.f32 %v1628, %v1808
        %v1871 = vadd.f32 %v1629, %v1811
        %v1872 = vadd.f32 %v1630, %v1816
        %v1873 = vadd.f32 %v1631, %v1819
        %v1874 = vadd.f32 %v1632, %v1824
        %v1875 = vadd.f32 %v1633, %v1827
        %v1876 = vadd.f32 %v1634, %v1832
        %v1877 = vadd.f32 %v1635, %v1835
        %v1878 = vadd.f32 %v1636, %v1840
        %v1879 = vadd.f32 %v1637, %v1843
        %v1880 = vadd.f32 %v1638, %v1848
        %v1881 = vadd.f32 %v1639, %v1851
        %v1882 = vadd.f32 %v1640, %v1856
        %v1883 = vadd.f32 %v1641, %v1859
        %v1884 = vadd.f32 %v1642, %v1864
        %v1885 = vadd.f32 %v1643, %v1867
        %v1886 = vld [vmem:[%s584] sm:$0xf]
        %v1887 = vld [vmem:[%s584 + $0x4] sm:$0xf]
        %v1888 = vld [vmem:[%s584 + $0x8] sm:$0x1]
        %v1889 = vld [vmem:[%s584 + $0xc] sm:$0xf]
        %v1890 = vld [vmem:[%s584 + $0x10] sm:$0xf]
        %v1891 = vld [vmem:[%s584 + $0x14] sm:$0x1]
        %v1892 = vld [vmem:[%s584 + $0x18] sm:$0xf]
        %v1893 = vld [vmem:[%s584 + $0x1c] sm:$0xf]
        %v1894 = vld [vmem:[%s584 + $0x20] sm:$0x1]
        %v1895 = vld [vmem:[%s584 + $0x24] sm:$0xf]
        %v1896 = vld [vmem:[%s584 + $0x28] sm:$0xf]
        %v1897 = vld [vmem:[%s584 + $0x2c] sm:$0x1]
        %v1898 = vld [vmem:[%s584 + $0x30] sm:$0xf]
        %v1899 = vld [vmem:[%s584 + $0x34] sm:$0xf]
        %v1900 = vld [vmem:[%s584 + $0x38] sm:$0x1]
        %v1901 = vld [vmem:[%s584 + $0x3c] sm:$0xf]
        %v1902 = vld [vmem:[%s584 + $0x40] sm:$0xf]
        %v1903 = vld [vmem:[%s584 + $0x44] sm:$0x1]
        %v1904 = vld [vmem:[%s584 + $0x48] sm:$0xf]
        %v1905 = vld [vmem:[%s584 + $0x4c] sm:$0xf]
        %v1906 = vld [vmem:[%s584 + $0x50] sm:$0x1]
        %v1907 = vld [vmem:[%s584 + $0x54] sm:$0xf]
        %v1908 = vld [vmem:[%s584 + $0x58] sm:$0xf]
        %v1909 = vld [vmem:[%s584 + $0x5c] sm:$0x1]
        %v1911 = vshrl.u32 %v1886, 16
        %v1913 = vrot.slane %v1911, 4
        %v1914 = vshll.u32 %v1886, 16
        %v1916 = vrot.slane %v1914, 5
        %v1917 = vor.u32 %v1913, %v1916
        %v1918 = vrot.slane %v1917, 4
        %v1920 = vshll.u32 %v1887, 16
        %v1922 = vrot.slane %v1920, 5
        %v1923 = vsel %vm771, %v1918, %v1922
        %v1924 = vshrl.u32 %v1887, 16
        %v1926 = vrot.slane %v1924, 4
        %v1927 = vor.u32 %v1926, %v1922
        %v1928 = vrot.slane %v1927, 4
        %v1930 = vshll.u32 %v1888, 16
        %v1932 = vrot.slane %v1930, 5
        %v1933 = vsel %vm771, %v1928, %v1932
        %v1935 = vshrl.u32 %v1889, 16
        %v1937 = vrot.slane %v1935, 4
        %v1938 = vshll.u32 %v1889, 16
        %v1940 = vrot.slane %v1938, 5
        %v1941 = vor.u32 %v1937, %v1940
        %v1942 = vrot.slane %v1941, 4
        %v1944 = vshll.u32 %v1890, 16
        %v1946 = vrot.slane %v1944, 5
        %v1947 = vsel %vm771, %v1942, %v1946
        %v1948 = vshrl.u32 %v1890, 16
        %v1950 = vrot.slane %v1948, 4
        %v1951 = vor.u32 %v1950, %v1946
        %v1952 = vrot.slane %v1951, 4
        %v1954 = vshll.u32 %v1891, 16
        %v1956 = vrot.slane %v1954, 5
        %v1957 = vsel %vm771, %v1952, %v1956
        %v1959 = vshrl.u32 %v1892, 16
        %v1961 = vrot.slane %v1959, 4
        %v1962 = vshll.u32 %v1892, 16
        %v1964 = vrot.slane %v1962, 5
        %v1965 = vor.u32 %v1961, %v1964
        %v1966 = vrot.slane %v1965, 4
        %v1968 = vshll.u32 %v1893, 16
        %v1970 = vrot.slane %v1968, 5
        %v1971 = vsel %vm771, %v1966, %v1970
        %v1972 = vshrl.u32 %v1893, 16
        %v1974 = vrot.slane %v1972, 4
        %v1975 = vor.u32 %v1974, %v1970
        %v1976 = vrot.slane %v1975, 4
        %v1978 = vshll.u32 %v1894, 16
        %v1980 = vrot.slane %v1978, 5
        %v1981 = vsel %vm771, %v1976, %v1980
        %v1983 = vshrl.u32 %v1895, 16
        %v1985 = vrot.slane %v1983, 4
        %v1986 = vshll.u32 %v1895, 16
        %v1988 = vrot.slane %v1986, 5
        %v1989 = vor.u32 %v1985, %v1988
        %v1990 = vrot.slane %v1989, 4
        %v1992 = vshll.u32 %v1896, 16
        %v1994 = vrot.slane %v1992, 5
        %v1995 = vsel %vm771, %v1990, %v1994
        %v1996 = vshrl.u32 %v1896, 16
        %v1998 = vrot.slane %v1996, 4
        %v1999 = vor.u32 %v1998, %v1994
        %v2000 = vrot.slane %v1999, 4
        %v2002 = vshll.u32 %v1897, 16
        %v2004 = vrot.slane %v2002, 5
        %v2005 = vsel %vm771, %v2000, %v2004
        %v2007 = vshrl.u32 %v1898, 16
        %v2009 = vrot.slane %v2007, 4
        %v2010 = vshll.u32 %v1898, 16
        %v2012 = vrot.slane %v2010, 5
        %v2013 = vor.u32 %v2009, %v2012
        %v2014 = vrot.slane %v2013, 4
        %v2016 = vshll.u32 %v1899, 16
        %v2018 = vrot.slane %v2016, 5
        %v2019 = vsel %vm771, %v2014, %v2018
        %v2020 = vshrl.u32 %v1899, 16
        %v2022 = vrot.slane %v2020, 4
        %v2023 = vor.u32 %v2022, %v2018
        %v2024 = vrot.slane %v2023, 4
        %v2026 = vshll.u32 %v1900, 16
        %v2028 = vrot.slane %v2026, 5
        %v2029 = vsel %vm771, %v2024, %v2028
        %v2031 = vshrl.u32 %v1901, 16
        %v2033 = vrot.slane %v2031, 4
        %v2034 = vshll.u32 %v1901, 16
        %v2036 = vrot.slane %v2034, 5
        %v2037 = vor.u32 %v2033, %v2036
        %v2038 = vrot.slane %v2037, 4
        %v2040 = vshll.u32 %v1902, 16
        %v2042 = vrot.slane %v2040, 5
        %v2043 = vsel %vm771, %v2038, %v2042
        %v2044 = vshrl.u32 %v1902, 16
        %v2046 = vrot.slane %v2044, 4
        %v2047 = vor.u32 %v2046, %v2042
        %v2048 = vrot.slane %v2047, 4
        %v2050 = vshll.u32 %v1903, 16
        %v2052 = vrot.slane %v2050, 5
        %v2053 = vsel %vm771, %v2048, %v2052
        %v2055 = vshrl.u32 %v1904, 16
        %v2057 = vrot.slane %v2055, 4
        %v2058 = vshll.u32 %v1904, 16
        %v2060 = vrot.slane %v2058, 5
        %v2061 = vor.u32 %v2057, %v2060
        %v2062 = vrot.slane %v2061, 4
        %v2064 = vshll.u32 %v1905, 16
        %v2066 = vrot.slane %v2064, 5
        %v2067 = vsel %vm771, %v2062, %v2066
        %v2068 = vshrl.u32 %v1905, 16
        %v2070 = vrot.slane %v2068, 4
        %v2071 = vor.u32 %v2070, %v2066
        %v2072 = vrot.slane %v2071, 4
        %v2074 = vshll.u32 %v1906, 16
        %v2076 = vrot.slane %v2074, 5
        %v2077 = vsel %vm771, %v2072, %v2076
        %v2079 = vshrl.u32 %v1907, 16
        %v2081 = vrot.slane %v2079, 4
        %v2082 = vshll.u32 %v1907, 16
        %v2084 = vrot.slane %v2082, 5
        %v2085 = vor.u32 %v2081, %v2084
        %v2086 = vrot.slane %v2085, 4
        %v2088 = vshll.u32 %v1908, 16
        %v2090 = vrot.slane %v2088, 5
        %v2091 = vsel %vm771, %v2086, %v2090
        %v2092 = vshrl.u32 %v1908, 16
        %v2094 = vrot.slane %v2092, 4
        %v2095 = vor.u32 %v2094, %v2090
        %v2096 = vrot.slane %v2095, 4
        %v2098 = vshll.u32 %v1909, 16
        %v2100 = vrot.slane %v2098, 5
        %v2101 = vsel %vm771, %v2096, %v2100
        %s2102 = scalar_lea.vmem [#allocation8], 256
        %v2103 = vld [vmem:[%s2102] sm:$0xf]
        %v2104 = vld [vmem:[%s2102 + $0x4] sm:$0xf]
        %v2105 = vld [vmem:[%s2102 + $0x8] sm:$0xf]
        %v2106 = vld [vmem:[%s2102 + $0xc] sm:$0xf]
        %v2107 = vld [vmem:[%s2102 + $0x10] sm:$0xf]
        %v2108 = vld [vmem:[%s2102 + $0x14] sm:$0xf]
        %v2109 = vld [vmem:[%s2102 + $0x18] sm:$0xf]
        %v2110 = vld [vmem:[%s2102 + $0x1c] sm:$0xf]
        %v2111 = vld [vmem:[%s2102 + $0x20] sm:$0xf]
        %v2112 = vld [vmem:[%s2102 + $0x24] sm:$0xf]
        %v2113 = vld [vmem:[%s2102 + $0x28] sm:$0xf]
        %v2114 = vld [vmem:[%s2102 + $0x2c] sm:$0xf]
        %v2115 = vld [vmem:[%s2102 + $0x30] sm:$0xf]
        %v2116 = vld [vmem:[%s2102 + $0x34] sm:$0xf]
        %v2117 = vld [vmem:[%s2102 + $0x38] sm:$0xf]
        %v2118 = vld [vmem:[%s2102 + $0x3c] sm:$0xf]
        %v2119 = vunpack.c.l.b16 %v1923
        %v2120 = vunpack.c.l.b16 %v1933
        %v2121 = vunpack.c.l.b16 %v1947
        %v2122 = vunpack.c.l.b16 %v1957
        %v2123 = vunpack.c.l.b16 %v1971
        %v2124 = vunpack.c.l.b16 %v1981
        %v2125 = vunpack.c.l.b16 %v1995
        %v2126 = vunpack.c.l.b16 %v2005
        %v2127 = vunpack.c.l.b16 %v2019
        %v2128 = vunpack.c.l.b16 %v2029
        %v2129 = vunpack.c.l.b16 %v2043
        %v2130 = vunpack.c.l.b16 %v2053
        %v2131 = vunpack.c.l.b16 %v2067
        %v2132 = vunpack.c.l.b16 %v2077
        %v2133 = vunpack.c.l.b16 %v2091
        %v2134 = vunpack.c.l.b16 %v2101
        %v2135 = vpack.c.b16 %v2120, %v2119
        %v2136 = vpack.c.b16 %v2122, %v2121
        %v2137 = vpack.c.b16 %v2124, %v2123
        %v2138 = vpack.c.b16 %v2126, %v2125
        %v2139 = vpack.c.b16 %v2128, %v2127
        %v2140 = vpack.c.b16 %v2130, %v2129
        %v2141 = vpack.c.b16 %v2132, %v2131
        %v2142 = vpack.c.b16 %v2134, %v2133
        %v2167 = vunpack.c.l.b16 %v2103
        %v2168 = vunpack.c.l.b16 %v2104
        %v2169 = vunpack.c.l.b16 %v2105
        %v2170 = vunpack.c.l.b16 %v2106
        %v2171 = vunpack.c.l.b16 %v2107
        %v2172 = vunpack.c.l.b16 %v2108
        %v2173 = vunpack.c.l.b16 %v2109
        %v2174 = vunpack.c.l.b16 %v2110
        %v2175 = vunpack.c.l.b16 %v2111
        %v2176 = vunpack.c.l.b16 %v2112
        %v2177 = vunpack.c.l.b16 %v2113
        %v2178 = vunpack.c.l.b16 %v2114
        %v2179 = vunpack.c.l.b16 %v2115
        %v2180 = vunpack.c.l.b16 %v2116
        %v2181 = vunpack.c.l.b16 %v2117
        %v2182 = vunpack.c.l.b16 %v2118
        %v2183 = vpack.c.b16 %v2168, %v2167
        %v2184 = vpack.c.b16 %v2170, %v2169
        %v2185 = vpack.c.b16 %v2172, %v2171
        %v2186 = vpack.c.b16 %v2174, %v2173
        %v2187 = vpack.c.b16 %v2176, %v2175
        %v2188 = vpack.c.b16 %v2178, %v2177
        %v2189 = vpack.c.b16 %v2180, %v2179
        %v2190 = vpack.c.b16 %v2182, %v2181
        %2199 = vmatprep.subr.bf16.mxu0 0
        %2200 = vmatpush1.bf16.msra.mxu0 %v2190
        %2201 = vmatprep.subr.bf16.mxu0 0
        %2202 = vmatpush1.bf16.msra.mxu0 %v2189
        %2203 = vmatprep.subr.bf16.mxu0 0
        %2204 = vmatpush1.bf16.msra.mxu0 %v2188
        %2205 = vmatprep.subr.bf16.mxu0 0
        %2206 = vmatpush1.bf16.msra.mxu0 %v2187
        %2207 = vmatprep.subr.bf16.mxu0 0
        %2208 = vmatpush1.bf16.msra.mxu0 %v2186
        %2209 = vmatprep.subr.bf16.mxu0 0
        %2210 = vmatpush1.bf16.msra.mxu0 %v2185
        %2211 = vmatprep.subr.bf16.mxu0 0
        %2212 = vmatpush1.bf16.msra.mxu0 %v2184
        %2213 = vmatprep.subr.bf16.mxu0 0
        %2214 = vmatpush1.bf16.msra.mxu0 %v2183
        %2215 = vmatprep.subr.bf16.mxu0 0
        %2216 = vmatpush2.bf16.msra.mxu0 0
        %2217 = vmatprep.subr.bf16.mxu0 0
        %2218 = vmatpush2.bf16.msra.mxu0 0
        %2219 = vmatprep.subr.bf16.mxu0 0
        %2220 = vmatpush2.bf16.msra.mxu0 0
        %2221 = vmatprep.subr.bf16.mxu0 0
        %2222 = vmatpush2.bf16.msra.mxu0 0
        %2223 = vmatprep.subr.bf16.mxu0 0
        %2224 = vmatpush2.bf16.msra.mxu0 0
        %2225 = vmatprep.subr.bf16.mxu0 0
        %2226 = vmatpush2.bf16.msra.mxu0 0
        %2227 = vmatprep.subr.bf16.mxu0 0
        %2228 = vmatpush2.bf16.msra.mxu0 0
        %2229 = vmatprep.subr.bf16.mxu0 0
        %2230 = vmatpush2.bf16.msra.mxu0 0
        %2231 = vmatprep.mubr.bf16.mxu0 0
        %2232 = vmatmul.mubr.bf16.gmra.mxu0 %v2135
        %v2233 = vpop.f32.mrf.mxu0
        %v2234 = vadd.f32 0.0, %v2233
        %v2235 = vpop.f32.mrf.mxu0
        %v2236 = vpop.f32.mrf.mxu0
        %v2237 = vadd.f32 0.0, %v2236
        %v2238 = vpop.f32.mrf.mxu0
        %2239 = vmatprep.mubr.bf16.mxu0 0
        %2240 = vmatmul.mubr.bf16.gmra.mxu0 %v2136
        %v2241 = vpop.f32.mrf.mxu0
        %v2242 = vadd.f32 0.0, %v2241
        %v2243 = vpop.f32.mrf.mxu0
        %v2244 = vpop.f32.mrf.mxu0
        %v2245 = vadd.f32 0.0, %v2244
        %v2246 = vpop.f32.mrf.mxu0
        %2247 = vmatprep.mubr.bf16.mxu0 0
        %2248 = vmatmul.mubr.bf16.gmra.mxu0 %v2137
        %v2249 = vpop.f32.mrf.mxu0
        %v2250 = vadd.f32 0.0, %v2249
        %v2251 = vpop.f32.mrf.mxu0
        %v2252 = vpop.f32.mrf.mxu0
        %v2253 = vadd.f32 0.0, %v2252
        %v2254 = vpop.f32.mrf.mxu0
        %2255 = vmatprep.mubr.bf16.mxu0 0
        %2256 = vmatmul.mubr.bf16.gmra.mxu0 %v2138
        %v2257 = vpop.f32.mrf.mxu0
        %v2258 = vadd.f32 0.0, %v2257
        %v2259 = vpop.f32.mrf.mxu0
        %v2260 = vpop.f32.mrf.mxu0
        %v2261 = vadd.f32 0.0, %v2260
        %v2262 = vpop.f32.mrf.mxu0
        %2263 = vmatprep.mubr.bf16.mxu0 0
        %2264 = vmatmul.mubr.bf16.gmra.mxu0 %v2139
        %v2265 = vpop.f32.mrf.mxu0
        %v2266 = vadd.f32 0.0, %v2265
        %v2267 = vpop.f32.mrf.mxu0
        %v2268 = vpop.f32.mrf.mxu0
        %v2269 = vadd.f32 0.0, %v2268
        %v2270 = vpop.f32.mrf.mxu0
        %2271 = vmatprep.mubr.bf16.mxu0 0
        %2272 = vmatmul.mubr.bf16.gmra.mxu0 %v2140
        %v2273 = vpop.f32.mrf.mxu0
        %v2274 = vadd.f32 0.0, %v2273
        %v2275 = vpop.f32.mrf.mxu0
        %v2276 = vpop.f32.mrf.mxu0
        %v2277 = vadd.f32 0.0, %v2276
        %v2278 = vpop.f32.mrf.mxu0
        %2279 = vmatprep.mubr.bf16.mxu0 0
        %2280 = vmatmul.mubr.bf16.gmra.mxu0 %v2141
        %v2281 = vpop.f32.mrf.mxu0
        %v2282 = vadd.f32 0.0, %v2281
        %v2283 = vpop.f32.mrf.mxu0
        %v2284 = vpop.f32.mrf.mxu0
        %v2285 = vadd.f32 0.0, %v2284
        %v2286 = vpop.f32.mrf.mxu0
        %2287 = vmatprep.mubr.bf16.mxu0 0
        %2288 = vmatmul.mubr.bf16.gmra.mxu0 %v2142
        %v2289 = vpop.f32.mrf.mxu0
        %v2290 = vadd.f32 0.0, %v2289
        %v2291 = vpop.f32.mrf.mxu0
        %v2292 = vpop.f32.mrf.mxu0
        %v2293 = vadd.f32 0.0, %v2292
        %v2294 = vpop.f32.mrf.mxu0
        %2295 = vdwg.mxu0
        %v2296 = vadd.f32 %v1870, %v2234
        %v2297 = vadd.f32 %v1871, %v2237
        %v2298 = vadd.f32 %v1872, %v2242
        %v2299 = vadd.f32 %v1873, %v2245
        %v2300 = vadd.f32 %v1874, %v2250
        %v2301 = vadd.f32 %v1875, %v2253
        %v2302 = vadd.f32 %v1876, %v2258
        %v2303 = vadd.f32 %v1877, %v2261
        %v2304 = vadd.f32 %v1878, %v2266
        %v2305 = vadd.f32 %v1879, %v2269
        %v2306 = vadd.f32 %v1880, %v2274
        %v2307 = vadd.f32 %v1881, %v2277
        %v2308 = vadd.f32 %v1882, %v2282
        %v2309 = vadd.f32 %v1883, %v2285
        %v2310 = vadd.f32 %v1884, %v2290
        %v2311 = vadd.f32 %v1885, %v2293
        %v2312 = vld [vmem:[%s584] sm:$0xe]
        %v2313 = vld [vmem:[%s584 + $0xc] sm:$0xe]
        %v2314 = vld [vmem:[%s584 + $0x18] sm:$0xe]
        %v2315 = vld [vmem:[%s584 + $0x24] sm:$0xe]
        %v2316 = vld [vmem:[%s584 + $0x30] sm:$0xe]
        %v2317 = vld [vmem:[%s584 + $0x3c] sm:$0xe]
        %v2318 = vld [vmem:[%s584 + $0x48] sm:$0xe]
        %v2319 = vld [vmem:[%s584 + $0x54] sm:$0xe]
        %v2344 = vrot.slane %v2312, 5
        %v2345 = vrot.slane %v2344, 4
        %v2346 = vrot.slane %v1887, 5
        %v2347 = vsel %vm1377, %v2345, %v2346
        %v2348 = vrot.slane %v2346, 4
        %v2349 = vrot.slane %v1888, 5
        %v2350 = vsel %vm1377, %v2348, %v2349
        %v2351 = vrot.slane %v2313, 5
        %v2352 = vrot.slane %v2351, 4
        %v2353 = vrot.slane %v1890, 5
        %v2354 = vsel %vm1377, %v2352, %v2353
        %v2355 = vrot.slane %v2353, 4
        %v2356 = vrot.slane %v1891, 5
        %v2357 = vsel %vm1377, %v2355, %v2356
        %v2358 = vrot.slane %v2314, 5
        %v2359 = vrot.slane %v2358, 4
        %v2360 = vrot.slane %v1893, 5
        %v2361 = vsel %vm1377, %v2359, %v2360
        %v2362 = vrot.slane %v2360, 4
        %v2363 = vrot.slane %v1894, 5
        %v2364 = vsel %vm1377, %v2362, %v2363
        %v2365 = vrot.slane %v2315, 5
        %v2366 = vrot.slane %v2365, 4
        %v2367 = vrot.slane %v1896, 5
        %v2368 = vsel %vm1377, %v2366, %v2367
        %v2369 = vrot.slane %v2367, 4
        %v2370 = vrot.slane %v1897, 5
        %v2371 = vsel %vm1377, %v2369, %v2370
        %v2372 = vrot.slane %v2316, 5
        %v2373 = vrot.slane %v2372, 4
        %v2374 = vrot.slane %v1899, 5
        %v2375 = vsel %vm1377, %v2373, %v2374
        %v2376 = vrot.slane %v2374, 4
        %v2377 = vrot.slane %v1900, 5
        %v2378 = vsel %vm1377, %v2376, %v2377
        %v2379 = vrot.slane %v2317, 5
        %v2380 = vrot.slane %v2379, 4
        %v2381 = vrot.slane %v1902, 5
        %v2382 = vsel %vm1377, %v2380, %v2381
        %v2383 = vrot.slane %v2381, 4
        %v2384 = vrot.slane %v1903, 5
        %v2385 = vsel %vm1377, %v2383, %v2384
        %v2386 = vrot.slane %v2318, 5
        %v2387 = vrot.slane %v2386, 4
        %v2388 = vrot.slane %v1905, 5
        %v2389 = vsel %vm1377, %v2387, %v2388
        %v2390 = vrot.slane %v2388, 4
        %v2391 = vrot.slane %v1906, 5
        %v2392 = vsel %vm1377, %v2390, %v2391
        %v2393 = vrot.slane %v2319, 5
        %v2394 = vrot.slane %v2393, 4
        %v2395 = vrot.slane %v1908, 5
        %v2396 = vsel %vm1377, %v2394, %v2395
        %v2397 = vrot.slane %v2395, 4
        %v2398 = vrot.slane %v1909, 5
        %v2399 = vsel %vm1377, %v2397, %v2398
        %s2400 = scalar_lea.vmem [#allocation8], 320
        %v2401 = vld [vmem:[%s2400] sm:$0xf]
        %v2402 = vld [vmem:[%s2400 + $0x4] sm:$0xf]
        %v2403 = vld [vmem:[%s2400 + $0x8] sm:$0xf]
        %v2404 = vld [vmem:[%s2400 + $0xc] sm:$0xf]
        %v2405 = vld [vmem:[%s2400 + $0x10] sm:$0xf]
        %v2406 = vld [vmem:[%s2400 + $0x14] sm:$0xf]
        %v2407 = vld [vmem:[%s2400 + $0x18] sm:$0xf]
        %v2408 = vld [vmem:[%s2400 + $0x1c] sm:$0xf]
        %v2409 = vld [vmem:[%s2400 + $0x20] sm:$0xf]
        %v2410 = vld [vmem:[%s2400 + $0x24] sm:$0xf]
        %v2411 = vld [vmem:[%s2400 + $0x28] sm:$0xf]
        %v2412 = vld [vmem:[%s2400 + $0x2c] sm:$0xf]
        %v2413 = vld [vmem:[%s2400 + $0x30] sm:$0xf]
        %v2414 = vld [vmem:[%s2400 + $0x34] sm:$0xf]
        %v2415 = vld [vmem:[%s2400 + $0x38] sm:$0xf]
        %v2416 = vld [vmem:[%s2400 + $0x3c] sm:$0xf]
        %v2417 = vunpack.c.l.b16 %v2347
        %v2418 = vunpack.c.l.b16 %v2350
        %v2419 = vunpack.c.l.b16 %v2354
        %v2420 = vunpack.c.l.b16 %v2357
        %v2421 = vunpack.c.l.b16 %v2361
        %v2422 = vunpack.c.l.b16 %v2364
        %v2423 = vunpack.c.l.b16 %v2368
        %v2424 = vunpack.c.l.b16 %v2371
        %v2425 = vunpack.c.l.b16 %v2375
        %v2426 = vunpack.c.l.b16 %v2378
        %v2427 = vunpack.c.l.b16 %v2382
        %v2428 = vunpack.c.l.b16 %v2385
        %v2429 = vunpack.c.l.b16 %v2389
        %v2430 = vunpack.c.l.b16 %v2392
        %v2431 = vunpack.c.l.b16 %v2396
        %v2432 = vunpack.c.l.b16 %v2399
        %v2433 = vpack.c.b16 %v2418, %v2417
        %v2434 = vpack.c.b16 %v2420, %v2419
        %v2435 = vpack.c.b16 %v2422, %v2421
        %v2436 = vpack.c.b16 %v2424, %v2423
        %v2437 = vpack.c.b16 %v2426, %v2425
        %v2438 = vpack.c.b16 %v2428, %v2427
        %v2439 = vpack.c.b16 %v2430, %v2429
        %v2440 = vpack.c.b16 %v2432, %v2431
        %v2465 = vunpack.c.l.b16 %v2401
        %v2466 = vunpack.c.l.b16 %v2402
        %v2467 = vunpack.c.l.b16 %v2403
        %v2468 = vunpack.c.l.b16 %v2404
        %v2469 = vunpack.c.l.b16 %v2405
        %v2470 = vunpack.c.l.b16 %v2406
        %v2471 = vunpack.c.l.b16 %v2407
        %v2472 = vunpack.c.l.b16 %v2408
        %v2473 = vunpack.c.l.b16 %v2409
        %v2474 = vunpack.c.l.b16 %v2410
        %v2475 = vunpack.c.l.b16 %v2411
        %v2476 = vunpack.c.l.b16 %v2412
        %v2477 = vunpack.c.l.b16 %v2413
        %v2478 = vunpack.c.l.b16 %v2414
        %v2479 = vunpack.c.l.b16 %v2415
        %v2480 = vunpack.c.l.b16 %v2416
        %v2481 = vpack.c.b16 %v2466, %v2465
        %v2482 = vpack.c.b16 %v2468, %v2467
        %v2483 = vpack.c.b16 %v2470, %v2469
        %v2484 = vpack.c.b16 %v2472, %v2471
        %v2485 = vpack.c.b16 %v2474, %v2473
        %v2486 = vpack.c.b16 %v2476, %v2475
        %v2487 = vpack.c.b16 %v2478, %v2477
        %v2488 = vpack.c.b16 %v2480, %v2479
        %2497 = vmatprep.subr.bf16.mxu0 0
        %2498 = vmatpush1.bf16.msra.mxu0 %v2488
        %2499 = vmatprep.subr.bf16.mxu0 0
        %2500 = vmatpush1.bf16.msra.mxu0 %v2487
        %2501 = vmatprep.subr.bf16.mxu0 0
        %2502 = vmatpush1.bf16.msra.mxu0 %v2486
        %2503 = vmatprep.subr.bf16.mxu0 0
        %2504 = vmatpush1.bf16.msra.mxu0 %v2485
        %2505 = vmatprep.subr.bf16.mxu0 0
        %2506 = vmatpush1.bf16.msra.mxu0 %v2484
        %2507 = vmatprep.subr.bf16.mxu0 0
        %2508 = vmatpush1.bf16.msra.mxu0 %v2483
        %2509 = vmatprep.subr.bf16.mxu0 0
        %2510 = vmatpush1.bf16.msra.mxu0 %v2482
        %2511 = vmatprep.subr.bf16.mxu0 0
        %2512 = vmatpush1.bf16.msra.mxu0 %v2481
        %2513 = vmatprep.subr.bf16.mxu0 0
        %2514 = vmatpush2.bf16.msra.mxu0 0
        %2515 = vmatprep.subr.bf16.mxu0 0
        %2516 = vmatpush2.bf16.msra.mxu0 0
        %2517 = vmatprep.subr.bf16.mxu0 0
        %2518 = vmatpush2.bf16.msra.mxu0 0
        %2519 = vmatprep.subr.bf16.mxu0 0
        %2520 = vmatpush2.bf16.msra.mxu0 0
        %2521 = vmatprep.subr.bf16.mxu0 0
        %2522 = vmatpush2.bf16.msra.mxu0 0
        %2523 = vmatprep.subr.bf16.mxu0 0
        %2524 = vmatpush2.bf16.msra.mxu0 0
        %2525 = vmatprep.subr.bf16.mxu0 0
        %2526 = vmatpush2.bf16.msra.mxu0 0
        %2527 = vmatprep.subr.bf16.mxu0 0
        %2528 = vmatpush2.bf16.msra.mxu0 0
        %2529 = vmatprep.mubr.bf16.mxu0 0
        %2530 = vmatmul.mubr.bf16.gmra.mxu0 %v2433
        %v2531 = vpop.f32.mrf.mxu0
        %v2532 = vadd.f32 0.0, %v2531
        %v2533 = vpop.f32.mrf.mxu0
        %v2534 = vpop.f32.mrf.mxu0
        %v2535 = vadd.f32 0.0, %v2534
        %v2536 = vpop.f32.mrf.mxu0
        %2537 = vmatprep.mubr.bf16.mxu0 0
        %2538 = vmatmul.mubr.bf16.gmra.mxu0 %v2434
        %v2539 = vpop.f32.mrf.mxu0
        %v2540 = vadd.f32 0.0, %v2539
        %v2541 = vpop.f32.mrf.mxu0
        %v2542 = vpop.f32.mrf.mxu0
        %v2543 = vadd.f32 0.0, %v2542
        %v2544 = vpop.f32.mrf.mxu0
        %2545 = vmatprep.mubr.bf16.mxu0 0
        %2546 = vmatmul.mubr.bf16.gmra.mxu0 %v2435
        %v2547 = vpop.f32.mrf.mxu0
        %v2548 = vadd.f32 0.0, %v2547
        %v2549 = vpop.f32.mrf.mxu0
        %v2550 = vpop.f32.mrf.mxu0
        %v2551 = vadd.f32 0.0, %v2550
        %v2552 = vpop.f32.mrf.mxu0
        %2553 = vmatprep.mubr.bf16.mxu0 0
        %2554 = vmatmul.mubr.bf16.gmra.mxu0 %v2436
        %v2555 = vpop.f32.mrf.mxu0
        %v2556 = vadd.f32 0.0, %v2555
        %v2557 = vpop.f32.mrf.mxu0
        %v2558 = vpop.f32.mrf.mxu0
        %v2559 = vadd.f32 0.0, %v2558
        %v2560 = vpop.f32.mrf.mxu0
        %2561 = vmatprep.mubr.bf16.mxu0 0
        %2562 = vmatmul.mubr.bf16.gmra.mxu0 %v2437
        %v2563 = vpop.f32.mrf.mxu0
        %v2564 = vadd.f32 0.0, %v2563
        %v2565 = vpop.f32.mrf.mxu0
        %v2566 = vpop.f32.mrf.mxu0
        %v2567 = vadd.f32 0.0, %v2566
        %v2568 = vpop.f32.mrf.mxu0
        %2569 = vmatprep.mubr.bf16.mxu0 0
        %2570 = vmatmul.mubr.bf16.gmra.mxu0 %v2438
        %v2571 = vpop.f32.mrf.mxu0
        %v2572 = vadd.f32 0.0, %v2571
        %v2573 = vpop.f32.mrf.mxu0
        %v2574 = vpop.f32.mrf.mxu0
        %v2575 = vadd.f32 0.0, %v2574
        %v2576 = vpop.f32.mrf.mxu0
        %2577 = vmatprep.mubr.bf16.mxu0 0
        %2578 = vmatmul.mubr.bf16.gmra.mxu0 %v2439
        %v2579 = vpop.f32.mrf.mxu0
        %v2580 = vadd.f32 0.0, %v2579
        %v2581 = vpop.f32.mrf.mxu0
        %v2582 = vpop.f32.mrf.mxu0
        %v2583 = vadd.f32 0.0, %v2582
        %v2584 = vpop.f32.mrf.mxu0
        %2585 = vmatprep.mubr.bf16.mxu0 0
        %2586 = vmatmul.mubr.bf16.gmra.mxu0 %v2440
        %v2587 = vpop.f32.mrf.mxu0
        %v2588 = vadd.f32 0.0, %v2587
        %v2589 = vpop.f32.mrf.mxu0
        %v2590 = vpop.f32.mrf.mxu0
        %v2591 = vadd.f32 0.0, %v2590
        %v2592 = vpop.f32.mrf.mxu0
        %2593 = vdwg.mxu0
        %v2594 = vadd.f32 %v2296, %v2532
        %v2595 = vadd.f32 %v2297, %v2535
        %v2596 = vadd.f32 %v2298, %v2540
        %v2597 = vadd.f32 %v2299, %v2543
        %v2598 = vadd.f32 %v2300, %v2548
        %v2599 = vadd.f32 %v2301, %v2551
        %v2600 = vadd.f32 %v2302, %v2556
        %v2601 = vadd.f32 %v2303, %v2559
        %v2602 = vadd.f32 %v2304, %v2564
        %v2603 = vadd.f32 %v2305, %v2567
        %v2604 = vadd.f32 %v2306, %v2572
        %v2605 = vadd.f32 %v2307, %v2575
        %v2606 = vadd.f32 %v2308, %v2580
        %v2607 = vadd.f32 %v2309, %v2583
        %v2608 = vadd.f32 %v2310, %v2588
        %v2609 = vadd.f32 %v2311, %v2591
        %s2610 = scalar_lea.vmem [#allocation3], 24
        %v2611 = vld [vmem:[%s2610] sm:$0xf]
        %v2612 = vld [vmem:[%s2610 + $0x4] sm:$0xf]
        %v2613 = vld [vmem:[%s2610 + $0xc] sm:$0xf]
        %v2614 = vld [vmem:[%s2610 + $0x10] sm:$0xf]
        %v2615 = vld [vmem:[%s2610 + $0x18] sm:$0xf]
        %v2616 = vld [vmem:[%s2610 + $0x1c] sm:$0xf]
        %v2617 = vld [vmem:[%s2610 + $0x24] sm:$0xf]
        %v2618 = vld [vmem:[%s2610 + $0x28] sm:$0xf]
        %v2619 = vld [vmem:[%s2610 + $0x30] sm:$0xf]
        %v2620 = vld [vmem:[%s2610 + $0x34] sm:$0xf]
        %v2621 = vld [vmem:[%s2610 + $0x3c] sm:$0xf]
        %v2622 = vld [vmem:[%s2610 + $0x40] sm:$0xf]
        %v2623 = vld [vmem:[%s2610 + $0x48] sm:$0xf]
        %v2624 = vld [vmem:[%s2610 + $0x4c] sm:$0xf]
        %v2625 = vld [vmem:[%s2610 + $0x54] sm:$0xf]
        %v2626 = vld [vmem:[%s2610 + $0x58] sm:$0xf]
        %s2627 = scalar_lea.vmem [#allocation8], 384
        %v2628 = vld [vmem:[%s2627] sm:$0xf]
        %v2629 = vld [vmem:[%s2627 + $0x4] sm:$0xf]
        %v2630 = vld [vmem:[%s2627 + $0x8] sm:$0xf]
        %v2631 = vld [vmem:[%s2627 + $0xc] sm:$0xf]
        %v2632 = vld [vmem:[%s2627 + $0x10] sm:$0xf]
        %v2633 = vld [vmem:[%s2627 + $0x14] sm:$0xf]
        %v2634 = vld [vmem:[%s2627 + $0x18] sm:$0xf]
        %v2635 = vld [vmem:[%s2627 + $0x1c] sm:$0xf]
        %v2636 = vld [vmem:[%s2627 + $0x20] sm:$0xf]
        %v2637 = vld [vmem:[%s2627 + $0x24] sm:$0xf]
        %v2638 = vld [vmem:[%s2627 + $0x28] sm:$0xf]
        %v2639 = vld [vmem:[%s2627 + $0x2c] sm:$0xf]
        %v2640 = vld [vmem:[%s2627 + $0x30] sm:$0xf]
        %v2641 = vld [vmem:[%s2627 + $0x34] sm:$0xf]
        %v2642 = vld [vmem:[%s2627 + $0x38] sm:$0xf]
        %v2643 = vld [vmem:[%s2627 + $0x3c] sm:$0xf]
        %v2660 = vunpack.c.l.b16 %v2611
        %v2661 = vunpack.c.l.b16 %v2612
        %v2662 = vunpack.c.l.b16 %v2613
        %v2663 = vunpack.c.l.b16 %v2614
        %v2664 = vunpack.c.l.b16 %v2615
        %v2665 = vunpack.c.l.b16 %v2616
        %v2666 = vunpack.c.l.b16 %v2617
        %v2667 = vunpack.c.l.b16 %v2618
        %v2668 = vunpack.c.l.b16 %v2619
        %v2669 = vunpack.c.l.b16 %v2620
        %v2670 = vunpack.c.l.b16 %v2621
        %v2671 = vunpack.c.l.b16 %v2622
        %v2672 = vunpack.c.l.b16 %v2623
        %v2673 = vunpack.c.l.b16 %v2624
        %v2674 = vunpack.c.l.b16 %v2625
        %v2675 = vunpack.c.l.b16 %v2626
        %v2676 = vpack.c.b16 %v2661, %v2660
        %v2677 = vpack.c.b16 %v2663, %v2662
        %v2678 = vpack.c.b16 %v2665, %v2664
        %v2679 = vpack.c.b16 %v2667, %v2666
        %v2680 = vpack.c.b16 %v2669, %v2668
        %v2681 = vpack.c.b16 %v2671, %v2670
        %v2682 = vpack.c.b16 %v2673, %v2672
        %v2683 = vpack.c.b16 %v2675, %v2674
        %v2708 = vunpack.c.l.b16 %v2628
        %v2709 = vunpack.c.l.b16 %v2629
        %v2710 = vunpack.c.l.b16 %v2630
        %v2711 = vunpack.c.l.b16 %v2631
        %v2712 = vunpack.c.l.b16 %v2632
        %v2713 = vunpack.c.l.b16 %v2633
        %v2714 = vunpack.c.l.b16 %v2634
        %v2715 = vunpack.c.l.b16 %v2635
        %v2716 = vunpack.c.l.b16 %v2636
        %v2717 = vunpack.c.l.b16 %v2637
        %v2718 = vunpack.c.l.b16 %v2638
        %v2719 = vunpack.c.l.b16 %v2639
        %v2720 = vunpack.c.l.b16 %v2640
        %v2721 = vunpack.c.l.b16 %v2641
        %v2722 = vunpack.c.l.b16 %v2642
        %v2723 = vunpack.c.l.b16 %v2643
        %v2724 = vpack.c.b16 %v2709, %v2708
        %v2725 = vpack.c.b16 %v2711, %v2710
        %v2726 = vpack.c.b16 %v2713, %v2712
        %v2727 = vpack.c.b16 %v2715, %v2714
        %v2728 = vpack.c.b16 %v2717, %v2716
        %v2729 = vpack.c.b16 %v2719, %v2718
        %v2730 = vpack.c.b16 %v2721, %v2720
        %v2731 = vpack.c.b16 %v2723, %v2722
        %2740 = vmatprep.subr.bf16.mxu0 0
        %2741 = vmatpush1.bf16.msra.mxu0 %v2731
        %2742 = vmatprep.subr.bf16.mxu0 0
        %2743 = vmatpush1.bf16.msra.mxu0 %v2730
        %2744 = vmatprep.subr.bf16.mxu0 0
        %2745 = vmatpush1.bf16.msra.mxu0 %v2729
        %2746 = vmatprep.subr.bf16.mxu0 0
        %2747 = vmatpush1.bf16.msra.mxu0 %v2728
        %2748 = vmatprep.subr.bf16.mxu0 0
        %2749 = vmatpush1.bf16.msra.mxu0 %v2727
        %2750 = vmatprep.subr.bf16.mxu0 0
        %2751 = vmatpush1.bf16.msra.mxu0 %v2726
        %2752 = vmatprep.subr.bf16.mxu0 0
        %2753 = vmatpush1.bf16.msra.mxu0 %v2725
        %2754 = vmatprep.subr.bf16.mxu0 0
        %2755 = vmatpush1.bf16.msra.mxu0 %v2724
        %2756 = vmatprep.subr.bf16.mxu0 0
        %2757 = vmatpush2.bf16.msra.mxu0 0
        %2758 = vmatprep.subr.bf16.mxu0 0
        %2759 = vmatpush2.bf16.msra.mxu0 0
        %2760 = vmatprep.subr.bf16.mxu0 0
        %2761 = vmatpush2.bf16.msra.mxu0 0
        %2762 = vmatprep.subr.bf16.mxu0 0
        %2763 = vmatpush2.bf16.msra.mxu0 0
        %2764 = vmatprep.subr.bf16.mxu0 0
        %2765 = vmatpush2.bf16.msra.mxu0 0
        %2766 = vmatprep.subr.bf16.mxu0 0
        %2767 = vmatpush2.bf16.msra.mxu0 0
        %2768 = vmatprep.subr.bf16.mxu0 0
        %2769 = vmatpush2.bf16.msra.mxu0 0
        %2770 = vmatprep.subr.bf16.mxu0 0
        %2771 = vmatpush2.bf16.msra.mxu0 0
        %2772 = vmatprep.mubr.bf16.mxu0 0
        %2773 = vmatmul.mubr.bf16.gmra.mxu0 %v2676
        %v2774 = vpop.f32.mrf.mxu0
        %v2775 = vadd.f32 0.0, %v2774
        %v2776 = vpop.f32.mrf.mxu0
        %v2777 = vpop.f32.mrf.mxu0
        %v2778 = vadd.f32 0.0, %v2777
        %v2779 = vpop.f32.mrf.mxu0
        %2780 = vmatprep.mubr.bf16.mxu0 0
        %2781 = vmatmul.mubr.bf16.gmra.mxu0 %v2677
        %v2782 = vpop.f32.mrf.mxu0
        %v2783 = vadd.f32 0.0, %v2782
        %v2784 = vpop.f32.mrf.mxu0
        %v2785 = vpop.f32.mrf.mxu0
        %v2786 = vadd.f32 0.0, %v2785
        %v2787 = vpop.f32.mrf.mxu0
        %2788 = vmatprep.mubr.bf16.mxu0 0
        %2789 = vmatmul.mubr.bf16.gmra.mxu0 %v2678
        %v2790 = vpop.f32.mrf.mxu0
        %v2791 = vadd.f32 0.0, %v2790
        %v2792 = vpop.f32.mrf.mxu0
        %v2793 = vpop.f32.mrf.mxu0
        %v2794 = vadd.f32 0.0, %v2793
        %v2795 = vpop.f32.mrf.mxu0
        %2796 = vmatprep.mubr.bf16.mxu0 0
        %2797 = vmatmul.mubr.bf16.gmra.mxu0 %v2679
        %v2798 = vpop.f32.mrf.mxu0
        %v2799 = vadd.f32 0.0, %v2798
        %v2800 = vpop.f32.mrf.mxu0
        %v2801 = vpop.f32.mrf.mxu0
        %v2802 = vadd.f32 0.0, %v2801
        %v2803 = vpop.f32.mrf.mxu0
        %2804 = vmatprep.mubr.bf16.mxu0 0
        %2805 = vmatmul.mubr.bf16.gmra.mxu0 %v2680
        %v2806 = vpop.f32.mrf.mxu0
        %v2807 = vadd.f32 0.0, %v2806
        %v2808 = vpop.f32.mrf.mxu0
        %v2809 = vpop.f32.mrf.mxu0
        %v2810 = vadd.f32 0.0, %v2809
        %v2811 = vpop.f32.mrf.mxu0
        %2812 = vmatprep.mubr.bf16.mxu0 0
        %2813 = vmatmul.mubr.bf16.gmra.mxu0 %v2681
        %v2814 = vpop.f32.mrf.mxu0
        %v2815 = vadd.f32 0.0, %v2814
        %v2816 = vpop.f32.mrf.mxu0
        %v2817 = vpop.f32.mrf.mxu0
        %v2818 = vadd.f32 0.0, %v2817
        %v2819 = vpop.f32.mrf.mxu0
        %2820 = vmatprep.mubr.bf16.mxu0 0
        %2821 = vmatmul.mubr.bf16.gmra.mxu0 %v2682
        %v2822 = vpop.f32.mrf.mxu0
        %v2823 = vadd.f32 0.0, %v2822
        %v2824 = vpop.f32.mrf.mxu0
        %v2825 = vpop.f32.mrf.mxu0
        %v2826 = vadd.f32 0.0, %v2825
        %v2827 = vpop.f32.mrf.mxu0
        %2828 = vmatprep.mubr.bf16.mxu0 0
        %2829 = vmatmul.mubr.bf16.gmra.mxu0 %v2683
        %v2830 = vpop.f32.mrf.mxu0
        %v2831 = vadd.f32 0.0, %v2830
        %v2832 = vpop.f32.mrf.mxu0
        %v2833 = vpop.f32.mrf.mxu0
        %v2834 = vadd.f32 0.0, %v2833
        %v2835 = vpop.f32.mrf.mxu0
        %2836 = vdwg.mxu0
        %v2837 = vadd.f32 %v2594, %v2775
        %v2838 = vadd.f32 %v2595, %v2778
        %v2839 = vadd.f32 %v2596, %v2783
        %v2840 = vadd.f32 %v2597, %v2786
        %v2841 = vadd.f32 %v2598, %v2791
        %v2842 = vadd.f32 %v2599, %v2794
        %v2843 = vadd.f32 %v2600, %v2799
        %v2844 = vadd.f32 %v2601, %v2802
        %v2845 = vadd.f32 %v2602, %v2807
        %v2846 = vadd.f32 %v2603, %v2810
        %v2847 = vadd.f32 %v2604, %v2815
        %v2848 = vadd.f32 %v2605, %v2818
        %v2849 = vadd.f32 %v2606, %v2823
        %v2850 = vadd.f32 %v2607, %v2826
        %v2851 = vadd.f32 %v2608, %v2831
        %v2852 = vadd.f32 %v2609, %v2834
        %v2853 = vld [vmem:[%s2610] sm:$0xf]
        %v2854 = vld [vmem:[%s2610 + $0x4] sm:$0xf]
        %v2855 = vld [vmem:[%s2610 + $0x8] sm:$0x1]
        %v2856 = vld [vmem:[%s2610 + $0xc] sm:$0xf]
        %v2857 = vld [vmem:[%s2610 + $0x10] sm:$0xf]
        %v2858 = vld [vmem:[%s2610 + $0x14] sm:$0x1]
        %v2859 = vld [vmem:[%s2610 + $0x18] sm:$0xf]
        %v2860 = vld [vmem:[%s2610 + $0x1c] sm:$0xf]
        %v2861 = vld [vmem:[%s2610 + $0x20] sm:$0x1]
        %v2862 = vld [vmem:[%s2610 + $0x24] sm:$0xf]
        %v2863 = vld [vmem:[%s2610 + $0x28] sm:$0xf]
        %v2864 = vld [vmem:[%s2610 + $0x2c] sm:$0x1]
        %v2865 = vld [vmem:[%s2610 + $0x30] sm:$0xf]
        %v2866 = vld [vmem:[%s2610 + $0x34] sm:$0xf]
        %v2867 = vld [vmem:[%s2610 + $0x38] sm:$0x1]
        %v2868 = vld [vmem:[%s2610 + $0x3c] sm:$0xf]
        %v2869 = vld [vmem:[%s2610 + $0x40] sm:$0xf]
        %v2870 = vld [vmem:[%s2610 + $0x44] sm:$0x1]
        %v2871 = vld [vmem:[%s2610 + $0x48] sm:$0xf]
        %v2872 = vld [vmem:[%s2610 + $0x4c] sm:$0xf]
        %v2873 = vld [vmem:[%s2610 + $0x50] sm:$0x1]
        %v2874 = vld [vmem:[%s2610 + $0x54] sm:$0xf]
        %v2875 = vld [vmem:[%s2610 + $0x58] sm:$0xf]
        %v2876 = vld [vmem:[%s2610 + $0x5c] sm:$0x1]
        %v2878 = vshrl.u32 %v2853, 16
        %v2880 = vrot.slane %v2878, 4
        %v2881 = vshll.u32 %v2853, 16
        %v2883 = vrot.slane %v2881, 5
        %v2884 = vor.u32 %v2880, %v2883
        %v2885 = vrot.slane %v2884, 4
        %v2887 = vshll.u32 %v2854, 16
        %v2889 = vrot.slane %v2887, 5
        %v2890 = vsel %vm771, %v2885, %v2889
        %v2891 = vshrl.u32 %v2854, 16
        %v2893 = vrot.slane %v2891, 4
        %v2894 = vor.u32 %v2893, %v2889
        %v2895 = vrot.slane %v2894, 4
        %v2897 = vshll.u32 %v2855, 16
        %v2899 = vrot.slane %v2897, 5
        %v2900 = vsel %vm771, %v2895, %v2899
        %v2902 = vshrl.u32 %v2856, 16
        %v2904 = vrot.slane %v2902, 4
        %v2905 = vshll.u32 %v2856, 16
        %v2907 = vrot.slane %v2905, 5
        %v2908 = vor.u32 %v2904, %v2907
        %v2909 = vrot.slane %v2908, 4
        %v2911 = vshll.u32 %v2857, 16
        %v2913 = vrot.slane %v2911, 5
        %v2914 = vsel %vm771, %v2909, %v2913
        %v2915 = vshrl.u32 %v2857, 16
        %v2917 = vrot.slane %v2915, 4
        %v2918 = vor.u32 %v2917, %v2913
        %v2919 = vrot.slane %v2918, 4
        %v2921 = vshll.u32 %v2858, 16
        %v2923 = vrot.slane %v2921, 5
        %v2924 = vsel %vm771, %v2919, %v2923
        %v2926 = vshrl.u32 %v2859, 16
        %v2928 = vrot.slane %v2926, 4
        %v2929 = vshll.u32 %v2859, 16
        %v2931 = vrot.slane %v2929, 5
        %v2932 = vor.u32 %v2928, %v2931
        %v2933 = vrot.slane %v2932, 4
        %v2935 = vshll.u32 %v2860, 16
        %v2937 = vrot.slane %v2935, 5
        %v2938 = vsel %vm771, %v2933, %v2937
        %v2939 = vshrl.u32 %v2860, 16
        %v2941 = vrot.slane %v2939, 4
        %v2942 = vor.u32 %v2941, %v2937
        %v2943 = vrot.slane %v2942, 4
        %v2945 = vshll.u32 %v2861, 16
        %v2947 = vrot.slane %v2945, 5
        %v2948 = vsel %vm771, %v2943, %v2947
        %v2950 = vshrl.u32 %v2862, 16
        %v2952 = vrot.slane %v2950, 4
        %v2953 = vshll.u32 %v2862, 16
        %v2955 = vrot.slane %v2953, 5
        %v2956 = vor.u32 %v2952, %v2955
        %v2957 = vrot.slane %v2956, 4
        %v2959 = vshll.u32 %v2863, 16
        %v2961 = vrot.slane %v2959, 5
        %v2962 = vsel %vm771, %v2957, %v2961
        %v2963 = vshrl.u32 %v2863, 16
        %v2965 = vrot.slane %v2963, 4
        %v2966 = vor.u32 %v2965, %v2961
        %v2967 = vrot.slane %v2966, 4
        %v2969 = vshll.u32 %v2864, 16
        %v2971 = vrot.slane %v2969, 5
        %v2972 = vsel %vm771, %v2967, %v2971
        %v2974 = vshrl.u32 %v2865, 16
        %v2976 = vrot.slane %v2974, 4
        %v2977 = vshll.u32 %v2865, 16
        %v2979 = vrot.slane %v2977, 5
        %v2980 = vor.u32 %v2976, %v2979
        %v2981 = vrot.slane %v2980, 4
        %v2983 = vshll.u32 %v2866, 16
        %v2985 = vrot.slane %v2983, 5
        %v2986 = vsel %vm771, %v2981, %v2985
        %v2987 = vshrl.u32 %v2866, 16
        %v2989 = vrot.slane %v2987, 4
        %v2990 = vor.u32 %v2989, %v2985
        %v2991 = vrot.slane %v2990, 4
        %v2993 = vshll.u32 %v2867, 16
        %v2995 = vrot.slane %v2993, 5
        %v2996 = vsel %vm771, %v2991, %v2995
        %v2998 = vshrl.u32 %v2868, 16
        %v3000 = vrot.slane %v2998, 4
        %v3001 = vshll.u32 %v2868, 16
        %v3003 = vrot.slane %v3001, 5
        %v3004 = vor.u32 %v3000, %v3003
        %v3005 = vrot.slane %v3004, 4
        %v3007 = vshll.u32 %v2869, 16
        %v3009 = vrot.slane %v3007, 5
        %v3010 = vsel %vm771, %v3005, %v3009
        %v3011 = vshrl.u32 %v2869, 16
        %v3013 = vrot.slane %v3011, 4
        %v3014 = vor.u32 %v3013, %v3009
        %v3015 = vrot.slane %v3014, 4
        %v3017 = vshll.u32 %v2870, 16
        %v3019 = vrot.slane %v3017, 5
        %v3020 = vsel %vm771, %v3015, %v3019
        %v3022 = vshrl.u32 %v2871, 16
        %v3024 = vrot.slane %v3022, 4
        %v3025 = vshll.u32 %v2871, 16
        %v3027 = vrot.slane %v3025, 5
        %v3028 = vor.u32 %v3024, %v3027
        %v3029 = vrot.slane %v3028, 4
        %v3031 = vshll.u32 %v2872, 16
        %v3033 = vrot.slane %v3031, 5
        %v3034 = vsel %vm771, %v3029, %v3033
        %v3035 = vshrl.u32 %v2872, 16
        %v3037 = vrot.slane %v3035, 4
        %v3038 = vor.u32 %v3037, %v3033
        %v3039 = vrot.slane %v3038, 4
        %v3041 = vshll.u32 %v2873, 16
        %v3043 = vrot.slane %v3041, 5
        %v3044 = vsel %vm771, %v3039, %v3043
        %v3046 = vshrl.u32 %v2874, 16
        %v3048 = vrot.slane %v3046, 4
        %v3049 = vshll.u32 %v2874, 16
        %v3051 = vrot.slane %v3049, 5
        %v3052 = vor.u32 %v3048, %v3051
        %v3053 = vrot.slane %v3052, 4
        %v3055 = vshll.u32 %v2875, 16
        %v3057 = vrot.slane %v3055, 5
        %v3058 = vsel %vm771, %v3053, %v3057
        %v3059 = vshrl.u32 %v2875, 16
        %v3061 = vrot.slane %v3059, 4
        %v3062 = vor.u32 %v3061, %v3057
        %v3063 = vrot.slane %v3062, 4
        %v3065 = vshll.u32 %v2876, 16
        %v3067 = vrot.slane %v3065, 5
        %v3068 = vsel %vm771, %v3063, %v3067
        %s3069 = scalar_lea.vmem [#allocation8], 448
        %v3070 = vld [vmem:[%s3069] sm:$0xf]
        %v3071 = vld [vmem:[%s3069 + $0x4] sm:$0xf]
        %v3072 = vld [vmem:[%s3069 + $0x8] sm:$0xf]
        %v3073 = vld [vmem:[%s3069 + $0xc] sm:$0xf]
        %v3074 = vld [vmem:[%s3069 + $0x10] sm:$0xf]
        %v3075 = vld [vmem:[%s3069 + $0x14] sm:$0xf]
        %v3076 = vld [vmem:[%s3069 + $0x18] sm:$0xf]
        %v3077 = vld [vmem:[%s3069 + $0x1c] sm:$0xf]
        %v3078 = vld [vmem:[%s3069 + $0x20] sm:$0xf]
        %v3079 = vld [vmem:[%s3069 + $0x24] sm:$0xf]
        %v3080 = vld [vmem:[%s3069 + $0x28] sm:$0xf]
        %v3081 = vld [vmem:[%s3069 + $0x2c] sm:$0xf]
        %v3082 = vld [vmem:[%s3069 + $0x30] sm:$0xf]
        %v3083 = vld [vmem:[%s3069 + $0x34] sm:$0xf]
        %v3084 = vld [vmem:[%s3069 + $0x38] sm:$0xf]
        %v3085 = vld [vmem:[%s3069 + $0x3c] sm:$0xf]
        %v3086 = vunpack.c.l.b16 %v2890
        %v3087 = vunpack.c.l.b16 %v2900
        %v3088 = vunpack.c.l.b16 %v2914
        %v3089 = vunpack.c.l.b16 %v2924
        %v3090 = vunpack.c.l.b16 %v2938
        %v3091 = vunpack.c.l.b16 %v2948
        %v3092 = vunpack.c.l.b16 %v2962
        %v3093 = vunpack.c.l.b16 %v2972
        %v3094 = vunpack.c.l.b16 %v2986
        %v3095 = vunpack.c.l.b16 %v2996
        %v3096 = vunpack.c.l.b16 %v3010
        %v3097 = vunpack.c.l.b16 %v3020
        %v3098 = vunpack.c.l.b16 %v3034
        %v3099 = vunpack.c.l.b16 %v3044
        %v3100 = vunpack.c.l.b16 %v3058
        %v3101 = vunpack.c.l.b16 %v3068
        %v3102 = vpack.c.b16 %v3087, %v3086
        %v3103 = vpack.c.b16 %v3089, %v3088
        %v3104 = vpack.c.b16 %v3091, %v3090
        %v3105 = vpack.c.b16 %v3093, %v3092
        %v3106 = vpack.c.b16 %v3095, %v3094
        %v3107 = vpack.c.b16 %v3097, %v3096
        %v3108 = vpack.c.b16 %v3099, %v3098
        %v3109 = vpack.c.b16 %v3101, %v3100
        %v3134 = vunpack.c.l.b16 %v3070
        %v3135 = vunpack.c.l.b16 %v3071
        %v3136 = vunpack.c.l.b16 %v3072
        %v3137 = vunpack.c.l.b16 %v3073
        %v3138 = vunpack.c.l.b16 %v3074
        %v3139 = vunpack.c.l.b16 %v3075
        %v3140 = vunpack.c.l.b16 %v3076
        %v3141 = vunpack.c.l.b16 %v3077
        %v3142 = vunpack.c.l.b16 %v3078
        %v3143 = vunpack.c.l.b16 %v3079
        %v3144 = vunpack.c.l.b16 %v3080
        %v3145 = vunpack.c.l.b16 %v3081
        %v3146 = vunpack.c.l.b16 %v3082
        %v3147 = vunpack.c.l.b16 %v3083
        %v3148 = vunpack.c.l.b16 %v3084
        %v3149 = vunpack.c.l.b16 %v3085
        %v3150 = vpack.c.b16 %v3135, %v3134
        %v3151 = vpack.c.b16 %v3137, %v3136
        %v3152 = vpack.c.b16 %v3139, %v3138
        %v3153 = vpack.c.b16 %v3141, %v3140
        %v3154 = vpack.c.b16 %v3143, %v3142
        %v3155 = vpack.c.b16 %v3145, %v3144
        %v3156 = vpack.c.b16 %v3147, %v3146
        %v3157 = vpack.c.b16 %v3149, %v3148
        %3166 = vmatprep.subr.bf16.mxu0 0
        %3167 = vmatpush1.bf16.msra.mxu0 %v3157
        %3168 = vmatprep.subr.bf16.mxu0 0
        %3169 = vmatpush1.bf16.msra.mxu0 %v3156
        %3170 = vmatprep.subr.bf16.mxu0 0
        %3171 = vmatpush1.bf16.msra.mxu0 %v3155
        %3172 = vmatprep.subr.bf16.mxu0 0
        %3173 = vmatpush1.bf16.msra.mxu0 %v3154
        %3174 = vmatprep.subr.bf16.mxu0 0
        %3175 = vmatpush1.bf16.msra.mxu0 %v3153
        %3176 = vmatprep.subr.bf16.mxu0 0
        %3177 = vmatpush1.bf16.msra.mxu0 %v3152
        %3178 = vmatprep.subr.bf16.mxu0 0
        %3179 = vmatpush1.bf16.msra.mxu0 %v3151
        %3180 = vmatprep.subr.bf16.mxu0 0
        %3181 = vmatpush1.bf16.msra.mxu0 %v3150
        %3182 = vmatprep.subr.bf16.mxu0 0
        %3183 = vmatpush2.bf16.msra.mxu0 0
        %3184 = vmatprep.subr.bf16.mxu0 0
        %3185 = vmatpush2.bf16.msra.mxu0 0
        %3186 = vmatprep.subr.bf16.mxu0 0
        %3187 = vmatpush2.bf16.msra.mxu0 0
        %3188 = vmatprep.subr.bf16.mxu0 0
        %3189 = vmatpush2.bf16.msra.mxu0 0
        %3190 = vmatprep.subr.bf16.mxu0 0
        %3191 = vmatpush2.bf16.msra.mxu0 0
        %3192 = vmatprep.subr.bf16.mxu0 0
        %3193 = vmatpush2.bf16.msra.mxu0 0
        %3194 = vmatprep.subr.bf16.mxu0 0
        %3195 = vmatpush2.bf16.msra.mxu0 0
        %3196 = vmatprep.subr.bf16.mxu0 0
        %3197 = vmatpush2.bf16.msra.mxu0 0
        %3198 = vmatprep.mubr.bf16.mxu0 0
        %3199 = vmatmul.mubr.bf16.gmra.mxu0 %v3102
        %v3200 = vpop.f32.mrf.mxu0
        %v3201 = vadd.f32 0.0, %v3200
        %v3202 = vpop.f32.mrf.mxu0
        %v3203 = vpop.f32.mrf.mxu0
        %v3204 = vadd.f32 0.0, %v3203
        %v3205 = vpop.f32.mrf.mxu0
        %3206 = vmatprep.mubr.bf16.mxu0 0
        %3207 = vmatmul.mubr.bf16.gmra.mxu0 %v3103
        %v3208 = vpop.f32.mrf.mxu0
        %v3209 = vadd.f32 0.0, %v3208
        %v3210 = vpop.f32.mrf.mxu0
        %v3211 = vpop.f32.mrf.mxu0
        %v3212 = vadd.f32 0.0, %v3211
        %v3213 = vpop.f32.mrf.mxu0
        %3214 = vmatprep.mubr.bf16.mxu0 0
        %3215 = vmatmul.mubr.bf16.gmra.mxu0 %v3104
        %v3216 = vpop.f32.mrf.mxu0
        %v3217 = vadd.f32 0.0, %v3216
        %v3218 = vpop.f32.mrf.mxu0
        %v3219 = vpop.f32.mrf.mxu0
        %v3220 = vadd.f32 0.0, %v3219
        %v3221 = vpop.f32.mrf.mxu0
        %3222 = vmatprep.mubr.bf16.mxu0 0
        %3223 = vmatmul.mubr.bf16.gmra.mxu0 %v3105
        %v3224 = vpop.f32.mrf.mxu0
        %v3225 = vadd.f32 0.0, %v3224
        %v3226 = vpop.f32.mrf.mxu0
        %v3227 = vpop.f32.mrf.mxu0
        %v3228 = vadd.f32 0.0, %v3227
        %v3229 = vpop.f32.mrf.mxu0
        %3230 = vmatprep.mubr.bf16.mxu0 0
        %3231 = vmatmul.mubr.bf16.gmra.mxu0 %v3106
        %v3232 = vpop.f32.mrf.mxu0
        %v3233 = vadd.f32 0.0, %v3232
        %v3234 = vpop.f32.mrf.mxu0
        %v3235 = vpop.f32.mrf.mxu0
        %v3236 = vadd.f32 0.0, %v3235
        %v3237 = vpop.f32.mrf.mxu0
        %3238 = vmatprep.mubr.bf16.mxu0 0
        %3239 = vmatmul.mubr.bf16.gmra.mxu0 %v3107
        %v3240 = vpop.f32.mrf.mxu0
        %v3241 = vadd.f32 0.0, %v3240
        %v3242 = vpop.f32.mrf.mxu0
        %v3243 = vpop.f32.mrf.mxu0
        %v3244 = vadd.f32 0.0, %v3243
        %v3245 = vpop.f32.mrf.mxu0
        %3246 = vmatprep.mubr.bf16.mxu0 0
        %3247 = vmatmul.mubr.bf16.gmra.mxu0 %v3108
        %v3248 = vpop.f32.mrf.mxu0
        %v3249 = vadd.f32 0.0, %v3248
        %v3250 = vpop.f32.mrf.mxu0
        %v3251 = vpop.f32.mrf.mxu0
        %v3252 = vadd.f32 0.0, %v3251
        %v3253 = vpop.f32.mrf.mxu0
        %3254 = vmatprep.mubr.bf16.mxu0 0
        %3255 = vmatmul.mubr.bf16.gmra.mxu0 %v3109
        %v3256 = vpop.f32.mrf.mxu0
        %v3257 = vadd.f32 0.0, %v3256
        %v3258 = vpop.f32.mrf.mxu0
        %v3259 = vpop.f32.mrf.mxu0
        %v3260 = vadd.f32 0.0, %v3259
        %v3261 = vpop.f32.mrf.mxu0
        %3262 = vdwg.mxu0
        %v3263 = vadd.f32 %v2837, %v3201
        %v3264 = vadd.f32 %v2838, %v3204
        %v3265 = vadd.f32 %v2839, %v3209
        %v3266 = vadd.f32 %v2840, %v3212
        %v3267 = vadd.f32 %v2841, %v3217
        %v3268 = vadd.f32 %v2842, %v3220
        %v3269 = vadd.f32 %v2843, %v3225
        %v3270 = vadd.f32 %v2844, %v3228
        %v3271 = vadd.f32 %v2845, %v3233
        %v3272 = vadd.f32 %v2846, %v3236
        %v3273 = vadd.f32 %v2847, %v3241
        %v3274 = vadd.f32 %v2848, %v3244
        %v3275 = vadd.f32 %v2849, %v3249
        %v3276 = vadd.f32 %v2850, %v3252
        %v3277 = vadd.f32 %v2851, %v3257
        %v3278 = vadd.f32 %v2852, %v3260
        %v3279 = vld [vmem:[%s2610] sm:$0xe]
        %v3280 = vld [vmem:[%s2610 + $0xc] sm:$0xe]
        %v3281 = vld [vmem:[%s2610 + $0x18] sm:$0xe]
        %v3282 = vld [vmem:[%s2610 + $0x24] sm:$0xe]
        %v3283 = vld [vmem:[%s2610 + $0x30] sm:$0xe]
        %v3284 = vld [vmem:[%s2610 + $0x3c] sm:$0xe]
        %v3285 = vld [vmem:[%s2610 + $0x48] sm:$0xe]
        %v3286 = vld [vmem:[%s2610 + $0x54] sm:$0xe]
        %v3311 = vrot.slane %v3279, 5
        %v3312 = vrot.slane %v3311, 4
        %v3313 = vrot.slane %v2854, 5
        %v3314 = vsel %vm1377, %v3312, %v3313
        %v3315 = vrot.slane %v3313, 4
        %v3316 = vrot.slane %v2855, 5
        %v3317 = vsel %vm1377, %v3315, %v3316
        %v3318 = vrot.slane %v3280, 5
        %v3319 = vrot.slane %v3318, 4
        %v3320 = vrot.slane %v2857, 5
        %v3321 = vsel %vm1377, %v3319, %v3320
        %v3322 = vrot.slane %v3320, 4
        %v3323 = vrot.slane %v2858, 5
        %v3324 = vsel %vm1377, %v3322, %v3323
        %v3325 = vrot.slane %v3281, 5
        %v3326 = vrot.slane %v3325, 4
        %v3327 = vrot.slane %v2860, 5
        %v3328 = vsel %vm1377, %v3326, %v3327
        %v3329 = vrot.slane %v3327, 4
        %v3330 = vrot.slane %v2861, 5
        %v3331 = vsel %vm1377, %v3329, %v3330
        %v3332 = vrot.slane %v3282, 5
        %v3333 = vrot.slane %v3332, 4
        %v3334 = vrot.slane %v2863, 5
        %v3335 = vsel %vm1377, %v3333, %v3334
        %v3336 = vrot.slane %v3334, 4
        %v3337 = vrot.slane %v2864, 5
        %v3338 = vsel %vm1377, %v3336, %v3337
        %v3339 = vrot.slane %v3283, 5
        %v3340 = vrot.slane %v3339, 4
        %v3341 = vrot.slane %v2866, 5
        %v3342 = vsel %vm1377, %v3340, %v3341
        %v3343 = vrot.slane %v3341, 4
        %v3344 = vrot.slane %v2867, 5
        %v3345 = vsel %vm1377, %v3343, %v3344
        %v3346 = vrot.slane %v3284, 5
        %v3347 = vrot.slane %v3346, 4
        %v3348 = vrot.slane %v2869, 5
        %v3349 = vsel %vm1377, %v3347, %v3348
        %v3350 = vrot.slane %v3348, 4
        %v3351 = vrot.slane %v2870, 5
        %v3352 = vsel %vm1377, %v3350, %v3351
        %v3353 = vrot.slane %v3285, 5
        %v3354 = vrot.slane %v3353, 4
        %v3355 = vrot.slane %v2872, 5
        %v3356 = vsel %vm1377, %v3354, %v3355
        %v3357 = vrot.slane %v3355, 4
        %v3358 = vrot.slane %v2873, 5
        %v3359 = vsel %vm1377, %v3357, %v3358
        %v3360 = vrot.slane %v3286, 5
        %v3361 = vrot.slane %v3360, 4
        %v3362 = vrot.slane %v2875, 5
        %v3363 = vsel %vm1377, %v3361, %v3362
        %v3364 = vrot.slane %v3362, 4
        %v3365 = vrot.slane %v2876, 5
        %v3366 = vsel %vm1377, %v3364, %v3365
        %s3367 = scalar_lea.vmem [#allocation8], 512
        %v3368 = vld [vmem:[%s3367] sm:$0xf]
        %v3369 = vld [vmem:[%s3367 + $0x4] sm:$0xf]
        %v3370 = vld [vmem:[%s3367 + $0x8] sm:$0xf]
        %v3371 = vld [vmem:[%s3367 + $0xc] sm:$0xf]
        %v3372 = vld [vmem:[%s3367 + $0x10] sm:$0xf]
        %v3373 = vld [vmem:[%s3367 + $0x14] sm:$0xf]
        %v3374 = vld [vmem:[%s3367 + $0x18] sm:$0xf]
        %v3375 = vld [vmem:[%s3367 + $0x1c] sm:$0xf]
        %v3376 = vld [vmem:[%s3367 + $0x20] sm:$0xf]
        %v3377 = vld [vmem:[%s3367 + $0x24] sm:$0xf]
        %v3378 = vld [vmem:[%s3367 + $0x28] sm:$0xf]
        %v3379 = vld [vmem:[%s3367 + $0x2c] sm:$0xf]
        %v3380 = vld [vmem:[%s3367 + $0x30] sm:$0xf]
        %v3381 = vld [vmem:[%s3367 + $0x34] sm:$0xf]
        %v3382 = vld [vmem:[%s3367 + $0x38] sm:$0xf]
        %v3383 = vld [vmem:[%s3367 + $0x3c] sm:$0xf]
        %v3384 = vunpack.c.l.b16 %v3314
        %v3385 = vunpack.c.l.b16 %v3317
        %v3386 = vunpack.c.l.b16 %v3321
        %v3387 = vunpack.c.l.b16 %v3324
        %v3388 = vunpack.c.l.b16 %v3328
        %v3389 = vunpack.c.l.b16 %v3331
        %v3390 = vunpack.c.l.b16 %v3335
        %v3391 = vunpack.c.l.b16 %v3338
        %v3392 = vunpack.c.l.b16 %v3342
        %v3393 = vunpack.c.l.b16 %v3345
        %v3394 = vunpack.c.l.b16 %v3349
        %v3395 = vunpack.c.l.b16 %v3352
        %v3396 = vunpack.c.l.b16 %v3356
        %v3397 = vunpack.c.l.b16 %v3359
        %v3398 = vunpack.c.l.b16 %v3363
        %v3399 = vunpack.c.l.b16 %v3366
        %v3400 = vpack.c.b16 %v3385, %v3384
        %v3401 = vpack.c.b16 %v3387, %v3386
        %v3402 = vpack.c.b16 %v3389, %v3388
        %v3403 = vpack.c.b16 %v3391, %v3390
        %v3404 = vpack.c.b16 %v3393, %v3392
        %v3405 = vpack.c.b16 %v3395, %v3394
        %v3406 = vpack.c.b16 %v3397, %v3396
        %v3407 = vpack.c.b16 %v3399, %v3398
        %v3432 = vunpack.c.l.b16 %v3368
        %v3433 = vunpack.c.l.b16 %v3369
        %v3434 = vunpack.c.l.b16 %v3370
        %v3435 = vunpack.c.l.b16 %v3371
        %v3436 = vunpack.c.l.b16 %v3372
        %v3437 = vunpack.c.l.b16 %v3373
        %v3438 = vunpack.c.l.b16 %v3374
        %v3439 = vunpack.c.l.b16 %v3375
        %v3440 = vunpack.c.l.b16 %v3376
        %v3441 = vunpack.c.l.b16 %v3377
        %v3442 = vunpack.c.l.b16 %v3378
        %v3443 = vunpack.c.l.b16 %v3379
        %v3444 = vunpack.c.l.b16 %v3380
        %v3445 = vunpack.c.l.b16 %v3381
        %v3446 = vunpack.c.l.b16 %v3382
        %v3447 = vunpack.c.l.b16 %v3383
        %v3448 = vpack.c.b16 %v3433, %v3432
        %v3449 = vpack.c.b16 %v3435, %v3434
        %v3450 = vpack.c.b16 %v3437, %v3436
        %v3451 = vpack.c.b16 %v3439, %v3438
        %v3452 = vpack.c.b16 %v3441, %v3440
        %v3453 = vpack.c.b16 %v3443, %v3442
        %v3454 = vpack.c.b16 %v3445, %v3444
        %v3455 = vpack.c.b16 %v3447, %v3446
        %3464 = vmatprep.subr.bf16.mxu0 0
        %3465 = vmatpush1.bf16.msra.mxu0 %v3455
        %3466 = vmatprep.subr.bf16.mxu0 0
        %3467 = vmatpush1.bf16.msra.mxu0 %v3454
        %3468 = vmatprep.subr.bf16.mxu0 0
        %3469 = vmatpush1.bf16.msra.mxu0 %v3453
        %3470 = vmatprep.subr.bf16.mxu0 0
        %3471 = vmatpush1.bf16.msra.mxu0 %v3452
        %3472 = vmatprep.subr.bf16.mxu0 0
        %3473 = vmatpush1.bf16.msra.mxu0 %v3451
        %3474 = vmatprep.subr.bf16.mxu0 0
        %3475 = vmatpush1.bf16.msra.mxu0 %v3450
        %3476 = vmatprep.subr.bf16.mxu0 0
        %3477 = vmatpush1.bf16.msra.mxu0 %v3449
        %3478 = vmatprep.subr.bf16.mxu0 0
        %3479 = vmatpush1.bf16.msra.mxu0 %v3448
        %3480 = vmatprep.subr.bf16.mxu0 0
        %3481 = vmatpush2.bf16.msra.mxu0 0
        %3482 = vmatprep.subr.bf16.mxu0 0
        %3483 = vmatpush2.bf16.msra.mxu0 0
        %3484 = vmatprep.subr.bf16.mxu0 0
        %3485 = vmatpush2.bf16.msra.mxu0 0
        %3486 = vmatprep.subr.bf16.mxu0 0
        %3487 = vmatpush2.bf16.msra.mxu0 0
        %3488 = vmatprep.subr.bf16.mxu0 0
        %3489 = vmatpush2.bf16.msra.mxu0 0
        %3490 = vmatprep.subr.bf16.mxu0 0
        %3491 = vmatpush2.bf16.msra.mxu0 0
        %3492 = vmatprep.subr.bf16.mxu0 0
        %3493 = vmatpush2.bf16.msra.mxu0 0
        %3494 = vmatprep.subr.bf16.mxu0 0
        %3495 = vmatpush2.bf16.msra.mxu0 0
        %3496 = vmatprep.mubr.bf16.mxu0 0
        %3497 = vmatmul.mubr.bf16.gmra.mxu0 %v3400
        %v3498 = vpop.f32.mrf.mxu0
        %v3499 = vadd.f32 0.0, %v3498
        %v3500 = vpop.f32.mrf.mxu0
        %v3501 = vpop.f32.mrf.mxu0
        %v3502 = vadd.f32 0.0, %v3501
        %v3503 = vpop.f32.mrf.mxu0
        %3504 = vmatprep.mubr.bf16.mxu0 0
        %3505 = vmatmul.mubr.bf16.gmra.mxu0 %v3401
        %v3506 = vpop.f32.mrf.mxu0
        %v3507 = vadd.f32 0.0, %v3506
        %v3508 = vpop.f32.mrf.mxu0
        %v3509 = vpop.f32.mrf.mxu0
        %v3510 = vadd.f32 0.0, %v3509
        %v3511 = vpop.f32.mrf.mxu0
        %3512 = vmatprep.mubr.bf16.mxu0 0
        %3513 = vmatmul.mubr.bf16.gmra.mxu0 %v3402
        %v3514 = vpop.f32.mrf.mxu0
        %v3515 = vadd.f32 0.0, %v3514
        %v3516 = vpop.f32.mrf.mxu0
        %v3517 = vpop.f32.mrf.mxu0
        %v3518 = vadd.f32 0.0, %v3517
        %v3519 = vpop.f32.mrf.mxu0
        %3520 = vmatprep.mubr.bf16.mxu0 0
        %3521 = vmatmul.mubr.bf16.gmra.mxu0 %v3403
        %v3522 = vpop.f32.mrf.mxu0
        %v3523 = vadd.f32 0.0, %v3522
        %v3524 = vpop.f32.mrf.mxu0
        %v3525 = vpop.f32.mrf.mxu0
        %v3526 = vadd.f32 0.0, %v3525
        %v3527 = vpop.f32.mrf.mxu0
        %3528 = vmatprep.mubr.bf16.mxu0 0
        %3529 = vmatmul.mubr.bf16.gmra.mxu0 %v3404
        %v3530 = vpop.f32.mrf.mxu0
        %v3531 = vadd.f32 0.0, %v3530
        %v3532 = vpop.f32.mrf.mxu0
        %v3533 = vpop.f32.mrf.mxu0
        %v3534 = vadd.f32 0.0, %v3533
        %v3535 = vpop.f32.mrf.mxu0
        %3536 = vmatprep.mubr.bf16.mxu0 0
        %3537 = vmatmul.mubr.bf16.gmra.mxu0 %v3405
        %v3538 = vpop.f32.mrf.mxu0
        %v3539 = vadd.f32 0.0, %v3538
        %v3540 = vpop.f32.mrf.mxu0
        %v3541 = vpop.f32.mrf.mxu0
        %v3542 = vadd.f32 0.0, %v3541
        %v3543 = vpop.f32.mrf.mxu0
        %3544 = vmatprep.mubr.bf16.mxu0 0
        %3545 = vmatmul.mubr.bf16.gmra.mxu0 %v3406
        %v3546 = vpop.f32.mrf.mxu0
        %v3547 = vadd.f32 0.0, %v3546
        %v3548 = vpop.f32.mrf.mxu0
        %v3549 = vpop.f32.mrf.mxu0
        %v3550 = vadd.f32 0.0, %v3549
        %v3551 = vpop.f32.mrf.mxu0
        %3552 = vmatprep.mubr.bf16.mxu0 0
        %3553 = vmatmul.mubr.bf16.gmra.mxu0 %v3407
        %v3554 = vpop.f32.mrf.mxu0
        %v3555 = vadd.f32 0.0, %v3554
        %v3556 = vpop.f32.mrf.mxu0
        %v3557 = vpop.f32.mrf.mxu0
        %v3558 = vadd.f32 0.0, %v3557
        %v3559 = vpop.f32.mrf.mxu0
        %3560 = vdwg.mxu0
        %v3561 = vadd.f32 %v3263, %v3499
        %v3562 = vadd.f32 %v3264, %v3502
        %v3563 = vadd.f32 %v3265, %v3507
        %v3564 = vadd.f32 %v3266, %v3510
        %v3565 = vadd.f32 %v3267, %v3515
        %v3566 = vadd.f32 %v3268, %v3518
        %v3567 = vadd.f32 %v3269, %v3523
        %v3568 = vadd.f32 %v3270, %v3526
        %v3569 = vadd.f32 %v3271, %v3531
        %v3570 = vadd.f32 %v3272, %v3534
        %v3571 = vadd.f32 %v3273, %v3539
        %v3572 = vadd.f32 %v3274, %v3542
        %v3573 = vadd.f32 %v3275, %v3547
        %v3574 = vadd.f32 %v3276, %v3550
        %v3575 = vadd.f32 %v3277, %v3555
        %v3576 = vadd.f32 %v3278, %v3558
        %v3577 = vmax.f32 %v3561, 0.0
        %v3578 = vmax.f32 %v3562, 0.0
        %v3579 = vmax.f32 %v3563, 0.0
        %v3580 = vmax.f32 %v3564, 0.0
        %v3581 = vmax.f32 %v3565, 0.0
        %v3582 = vmax.f32 %v3566, 0.0
        %v3583 = vmax.f32 %v3567, 0.0
        %v3584 = vmax.f32 %v3568, 0.0
        %v3585 = vmax.f32 %v3569, 0.0
        %v3586 = vmax.f32 %v3570, 0.0
        %v3587 = vmax.f32 %v3571, 0.0
        %v3588 = vmax.f32 %v3572, 0.0
        %v3589 = vmax.f32 %v3573, 0.0
        %v3590 = vmax.f32 %v3574, 0.0
        %v3591 = vmax.f32 %v3575, 0.0
        %v3592 = vmax.f32 %v3576, 0.0
        %v3593 = vpack.c.bf16 %v3578, %v3577
        %v3594 = vpack.c.bf16 %v3580, %v3579
        %v3595 = vpack.c.bf16 %v3582, %v3581
        %v3596 = vpack.c.bf16 %v3584, %v3583
        %v3597 = vpack.c.bf16 %v3586, %v3585
        %v3598 = vpack.c.bf16 %v3588, %v3587
        %v3599 = vpack.c.bf16 %v3590, %v3589
        %v3600 = vpack.c.bf16 %v3592, %v3591
        %v3601 = vld [vmem:[#allocation10] sm:$0xf]
        %v3602 = vld [vmem:[#allocation10 + $0x4] sm:$0xf]
        %v3603 = vld [vmem:[#allocation10 + $0x8] sm:$0xf]
        %v3604 = vld [vmem:[#allocation10 + $0xc] sm:$0xf]
        %v3605 = vld [vmem:[#allocation10 + $0x10] sm:$0xf]
        %v3606 = vld [vmem:[#allocation10 + $0x14] sm:$0xf]
        %v3607 = vld [vmem:[#allocation10 + $0x18] sm:$0xf]
        %v3608 = vld [vmem:[#allocation10 + $0x1c] sm:$0xf]
        %v3609 = vld [vmem:[#allocation10 + $0x20] sm:$0xf]
        %v3610 = vld [vmem:[#allocation10 + $0x24] sm:$0xf]
        %v3611 = vld [vmem:[#allocation10 + $0x28] sm:$0xf]
        %v3612 = vld [vmem:[#allocation10 + $0x2c] sm:$0xf]
        %v3613 = vld [vmem:[#allocation10 + $0x30] sm:$0xf]
        %v3614 = vld [vmem:[#allocation10 + $0x34] sm:$0xf]
        %v3615 = vld [vmem:[#allocation10 + $0x38] sm:$0xf]
        %v3616 = vld [vmem:[#allocation10 + $0x3c] sm:$0xf]
        %v3633 = vunpack.c.l.b16 %v3601
        %v3634 = vunpack.c.l.b16 %v3602
        %v3635 = vunpack.c.l.b16 %v3603
        %v3636 = vunpack.c.l.b16 %v3604
        %v3637 = vunpack.c.l.b16 %v3605
        %v3638 = vunpack.c.l.b16 %v3606
        %v3639 = vunpack.c.l.b16 %v3607
        %v3640 = vunpack.c.l.b16 %v3608
        %v3641 = vunpack.c.l.b16 %v3609
        %v3642 = vunpack.c.l.b16 %v3610
        %v3643 = vunpack.c.l.b16 %v3611
        %v3644 = vunpack.c.l.b16 %v3612
        %v3645 = vunpack.c.l.b16 %v3613
        %v3646 = vunpack.c.l.b16 %v3614
        %v3647 = vunpack.c.l.b16 %v3615
        %v3648 = vunpack.c.l.b16 %v3616
        %v3649 = vpack.c.b16 %v3634, %v3633
        %v3650 = vpack.c.b16 %v3636, %v3635
        %v3651 = vpack.c.b16 %v3638, %v3637
        %v3652 = vpack.c.b16 %v3640, %v3639
        %v3653 = vpack.c.b16 %v3642, %v3641
        %v3654 = vpack.c.b16 %v3644, %v3643
        %v3655 = vpack.c.b16 %v3646, %v3645
        %v3656 = vpack.c.b16 %v3648, %v3647
        %3665 = vmatprep.subr.bf16.mxu0 0
        %3666 = vmatpush1.bf16.msra.mxu0 %v3656
        %3667 = vmatprep.subr.bf16.mxu0 0
        %3668 = vmatpush1.bf16.msra.mxu0 %v3655
        %3669 = vmatprep.subr.bf16.mxu0 0
        %3670 = vmatpush1.bf16.msra.mxu0 %v3654
        %3671 = vmatprep.subr.bf16.mxu0 0
        %3672 = vmatpush1.bf16.msra.mxu0 %v3653
        %3673 = vmatprep.subr.bf16.mxu0 0
        %3674 = vmatpush1.bf16.msra.mxu0 %v3652
        %3675 = vmatprep.subr.bf16.mxu0 0
        %3676 = vmatpush1.bf16.msra.mxu0 %v3651
        %3677 = vmatprep.subr.bf16.mxu0 0
        %3678 = vmatpush1.bf16.msra.mxu0 %v3650
        %3679 = vmatprep.subr.bf16.mxu0 0
        %3680 = vmatpush1.bf16.msra.mxu0 %v3649
        %3681 = vmatprep.subr.bf16.mxu0 0
        %3682 = vmatpush2.bf16.msra.mxu0 0
        %3683 = vmatprep.subr.bf16.mxu0 0
        %3684 = vmatpush2.bf16.msra.mxu0 0
        %3685 = vmatprep.subr.bf16.mxu0 0
        %3686 = vmatpush2.bf16.msra.mxu0 0
        %3687 = vmatprep.subr.bf16.mxu0 0
        %3688 = vmatpush2.bf16.msra.mxu0 0
        %3689 = vmatprep.subr.bf16.mxu0 0
        %3690 = vmatpush2.bf16.msra.mxu0 0
        %3691 = vmatprep.subr.bf16.mxu0 0
        %3692 = vmatpush2.bf16.msra.mxu0 0
        %3693 = vmatprep.subr.bf16.mxu0 0
        %3694 = vmatpush2.bf16.msra.mxu0 0
        %3695 = vmatprep.subr.bf16.mxu0 0
        %3696 = vmatpush2.bf16.msra.mxu0 0
        %3697 = vmatprep.mubr.bf16.mxu0 0
        %3698 = vmatmul.mubr.bf16.gmra.mxu0 %v3593
        %v3699 = vpop.f32.mrf.mxu0
        %v3700 = vadd.f32 0.0, %v3699
        %v3701 = vpop.f32.mrf.mxu0
        %v3702 = vpop.f32.mrf.mxu0
        %v3703 = vadd.f32 0.0, %v3702
        %v3704 = vpop.f32.mrf.mxu0
        %3705 = vmatprep.mubr.bf16.mxu0 0
        %3706 = vmatmul.mubr.bf16.gmra.mxu0 %v3594
        %v3707 = vpop.f32.mrf.mxu0
        %v3708 = vadd.f32 0.0, %v3707
        %v3709 = vpop.f32.mrf.mxu0
        %v3710 = vpop.f32.mrf.mxu0
        %v3711 = vadd.f32 0.0, %v3710
        %v3712 = vpop.f32.mrf.mxu0
        %3713 = vmatprep.mubr.bf16.mxu0 0
        %3714 = vmatmul.mubr.bf16.gmra.mxu0 %v3595
        %v3715 = vpop.f32.mrf.mxu0
        %v3716 = vadd.f32 0.0, %v3715
        %v3717 = vpop.f32.mrf.mxu0
        %v3718 = vpop.f32.mrf.mxu0
        %v3719 = vadd.f32 0.0, %v3718
        %v3720 = vpop.f32.mrf.mxu0
        %3721 = vmatprep.mubr.bf16.mxu0 0
        %3722 = vmatmul.mubr.bf16.gmra.mxu0 %v3596
        %v3723 = vpop.f32.mrf.mxu0
        %v3724 = vadd.f32 0.0, %v3723
        %v3725 = vpop.f32.mrf.mxu0
        %v3726 = vpop.f32.mrf.mxu0
        %v3727 = vadd.f32 0.0, %v3726
        %v3728 = vpop.f32.mrf.mxu0
        %3729 = vmatprep.mubr.bf16.mxu0 0
        %3730 = vmatmul.mubr.bf16.gmra.mxu0 %v3597
        %v3731 = vpop.f32.mrf.mxu0
        %v3732 = vadd.f32 0.0, %v3731
        %v3733 = vpop.f32.mrf.mxu0
        %v3734 = vpop.f32.mrf.mxu0
        %v3735 = vadd.f32 0.0, %v3734
        %v3736 = vpop.f32.mrf.mxu0
        %3737 = vmatprep.mubr.bf16.mxu0 0
        %3738 = vmatmul.mubr.bf16.gmra.mxu0 %v3598
        %v3739 = vpop.f32.mrf.mxu0
        %v3740 = vadd.f32 0.0, %v3739
        %v3741 = vpop.f32.mrf.mxu0
        %v3742 = vpop.f32.mrf.mxu0
        %v3743 = vadd.f32 0.0, %v3742
        %v3744 = vpop.f32.mrf.mxu0
        %3745 = vmatprep.mubr.bf16.mxu0 0
        %3746 = vmatmul.mubr.bf16.gmra.mxu0 %v3599
        %v3747 = vpop.f32.mrf.mxu0
        %v3748 = vadd.f32 0.0, %v3747
        %v3749 = vpop.f32.mrf.mxu0
        %v3750 = vpop.f32.mrf.mxu0
        %v3751 = vadd.f32 0.0, %v3750
        %v3752 = vpop.f32.mrf.mxu0
        %3753 = vmatprep.mubr.bf16.mxu0 0
        %3754 = vmatmul.mubr.bf16.gmra.mxu0 %v3600
        %v3755 = vpop.f32.mrf.mxu0
        %v3756 = vadd.f32 0.0, %v3755
        %v3757 = vpop.f32.mrf.mxu0
        %v3758 = vpop.f32.mrf.mxu0
        %v3759 = vadd.f32 0.0, %v3758
        %v3760 = vpop.f32.mrf.mxu0
        %3761 = vdwg.mxu0
        %v3762 = vld [vmem:[%s207] sm:$0xff]
        %v3763 = vld [vmem:[%s207 + $0x8] sm:$0xff]
        %v3764 = vld [vmem:[%s207 + $0x10] sm:$0xff]
        %v3765 = vld [vmem:[%s207 + $0x18] sm:$0xff]
        %v3766 = vld [vmem:[%s207 + $0x20] sm:$0xff]
        %v3767 = vld [vmem:[%s207 + $0x28] sm:$0xff]
        %v3768 = vld [vmem:[%s207 + $0x30] sm:$0xff]
        %v3769 = vld [vmem:[%s207 + $0x38] sm:$0xff]
        %v3770 = vld [vmem:[%s207 + $0x40] sm:$0xff]
        %v3771 = vld [vmem:[%s207 + $0x48] sm:$0xff]
        %v3772 = vld [vmem:[%s207 + $0x50] sm:$0xff]
        %v3773 = vld [vmem:[%s207 + $0x58] sm:$0xff]
        %v3774 = vld [vmem:[%s207 + $0x60] sm:$0xff]
        %v3775 = vld [vmem:[%s207 + $0x68] sm:$0xff]
        %v3776 = vld [vmem:[%s207 + $0x70] sm:$0xff]
        %v3777 = vld [vmem:[%s207 + $0x78] sm:$0xff]
        %v3778 = vadd.f32 %v3762, %v3700
        %v3779 = vadd.f32 %v3763, %v3703
        %v3780 = vadd.f32 %v3764, %v3708
        %v3781 = vadd.f32 %v3765, %v3711
        %v3782 = vadd.f32 %v3766, %v3716
        %v3783 = vadd.f32 %v3767, %v3719
        %v3784 = vadd.f32 %v3768, %v3724
        %v3785 = vadd.f32 %v3769, %v3727
        %v3786 = vadd.f32 %v3770, %v3732
        %v3787 = vadd.f32 %v3771, %v3735
        %v3788 = vadd.f32 %v3772, %v3740
        %v3789 = vadd.f32 %v3773, %v3743
        %v3790 = vadd.f32 %v3774, %v3748
        %v3791 = vadd.f32 %v3775, %v3751
        %v3792 = vadd.f32 %v3776, %v3756
        %v3793 = vadd.f32 %v3777, %v3759
        %3794 = vst [vmem:[%s237] sm:$0xff] %v3778
        %3795 = vst [vmem:[%s237 + $0x8] sm:$0xff] %v3779
        %3796 = vst [vmem:[%s237 + $0x10] sm:$0xff] %v3780
        %3797 = vst [vmem:[%s237 + $0x18] sm:$0xff] %v3781
        %3798 = vst [vmem:[%s237 + $0x20] sm:$0xff] %v3782
        %3799 = vst [vmem:[%s237 + $0x28] sm:$0xff] %v3783
        %3800 = vst [vmem:[%s237 + $0x30] sm:$0xff] %v3784
        %3801 = vst [vmem:[%s237 + $0x38] sm:$0xff] %v3785
        %3802 = vst [vmem:[%s237 + $0x40] sm:$0xff] %v3786
        %3803 = vst [vmem:[%s237 + $0x48] sm:$0xff] %v3787
        %3804 = vst [vmem:[%s237 + $0x50] sm:$0xff] %v3788
        %3805 = vst [vmem:[%s237 + $0x58] sm:$0xff] %v3789
        %3806 = vst [vmem:[%s237 + $0x60] sm:$0xff] %v3790
        %3807 = vst [vmem:[%s237 + $0x68] sm:$0xff] %v3791
        %3808 = vst [vmem:[%s237 + $0x70] sm:$0xff] %v3792
        %3809 = vst [vmem:[%s237 + $0x78] sm:$0xff] %v3793
        %s3810 = sand.u32 %s114, 1
        %s3811 = scalar_lea.sflag [#allocation7], %s3810
        %s3812 = sand.u32 %s114, 1
        %s3813 = smul.addr %s3812, 128
        %s3814 = scalar_lea.vmem [#allocation11], %s3813
        // Predicated region
        $region69: #{tpu_custom_call.1} parent=31 // pred_check
          %p3815 = pneg %p124
        $region70: #{tpu_custom_call.1} parent=31 // pred_check_branch
          %3817 = sbr.rel (%p3815) target = $region72
        $region71: #{tpu_custom_call.1} parent=31 // pred_region
          %s3818 = smul.u32 8, %s27
          %s3820 = ssub.s32 2048, 2048
          %3821 = vsyncadd %s3811, %s3820
          %s3822 = smul.addr %s3818, 2
          %s3823 = smul.addr %s26, 32
          %s3824 = sadd.s32 %s3822, %s3823
          %s3825 = smul.addr %s3824, 128
          %s3826 = scalar_lea.hbm %s4, %s3825
          %s3827 = sshll.u32 %s3814, 4
          %s3828 = int_to_ptr.vmem [resolvable:$true] %s3827
          %3833 = dma.vmem_to_hbm [thread:$0]  %s3828, 2048, %s3826, %s3811, 128, 128, 8
        $region72: #{tpu_custom_call.1} parent=31 // pred_fallthru
          _
      $region32: #{tpu_custom_call.1} parent=5 // pred_fallthru
        _
      %p3834 = scmp.le.s32.totalorder 2, %s17
      // Predicated region
      $region73: #{tpu_custom_call.1} parent=5 // pred_check
        %p3835 = pneg %p3834
      $region74: #{tpu_custom_call.1} parent=5 // pred_check_branch
        %3837 = sbr.rel (%p3835) target = $region76
      $region75: #{tpu_custom_call.1} parent=5 // pred_region
        %s3838 = ssub.s32 %s17, 2
        // Predicated region
        $region77: #{tpu_custom_call.1} parent=75 // pred_check
          %p3839 = pneg %p130
        $region78: #{tpu_custom_call.1} parent=75 // pred_check_branch
          %3841 = sbr.rel (%p3839) target = $region80
        $region79: #{tpu_custom_call.1} parent=75 // pred_region
          %s3842 = sand.u32 %s115, 1
          %s3843 = scalar_lea.sflag [#allocation7], %s3842
          %s3844 = sand.u32 %s115, 1
          %s3845 = smul.addr %s3844, 128
          %s3846 = scalar_lea.vmem [#allocation11], %s3845
          %3847 = dma.done %s3843, 2048
        $region80: #{tpu_custom_call.1} parent=75 // pred_fallthru
          _
      $region76: #{tpu_custom_call.1} parent=5 // pred_fallthru
        _
    $region6: #{tpu_custom_call.1} parent=1 // loop_footer
      %s21 = sadd.s32 1, %s17
    $region7: #{tpu_custom_call.1} parent=1 // loop_footer_branch
      %16 = sbr.rel target = $region3
    $region8: #{tpu_custom_call.1} parent=1 // loop_exit
      _
    %3848 = vsyncpa [#allocation6], 1
    %s3849 = scalar_lea.sflag [#allocation6], 1
    %3850 = vsyncpa %s3849, 1
    %3851 = vsyncpa [#allocation9], 1
    %3852 = vsyncpa [#allocation7], 1
    %s3853 = scalar_lea.sflag [#allocation7], 1
    %3854 = vsyncpa %s3853, 1
  %3855 = vsyncmov [#allocation4]
  %s3856 = vpop.sfrf %3855
  %p3857 = scmp.eq.s32.totalorder %s3856, 0
  %p3858 = pneg %p3857
  %3860 = shalt.err (%p3858)
  %s3861 = scalar_lea.sflag [#allocation4], 1
  %3862 = vsyncmov %s3861
  %s3863 = vpop.sfrf %3862
  %p3864 = scmp.eq.s32.totalorder %s3863, 0
  %p3865 = pneg %p3864
  %3867 = shalt.err (%p3865)

</llo_original>
